<compile_context>
chip_gen: v7x
topology: tpu7x:2x2x1
jax: 0.10.0
libtpu: 0.0.40
codegen_flags: <defaults>
</compile_context>

<pallas_src>
import math
import jax
import jax.numpy as jnp
from jax.experimental import pallas as pl
from jax.experimental.pallas import tpu as pltpu


def _round_up(x, m):
    return ((x + m - 1) // m) * m


def _e2e_kernel(emb_ref, w_ref, b_ref, out_ref):
    # emb_ref: (tc, D, tg)  -- genes on lanes (lane-dense), D on sublanes
    # w_ref:   (D, tg)      -- per-gene weights (already gene-sliced/padded in wrapper)
    # b_ref:   (1, tg)      -- per-gene bias (mean gene expression), f32
    # out_ref: (tc, tg)     -- lane-dense output tile
    emb = emb_ref[...].astype(jnp.float32)
    w = w_ref[...].astype(jnp.float32)
    acc = jnp.sum(emb * w[None, :, :], axis=1)            # f32 reduce over embedding dim
    out_ref[...] = (acc + b_ref[...]).astype(out_ref.dtype)


def _pick_tiles(cell_n, gp, d, emb_bytes, w_bytes,
                vmem_tile_budget=32 * 1024 * 1024, max_tg=512, max_tc=2048):
    """Pick (cell_tile, gene_tile) from an explicit VMEM budget."""
    # gene tile: largest multiple of 128 (<= max_tg) that divides the padded gene dim
    if gp <= max_tg:
        tg = gp
    else:
        tg = 128
        for cand in range(max_tg, 127, -128):
            if gp % cand == 0:
                tg = cand
                break
    # VMEM use ~ 3x emb tile (2 pipeline buffers + elementwise temporary)
    #          + 2x out tile + resident (double-buffered) weights/bias.
    fixed = 2 * tg * d * w_bytes + 2 * tg * 4
    per_row = 3 * tg * d * emb_bytes + 2 * tg * 4
    tc = max(8, min(max_tc, (vmem_tile_budget - fixed) // per_row))
    tc = (tc // 8) * 8
    # spread cells evenly over the grid steps so the last tile is not mostly padding
    n_steps = max(1, -(-cell_n // tc))
    tc = _round_up(-(-cell_n // n_steps), 8)
    return int(tc), int(tg)


def embedding_to_expression(cell_gene_embedding, weight1, bias1, gene_start, gene_end):
    """Pallas forward of EmbeddingToExpression.

    cell_gene_embedding: (cell_n, gene_n, D) float32 or bfloat16
    weight1:             (n_genes, D)
    bias1:               (n_genes,)
    gene_ix = slice(gene_start, gene_end) with gene_end - gene_start == gene_n
    returns (cell_n, gene_n) float32
    """
    cell_n, gene_n, d = cell_gene_embedding.shape
    assert gene_end - gene_start == gene_n

    # glue: apply the gene_ix slice to the parameters in plain JAX
    w = weight1[gene_start:gene_end]                     # (gene_n, D)
    b = bias1[gene_start:gene_end]                       # (gene_n,)

    gp = _round_up(gene_n, 128)                          # lane-dense gene axis
    emb_bytes = jnp.dtype(cell_gene_embedding.dtype).itemsize
    w_bytes = jnp.dtype(w.dtype).itemsize
    tc, tg = _pick_tiles(cell_n, gp, d, emb_bytes, w_bytes)
    cell_pad = _round_up(cell_n, tc)

    # layout plumbing: (cell, gene, D) -> (cell, D, gene_padded); pad cells to tile
    emb_t = jnp.transpose(cell_gene_embedding, (0, 2, 1))
    emb_t = jnp.pad(emb_t, ((0, cell_pad - cell_n), (0, 0), (0, gp - gene_n)))
    w_t = jnp.pad(jnp.transpose(w, (1, 0)), ((0, 0), (0, gp - gene_n)))
    b_t = jnp.pad(b, (0, gp - gene_n)).reshape(1, gp).astype(jnp.float32)

    grid = (gp // tg, cell_pad // tc)   # genes outer, cells inner -> w/b stay resident

    out = pl.pallas_call(
        _e2e_kernel,
        out_shape=jax.ShapeDtypeStruct((cell_pad, gp), jnp.float32),
        grid_spec=pltpu.PrefetchScalarGridSpec(
            num_scalar_prefetch=0,
            grid=grid,
            in_specs=[
                pl.BlockSpec((tc, d, tg), lambda gi, ci: (ci, 0, gi)),
                pl.BlockSpec((d, tg), lambda gi, ci: (0, gi)),
                pl.BlockSpec((1, tg), lambda gi, ci: (0, gi)),
            ],
            out_specs=pl.BlockSpec((tc, tg), lambda gi, ci: (ci, gi)),
        ),
        compiler_params=pltpu.CompilerParams(
            dimension_semantics=("parallel", "parallel"),
            vmem_limit_bytes=48 * 1024 * 1024,   # tiles sized for ~32 MiB; safe on v7x (64 MiB)
        ),
    )(emb_t, w_t, b_t)

    return out[:cell_n, :gene_n]


if __name__ == "__main__":
    # small, deterministic shapes consistent with the module's forward
    n_genes = 128                    # total genes held by the module
    gene_start, gene_end = 0, 100    # gene_ix slice -> gene_n = 100 (as in the script)
    gene_n = gene_end - gene_start
    cell_n = 120                     # small cell batch (module uses 500)
    n_embedding_dimensions = 100     # as in the module

    key = jax.random.PRNGKey(0)
    k_emb, k_w, k_b = jax.random.split(key, 3)

    # parameters initialized as in __init__ (uniform(-stdv, stdv); bias = mean_gene_expression)
    stdv = 1.0 / math.sqrt(n_embedding_dimensions) / 100.0
    weight1 = jax.random.uniform(
        k_w, (n_genes, n_embedding_dimensions), jnp.float32, minval=-stdv, maxval=stdv)
    mean_gene_expression = jax.random.normal(k_b, (n_genes,), jnp.float32)
    bias1 = mean_gene_expression

    # synthetic cell_gene_embedding (output of embedding_gene_pooler)
    cell_gene_embedding = jax.random.normal(
        k_emb, (cell_n, gene_n, n_embedding_dimensions), jnp.float32)

    out = embedding_to_expression(cell_gene_embedding, weight1, bias1, gene_start, gene_end)
    out = jax.block_until_ready(out)

    # pure-JAX reference check
    ref = (cell_gene_embedding * weight1[gene_start:gene_end][None]).sum(-1) \
        + bias1[gene_start:gene_end][None]
    assert out.shape == (cell_n, gene_n)
    assert jnp.allclose(out, ref, atol=1e-5, rtol=1e-5)

    # bf16 activation path (halves HBM traffic); accumulation stays f32 in-kernel
    out_bf16 = embedding_to_expression(
        cell_gene_embedding.astype(jnp.bfloat16), weight1, bias1, gene_start, gene_end)
    out_bf16 = jax.block_until_ready(out_bf16)
    assert out_bf16.shape == (cell_n, gene_n)
    assert jnp.allclose(out_bf16, ref, atol=5e-2, rtol=5e-2)

    print("KERNEL_OK")
</pallas_src>

<mosaic_0001>
module attributes {stable_mosaic.version = 11 : i64} {
  func.func @_e2e_kernel(%arg0: i32, %arg1: i32, %arg2: memref<120x100x128xf32, #tpu.memory_space<vmem>>, %arg3: memref<100x128xf32, #tpu.memory_space<vmem>>, %arg4: memref<1x128xf32, #tpu.memory_space<vmem>>, %arg5: memref<120x128xf32, #tpu.memory_space<vmem>>) attributes {dimension_semantics = [#tpu.dimension_semantics<parallel>, #tpu.dimension_semantics<parallel>], iteration_bounds = array<i64: 1, 1>, scalar_prefetch = 0 : i64, scratch_operands = 0 : i64, tpu.core_type = #tpu.core_type<tc>, window_params = [{transform_indices = @transform_0, window_bounds = array<i64: 120, 100, 128>}, {transform_indices = @transform_1, window_bounds = array<i64: 100, 128>}, {transform_indices = @transform_2, window_bounds = array<i64: 1, 128>}, {transform_indices = @transform_3, window_bounds = array<i64: 120, 128>}]} {
    %c0 = arith.constant 0 : index
    %c0_0 = arith.constant 0 : index
    %c0_1 = arith.constant 0 : index
    %0 = vector.load %arg2[%c0, %c0_0, %c0_1] : memref<120x100x128xf32, #tpu.memory_space<vmem>>, vector<120x100x128xf32>
    %c0_2 = arith.constant 0 : index
    %c0_3 = arith.constant 0 : index
    %1 = vector.load %arg3[%c0_2, %c0_3] : memref<100x128xf32, #tpu.memory_space<vmem>>, vector<100x128xf32>
    %2 = vector.shape_cast %1 : vector<100x128xf32> to vector<1x100x128xf32>
    %3 = vector.broadcast %2 : vector<1x100x128xf32> to vector<120x100x128xf32>
    %4 = arith.mulf %0, %3 : vector<120x100x128xf32>
    %cst = arith.constant dense<0.000000e+00> : vector<120x128xf32>
    %5 = vector.multi_reduction <add>, %4, %cst [1] : vector<120x100x128xf32> to vector<120x128xf32>
    %c0_4 = arith.constant 0 : index
    %c0_5 = arith.constant 0 : index
    %6 = vector.load %arg4[%c0_4, %c0_5] : memref<1x128xf32, #tpu.memory_space<vmem>>, vector<1x128xf32>
    %7 = vector.broadcast %6 : vector<1x128xf32> to vector<120x128xf32>
    %8 = arith.addf %5, %7 : vector<120x128xf32>
    %c0_6 = arith.constant 0 : index
    %c0_7 = arith.constant 0 : index
    %9 = vector.load %arg5[%c0_6, %c0_7] : memref<120x128xf32, #tpu.memory_space<vmem>>, vector<120x128xf32>
    tpu.vector_store %arg5[%c0_6, %c0_7], %8 {strides = array<i32>} : memref<120x128xf32, #tpu.memory_space<vmem>>, vector<120x128xf32>,
    return
  }
  func.func @transform_0(%arg0: i32, %arg1: i32) -> (i32, i32, i32) {
    %c0_i32 = arith.constant 0 : i32
    %c0_i32_0 = arith.constant 0 : i32
    return %arg1, %c0_i32, %arg0 : i32, i32, i32
  }
  func.func @transform_1(%arg0: i32, %arg1: i32) -> (i32, i32) {
    %c0_i32 = arith.constant 0 : i32
    %c0_i32_0 = arith.constant 0 : i32
    return %c0_i32, %arg0 : i32, i32
  }
  func.func @transform_2(%arg0: i32, %arg1: i32) -> (i32, i32) {
    %c0_i32 = arith.constant 0 : i32
    %c0_i32_0 = arith.constant 0 : i32
    return %c0_i32, %arg0 : i32, i32
  }
  func.func @transform_3(%arg0: i32, %arg1: i32) -> (i32, i32) {
    %c0_i32 = arith.constant 0 : i32
    return %arg1, %arg0 : i32, i32
  }
}

</mosaic_0001>

<llo_original>
// kernel: tpu_custom_call.1
$region0: #{tpu_custom_call.1}
  #allocation0 [shape = 'u32[]', space=smem, size = 0x4, offset = 0x4, fixed_abs, tag = 'smem constant byte address 0x4 - core index']
  #allocation1 [shape = 'u32[144,128]{1,0:T(1,128)}', space=vmem, size = 0x12000, scoped, tag = 'internal scratch']
  %s0 = inlined_call_operand.vmem [shape: f32[120,100,128], index: 0, kind: input, shape index: {}]
  %s1 = inlined_call_operand.vmem [shape: f32[100,128], index: 1, kind: input, shape index: {}]
  %s2 = inlined_call_operand.vmem [shape: f32[1,128], index: 2, kind: input, shape index: {}]
  %s3 = inlined_call_operand.hbm [shape: f32[120,128], index: 3, kind: output, shape index: {}]
  %s4 = sld [smem:[#allocation0]]
  $region22: #{tpu_custom_call.1} parent=0
    _
  %s6 = ssub.s32 1, %s4
  %s7 = scalar_select 0, %s6, %s4
  $region1: #{tpu_custom_call.1} parent=0
    #allocation2 [shape = 'u8[61440]{0}', space=vmem, size = 0xf000, scoped, tag = 'output window, operand 0, single buffered']
    #allocation3 [shape = 's32[1]{0}', space=sflag, size = 0x4, scoped, tag = 'scoped memory for tpu_custom_call.1']
    %8 = vsyncpa [#allocation3], 0
    // Predicated region
    $region2: #{tpu_custom_call.1} parent=1 // pred_check
      _
    $region3: #{tpu_custom_call.1} parent=1 // pred_check_branch
      %10 = sbr.rel (0) target = $region5
    $region4: #{tpu_custom_call.1} parent=1 // pred_region
      _
    $region5: #{tpu_custom_call.1} parent=1 // pred_fallthru
      _
    // Predicated region
    $region6: #{tpu_custom_call.1} parent=1 // pred_check
      _
    $region7: #{tpu_custom_call.1} parent=1 // pred_check_branch
      %12 = sbr.rel (0) target = $region9
    $region8: #{tpu_custom_call.1} parent=1 // pred_region
      _
    $region9: #{tpu_custom_call.1} parent=1 // pred_fallthru
      _
    // Predicated region
    $region10: #{tpu_custom_call.1} parent=1 // pred_check
      _
    $region11: #{tpu_custom_call.1} parent=1 // pred_check_branch
      %14 = sbr.rel (0) target = $region13
    $region12: #{tpu_custom_call.1} parent=1 // pred_region
      _
    $region13: #{tpu_custom_call.1} parent=1 // pred_fallthru
      _
    %v15 = vld [vmem:[%s0] sm:$0xff]
    %v16 = vld [vmem:[%s0 + $0x8] sm:$0xff]
    %v17 = vld [vmem:[%s0 + $0x10] sm:$0xff]
    %v18 = vld [vmem:[%s0 + $0x18] sm:$0xff]
    %v19 = vld [vmem:[%s0 + $0x20] sm:$0xff]
    %v20 = vld [vmem:[%s0 + $0x28] sm:$0xff]
    %v21 = vld [vmem:[%s0 + $0x30] sm:$0xff]
    %v22 = vld [vmem:[%s0 + $0x38] sm:$0xff]
    %v23 = vld [vmem:[%s0 + $0x40] sm:$0xff]
    %v24 = vld [vmem:[%s0 + $0x48] sm:$0xff]
    %v25 = vld [vmem:[%s0 + $0x50] sm:$0xff]
    %v26 = vld [vmem:[%s0 + $0x58] sm:$0xff]
    %v27 = vld [vmem:[%s0 + $0x60] sm:$0xf]
    %v28 = vld [vmem:[%s0 + $0x68] sm:$0xff]
    %v29 = vld [vmem:[%s0 + $0x70] sm:$0xff]
    %v30 = vld [vmem:[%s0 + $0x78] sm:$0xff]
    %v31 = vld [vmem:[%s0 + $0x80] sm:$0xff]
    %v32 = vld [vmem:[%s0 + $0x88] sm:$0xff]
    %v33 = vld [vmem:[%s0 + $0x90] sm:$0xff]
    %v34 = vld [vmem:[%s0 + $0x98] sm:$0xff]
    %v35 = vld [vmem:[%s0 + $0xa0] sm:$0xff]
    %v36 = vld [vmem:[%s0 + $0xa8] sm:$0xff]
    %v37 = vld [vmem:[%s0 + $0xb0] sm:$0xff]
    %v38 = vld [vmem:[%s0 + $0xb8] sm:$0xff]
    %v39 = vld [vmem:[%s0 + $0xc0] sm:$0xff]
    %v40 = vld [vmem:[%s0 + $0xc8] sm:$0xf]
    %v41 = vld [vmem:[%s0 + $0xd0] sm:$0xff]
    %v42 = vld [vmem:[%s0 + $0xd8] sm:$0xff]
    %v43 = vld [vmem:[%s0 + $0xe0] sm:$0xff]
    %v44 = vld [vmem:[%s0 + $0xe8] sm:$0xff]
    %v45 = vld [vmem:[%s0 + $0xf0] sm:$0xff]
    %v46 = vld [vmem:[%s0 + $0xf8] sm:$0xff]
    %v47 = vld [vmem:[%s0 + $0x100] sm:$0xff]
    %v48 = vld [vmem:[%s0 + $0x108] sm:$0xff]
    %v49 = vld [vmem:[%s0 + $0x110] sm:$0xff]
    %v50 = vld [vmem:[%s0 + $0x118] sm:$0xff]
    %v51 = vld [vmem:[%s0 + $0x120] sm:$0xff]
    %v52 = vld [vmem:[%s0 + $0x128] sm:$0xff]
    %v53 = vld [vmem:[%s0 + $0x130] sm:$0xf]
    %v54 = vld [vmem:[%s0 + $0x138] sm:$0xff]
    %v55 = vld [vmem:[%s0 + $0x140] sm:$0xff]
    %v56 = vld [vmem:[%s0 + $0x148] sm:$0xff]
    %v57 = vld [vmem:[%s0 + $0x150] sm:$0xff]
    %v58 = vld [vmem:[%s0 + $0x158] sm:$0xff]
    %v59 = vld [vmem:[%s0 + $0x160] sm:$0xff]
    %v60 = vld [vmem:[%s0 + $0x168] sm:$0xff]
    %v61 = vld [vmem:[%s0 + $0x170] sm:$0xff]
    %v62 = vld [vmem:[%s0 + $0x178] sm:$0xff]
    %v63 = vld [vmem:[%s0 + $0x180] sm:$0xff]
    %v64 = vld [vmem:[%s0 + $0x188] sm:$0xff]
    %v65 = vld [vmem:[%s0 + $0x190] sm:$0xff]
    %v66 = vld [vmem:[%s0 + $0x198] sm:$0xf]
    %v67 = vld [vmem:[%s0 + $0x1a0] sm:$0xff]
    %v68 = vld [vmem:[%s0 + $0x1a8] sm:$0xff]
    %v69 = vld [vmem:[%s0 + $0x1b0] sm:$0xff]
    %v70 = vld [vmem:[%s0 + $0x1b8] sm:$0xff]
    %v71 = vld [vmem:[%s0 + $0x1c0] sm:$0xff]
    %v72 = vld [vmem:[%s0 + $0x1c8] sm:$0xff]
    %v73 = vld [vmem:[%s0 + $0x1d0] sm:$0xff]
    %v74 = vld [vmem:[%s0 + $0x1d8] sm:$0xff]
    %v75 = vld [vmem:[%s0 + $0x1e0] sm:$0xff]
    %v76 = vld [vmem:[%s0 + $0x1e8] sm:$0xff]
    %v77 = vld [vmem:[%s0 + $0x1f0] sm:$0xff]
    %v78 = vld [vmem:[%s0 + $0x1f8] sm:$0xff]
    %v79 = vld [vmem:[%s0 + $0x200] sm:$0xf]
    %v80 = vld [vmem:[%s0 + $0x208] sm:$0xff]
    %v81 = vld [vmem:[%s0 + $0x210] sm:$0xff]
    %v82 = vld [vmem:[%s0 + $0x218] sm:$0xff]
    %v83 = vld [vmem:[%s0 + $0x220] sm:$0xff]
    %v84 = vld [vmem:[%s0 + $0x228] sm:$0xff]
    %v85 = vld [vmem:[%s0 + $0x230] sm:$0xff]
    %v86 = vld [vmem:[%s0 + $0x238] sm:$0xff]
    %v87 = vld [vmem:[%s0 + $0x240] sm:$0xff]
    %v88 = vld [vmem:[%s0 + $0x248] sm:$0xff]
    %v89 = vld [vmem:[%s0 + $0x250] sm:$0xff]
    %v90 = vld [vmem:[%s0 + $0x258] sm:$0xff]
    %v91 = vld [vmem:[%s0 + $0x260] sm:$0xff]
    %v92 = vld [vmem:[%s0 + $0x268] sm:$0xf]
    %v93 = vld [vmem:[%s0 + $0x270] sm:$0xff]
    %v94 = vld [vmem:[%s0 + $0x278] sm:$0xff]
    %v95 = vld [vmem:[%s0 + $0x280] sm:$0xff]
    %v96 = vld [vmem:[%s0 + $0x288] sm:$0xff]
    %v97 = vld [vmem:[%s0 + $0x290] sm:$0xff]
    %v98 = vld [vmem:[%s0 + $0x298] sm:$0xff]
    %v99 = vld [vmem:[%s0 + $0x2a0] sm:$0xff]
    %v100 = vld [vmem:[%s0 + $0x2a8] sm:$0xff]
    %v101 = vld [vmem:[%s0 + $0x2b0] sm:$0xff]
    %v102 = vld [vmem:[%s0 + $0x2b8] sm:$0xff]
    %v103 = vld [vmem:[%s0 + $0x2c0] sm:$0xff]
    %v104 = vld [vmem:[%s0 + $0x2c8] sm:$0xff]
    %v105 = vld [vmem:[%s0 + $0x2d0] sm:$0xf]
    %v106 = vld [vmem:[%s0 + $0x2d8] sm:$0xff]
    %v107 = vld [vmem:[%s0 + $0x2e0] sm:$0xff]
    %v108 = vld [vmem:[%s0 + $0x2e8] sm:$0xff]
    %v109 = vld [vmem:[%s0 + $0x2f0] sm:$0xff]
    %v110 = vld [vmem:[%s0 + $0x2f8] sm:$0xff]
    %v111 = vld [vmem:[%s0 + $0x300] sm:$0xff]
    %v112 = vld [vmem:[%s0 + $0x308] sm:$0xff]
    %v113 = vld [vmem:[%s0 + $0x310] sm:$0xff]
    %v114 = vld [vmem:[%s0 + $0x318] sm:$0xff]
    %v115 = vld [vmem:[%s0 + $0x320] sm:$0xff]
    %v116 = vld [vmem:[%s0 + $0x328] sm:$0xff]
    %v117 = vld [vmem:[%s0 + $0x330] sm:$0xff]
    %v118 = vld [vmem:[%s0 + $0x338] sm:$0xf]
    %v119 = vld [vmem:[%s0 + $0x340] sm:$0xff]
    %v120 = vld [vmem:[%s0 + $0x348] sm:$0xff]
    %v121 = vld [vmem:[%s0 + $0x350] sm:$0xff]
    %v122 = vld [vmem:[%s0 + $0x358] sm:$0xff]
    %v123 = vld [vmem:[%s0 + $0x360] sm:$0xff]
    %v124 = vld [vmem:[%s0 + $0x368] sm:$0xff]
    %v125 = vld [vmem:[%s0 + $0x370] sm:$0xff]
    %v126 = vld [vmem:[%s0 + $0x378] sm:$0xff]
    %v127 = vld [vmem:[%s0 + $0x380] sm:$0xff]
    %v128 = vld [vmem:[%s0 + $0x388] sm:$0xff]
    %v129 = vld [vmem:[%s0 + $0x390] sm:$0xff]
    %v130 = vld [vmem:[%s0 + $0x398] sm:$0xff]
    %v131 = vld [vmem:[%s0 + $0x3a0] sm:$0xf]
    %v132 = vld [vmem:[%s0 + $0x3a8] sm:$0xff]
    %v133 = vld [vmem:[%s0 + $0x3b0] sm:$0xff]
    %v134 = vld [vmem:[%s0 + $0x3b8] sm:$0xff]
    %v135 = vld [vmem:[%s0 + $0x3c0] sm:$0xff]
    %v136 = vld [vmem:[%s0 + $0x3c8] sm:$0xff]
    %v137 = vld [vmem:[%s0 + $0x3d0] sm:$0xff]
    %v138 = vld [vmem:[%s0 + $0x3d8] sm:$0xff]
    %v139 = vld [vmem:[%s0 + $0x3e0] sm:$0xff]
    %v140 = vld [vmem:[%s0 + $0x3e8] sm:$0xff]
    %v141 = vld [vmem:[%s0 + $0x3f0] sm:$0xff]
    %v142 = vld [vmem:[%s0 + $0x3f8] sm:$0xff]
    %v143 = vld [vmem:[%s0 + $0x400] sm:$0xff]
    %v144 = vld [vmem:[%s0 + $0x408] sm:$0xf]
    %v145 = vld [vmem:[%s0 + $0x410] sm:$0xff]
    %v146 = vld [vmem:[%s0 + $0x418] sm:$0xff]
    %v147 = vld [vmem:[%s0 + $0x420] sm:$0xff]
    %v148 = vld [vmem:[%s0 + $0x428] sm:$0xff]
    %v149 = vld [vmem:[%s0 + $0x430] sm:$0xff]
    %v150 = vld [vmem:[%s0 + $0x438] sm:$0xff]
    %v151 = vld [vmem:[%s0 + $0x440] sm:$0xff]
    %v152 = vld [vmem:[%s0 + $0x448] sm:$0xff]
    %v153 = vld [vmem:[%s0 + $0x450] sm:$0xff]
    %v154 = vld [vmem:[%s0 + $0x458] sm:$0xff]
    %v155 = vld [vmem:[%s0 + $0x460] sm:$0xff]
    %v156 = vld [vmem:[%s0 + $0x468] sm:$0xff]
    %v157 = vld [vmem:[%s0 + $0x470] sm:$0xf]
    %v158 = vld [vmem:[%s0 + $0x478] sm:$0xff]
    %v159 = vld [vmem:[%s0 + $0x480] sm:$0xff]
    %v160 = vld [vmem:[%s0 + $0x488] sm:$0xff]
    %v161 = vld [vmem:[%s0 + $0x490] sm:$0xff]
    %v162 = vld [vmem:[%s0 + $0x498] sm:$0xff]
    %v163 = vld [vmem:[%s0 + $0x4a0] sm:$0xff]
    %v164 = vld [vmem:[%s0 + $0x4a8] sm:$0xff]
    %v165 = vld [vmem:[%s0 + $0x4b0] sm:$0xff]
    %v166 = vld [vmem:[%s0 + $0x4b8] sm:$0xff]
    %v167 = vld [vmem:[%s0 + $0x4c0] sm:$0xff]
    %v168 = vld [vmem:[%s0 + $0x4c8] sm:$0xff]
    %v169 = vld [vmem:[%s0 + $0x4d0] sm:$0xff]
    %v170 = vld [vmem:[%s0 + $0x4d8] sm:$0xf]
    %v171 = vld [vmem:[%s0 + $0x4e0] sm:$0xff]
    %v172 = vld [vmem:[%s0 + $0x4e8] sm:$0xff]
    %v173 = vld [vmem:[%s0 + $0x4f0] sm:$0xff]
    %v174 = vld [vmem:[%s0 + $0x4f8] sm:$0xff]
    %v175 = vld [vmem:[%s0 + $0x500] sm:$0xff]
    %v176 = vld [vmem:[%s0 + $0x508] sm:$0xff]
    %v177 = vld [vmem:[%s0 + $0x510] sm:$0xff]
    %v178 = vld [vmem:[%s0 + $0x518] sm:$0xff]
    %v179 = vld [vmem:[%s0 + $0x520] sm:$0xff]
    %v180 = vld [vmem:[%s0 + $0x528] sm:$0xff]
    %v181 = vld [vmem:[%s0 + $0x530] sm:$0xff]
    %v182 = vld [vmem:[%s0 + $0x538] sm:$0xff]
    %v183 = vld [vmem:[%s0 + $0x540] sm:$0xf]
    %v184 = vld [vmem:[%s0 + $0x548] sm:$0xff]
    %v185 = vld [vmem:[%s0 + $0x550] sm:$0xff]
    %v186 = vld [vmem:[%s0 + $0x558] sm:$0xff]
    %v187 = vld [vmem:[%s0 + $0x560] sm:$0xff]
    %v188 = vld [vmem:[%s0 + $0x568] sm:$0xff]
    %v189 = vld [vmem:[%s0 + $0x570] sm:$0xff]
    %v190 = vld [vmem:[%s0 + $0x578] sm:$0xff]
    %v191 = vld [vmem:[%s0 + $0x580] sm:$0xff]
    %v192 = vld [vmem:[%s0 + $0x588] sm:$0xff]
    %v193 = vld [vmem:[%s0 + $0x590] sm:$0xff]
    %v194 = vld [vmem:[%s0 + $0x598] sm:$0xff]
    %v195 = vld [vmem:[%s0 + $0x5a0] sm:$0xff]
    %v196 = vld [vmem:[%s0 + $0x5a8] sm:$0xf]
    %v197 = vld [vmem:[%s0 + $0x5b0] sm:$0xff]
    %v198 = vld [vmem:[%s0 + $0x5b8] sm:$0xff]
    %v199 = vld [vmem:[%s0 + $0x5c0] sm:$0xff]
    %v200 = vld [vmem:[%s0 + $0x5c8] sm:$0xff]
    %v201 = vld [vmem:[%s0 + $0x5d0] sm:$0xff]
    %v202 = vld [vmem:[%s0 + $0x5d8] sm:$0xff]
    %v203 = vld [vmem:[%s0 + $0x5e0] sm:$0xff]
    %v204 = vld [vmem:[%s0 + $0x5e8] sm:$0xff]
    %v205 = vld [vmem:[%s0 + $0x5f0] sm:$0xff]
    %v206 = vld [vmem:[%s0 + $0x5f8] sm:$0xff]
    %v207 = vld [vmem:[%s0 + $0x600] sm:$0xff]
    %v208 = vld [vmem:[%s0 + $0x608] sm:$0xff]
    %v209 = vld [vmem:[%s0 + $0x610] sm:$0xf]
    %v210 = vld [vmem:[%s0 + $0x618] sm:$0xff]
    %v211 = vld [vmem:[%s0 + $0x620] sm:$0xff]
    %v212 = vld [vmem:[%s0 + $0x628] sm:$0xff]
    %v213 = vld [vmem:[%s0 + $0x630] sm:$0xff]
    %v214 = vld [vmem:[%s0 + $0x638] sm:$0xff]
    %v215 = vld [vmem:[%s0 + $0x640] sm:$0xff]
    %v216 = vld [vmem:[%s0 + $0x648] sm:$0xff]
    %v217 = vld [vmem:[%s0 + $0x650] sm:$0xff]
    %v218 = vld [vmem:[%s0 + $0x658] sm:$0xff]
    %v219 = vld [vmem:[%s0 + $0x660] sm:$0xff]
    %v220 = vld [vmem:[%s0 + $0x668] sm:$0xff]
    %v221 = vld [vmem:[%s0 + $0x670] sm:$0xff]
    %v222 = vld [vmem:[%s0 + $0x678] sm:$0xf]
    %v223 = vld [vmem:[%s0 + $0x680] sm:$0xff]
    %v224 = vld [vmem:[%s0 + $0x688] sm:$0xff]
    %v225 = vld [vmem:[%s0 + $0x690] sm:$0xff]
    %v226 = vld [vmem:[%s0 + $0x698] sm:$0xff]
    %v227 = vld [vmem:[%s0 + $0x6a0] sm:$0xff]
    %v228 = vld [vmem:[%s0 + $0x6a8] sm:$0xff]
    %v229 = vld [vmem:[%s0 + $0x6b0] sm:$0xff]
    %v230 = vld [vmem:[%s0 + $0x6b8] sm:$0xff]
    %v231 = vld [vmem:[%s0 + $0x6c0] sm:$0xff]
    %v232 = vld [vmem:[%s0 + $0x6c8] sm:$0xff]
    %v233 = vld [vmem:[%s0 + $0x6d0] sm:$0xff]
    %v234 = vld [vmem:[%s0 + $0x6d8] sm:$0xff]
    %v235 = vld [vmem:[%s0 + $0x6e0] sm:$0xf]
    %v236 = vld [vmem:[%s0 + $0x6e8] sm:$0xff]
    %v237 = vld [vmem:[%s0 + $0x6f0] sm:$0xff]
    %v238 = vld [vmem:[%s0 + $0x6f8] sm:$0xff]
    %v239 = vld [vmem:[%s0 + $0x700] sm:$0xff]
    %v240 = vld [vmem:[%s0 + $0x708] sm:$0xff]
    %v241 = vld [vmem:[%s0 + $0x710] sm:$0xff]
    %v242 = vld [vmem:[%s0 + $0x718] sm:$0xff]
    %v243 = vld [vmem:[%s0 + $0x720] sm:$0xff]
    %v244 = vld [vmem:[%s0 + $0x728] sm:$0xff]
    %v245 = vld [vmem:[%s0 + $0x730] sm:$0xff]
    %v246 = vld [vmem:[%s0 + $0x738] sm:$0xff]
    %v247 = vld [vmem:[%s0 + $0x740] sm:$0xff]
    %v248 = vld [vmem:[%s0 + $0x748] sm:$0xf]
    %v249 = vld [vmem:[%s0 + $0x750] sm:$0xff]
    %v250 = vld [vmem:[%s0 + $0x758] sm:$0xff]
    %v251 = vld [vmem:[%s0 + $0x760] sm:$0xff]
    %v252 = vld [vmem:[%s0 + $0x768] sm:$0xff]
    %v253 = vld [vmem:[%s0 + $0x770] sm:$0xff]
    %v254 = vld [vmem:[%s0 + $0x778] sm:$0xff]
    %v255 = vld [vmem:[%s0 + $0x780] sm:$0xff]
    %v256 = vld [vmem:[%s0 + $0x788] sm:$0xff]
    %v257 = vld [vmem:[%s0 + $0x790] sm:$0xff]
    %v258 = vld [vmem:[%s0 + $0x798] sm:$0xff]
    %v259 = vld [vmem:[%s0 + $0x7a0] sm:$0xff]
    %v260 = vld [vmem:[%s0 + $0x7a8] sm:$0xff]
    %v261 = vld [vmem:[%s0 + $0x7b0] sm:$0xf]
    %v262 = vld [vmem:[%s0 + $0x7b8] sm:$0xff]
    %v263 = vld [vmem:[%s0 + $0x7c0] sm:$0xff]
    %v264 = vld [vmem:[%s0 + $0x7c8] sm:$0xff]
    %v265 = vld [vmem:[%s0 + $0x7d0] sm:$0xff]
    %v266 = vld [vmem:[%s0 + $0x7d8] sm:$0xff]
    %v267 = vld [vmem:[%s0 + $0x7e0] sm:$0xff]
    %v268 = vld [vmem:[%s0 + $0x7e8] sm:$0xff]
    %v269 = vld [vmem:[%s0 + $0x7f0] sm:$0xff]
    %v270 = vld [vmem:[%s0 + $0x7f8] sm:$0xff]
    %v271 = vld [vmem:[%s0 + $0x800] sm:$0xff]
    %v272 = vld [vmem:[%s0 + $0x808] sm:$0xff]
    %v273 = vld [vmem:[%s0 + $0x810] sm:$0xff]
    %v274 = vld [vmem:[%s0 + $0x818] sm:$0xf]
    %v275 = vld [vmem:[%s0 + $0x820] sm:$0xff]
    %v276 = vld [vmem:[%s0 + $0x828] sm:$0xff]
    %v277 = vld [vmem:[%s0 + $0x830] sm:$0xff]
    %v278 = vld [vmem:[%s0 + $0x838] sm:$0xff]
    %v279 = vld [vmem:[%s0 + $0x840] sm:$0xff]
    %v280 = vld [vmem:[%s0 + $0x848] sm:$0xff]
    %v281 = vld [vmem:[%s0 + $0x850] sm:$0xff]
    %v282 = vld [vmem:[%s0 + $0x858] sm:$0xff]
    %v283 = vld [vmem:[%s0 + $0x860] sm:$0xff]
    %v284 = vld [vmem:[%s0 + $0x868] sm:$0xff]
    %v285 = vld [vmem:[%s0 + $0x870] sm:$0xff]
    %v286 = vld [vmem:[%s0 + $0x878] sm:$0xff]
    %v287 = vld [vmem:[%s0 + $0x880] sm:$0xf]
    %v288 = vld [vmem:[%s0 + $0x888] sm:$0xff]
    %v289 = vld [vmem:[%s0 + $0x890] sm:$0xff]
    %v290 = vld [vmem:[%s0 + $0x898] sm:$0xff]
    %v291 = vld [vmem:[%s0 + $0x8a0] sm:$0xff]
    %v292 = vld [vmem:[%s0 + $0x8a8] sm:$0xff]
    %v293 = vld [vmem:[%s0 + $0x8b0] sm:$0xff]
    %v294 = vld [vmem:[%s0 + $0x8b8] sm:$0xff]
    %v295 = vld [vmem:[%s0 + $0x8c0] sm:$0xff]
    %v296 = vld [vmem:[%s0 + $0x8c8] sm:$0xff]
    %v297 = vld [vmem:[%s0 + $0x8d0] sm:$0xff]
    %v298 = vld [vmem:[%s0 + $0x8d8] sm:$0xff]
    %v299 = vld [vmem:[%s0 + $0x8e0] sm:$0xff]
    %v300 = vld [vmem:[%s0 + $0x8e8] sm:$0xf]
    %v301 = vld [vmem:[%s0 + $0x8f0] sm:$0xff]
    %v302 = vld [vmem:[%s0 + $0x8f8] sm:$0xff]
    %v303 = vld [vmem:[%s0 + $0x900] sm:$0xff]
    %v304 = vld [vmem:[%s0 + $0x908] sm:$0xff]
    %v305 = vld [vmem:[%s0 + $0x910] sm:$0xff]
    %v306 = vld [vmem:[%s0 + $0x918] sm:$0xff]
    %v307 = vld [vmem:[%s0 + $0x920] sm:$0xff]
    %v308 = vld [vmem:[%s0 + $0x928] sm:$0xff]
    %v309 = vld [vmem:[%s0 + $0x930] sm:$0xff]
    %v310 = vld [vmem:[%s0 + $0x938] sm:$0xff]
    %v311 = vld [vmem:[%s0 + $0x940] sm:$0xff]
    %v312 = vld [vmem:[%s0 + $0x948] sm:$0xff]
    %v313 = vld [vmem:[%s0 + $0x950] sm:$0xf]
    %v314 = vld [vmem:[%s0 + $0x958] sm:$0xff]
    %v315 = vld [vmem:[%s0 + $0x960] sm:$0xff]
    %v316 = vld [vmem:[%s0 + $0x968] sm:$0xff]
    %v317 = vld [vmem:[%s0 + $0x970] sm:$0xff]
    %v318 = vld [vmem:[%s0 + $0x978] sm:$0xff]
    %v319 = vld [vmem:[%s0 + $0x980] sm:$0xff]
    %v320 = vld [vmem:[%s0 + $0x988] sm:$0xff]
    %v321 = vld [vmem:[%s0 + $0x990] sm:$0xff]
    %v322 = vld [vmem:[%s0 + $0x998] sm:$0xff]
    %v323 = vld [vmem:[%s0 + $0x9a0] sm:$0xff]
    %v324 = vld [vmem:[%s0 + $0x9a8] sm:$0xff]
    %v325 = vld [vmem:[%s0 + $0x9b0] sm:$0xff]
    %v326 = vld [vmem:[%s0 + $0x9b8] sm:$0xf]
    %v327 = vld [vmem:[%s0 + $0x9c0] sm:$0xff]
    %v328 = vld [vmem:[%s0 + $0x9c8] sm:$0xff]
    %v329 = vld [vmem:[%s0 + $0x9d0] sm:$0xff]
    %v330 = vld [vmem:[%s0 + $0x9d8] sm:$0xff]
    %v331 = vld [vmem:[%s0 + $0x9e0] sm:$0xff]
    %v332 = vld [vmem:[%s0 + $0x9e8] sm:$0xff]
    %v333 = vld [vmem:[%s0 + $0x9f0] sm:$0xff]
    %v334 = vld [vmem:[%s0 + $0x9f8] sm:$0xff]
    %v335 = vld [vmem:[%s0 + $0xa00] sm:$0xff]
    %v336 = vld [vmem:[%s0 + $0xa08] sm:$0xff]
    %v337 = vld [vmem:[%s0 + $0xa10] sm:$0xff]
    %v338 = vld [vmem:[%s0 + $0xa18] sm:$0xff]
    %v339 = vld [vmem:[%s0 + $0xa20] sm:$0xf]
    %v340 = vld [vmem:[%s0 + $0xa28] sm:$0xff]
    %v341 = vld [vmem:[%s0 + $0xa30] sm:$0xff]
    %v342 = vld [vmem:[%s0 + $0xa38] sm:$0xff]
    %v343 = vld [vmem:[%s0 + $0xa40] sm:$0xff]
    %v344 = vld [vmem:[%s0 + $0xa48] sm:$0xff]
    %v345 = vld [vmem:[%s0 + $0xa50] sm:$0xff]
    %v346 = vld [vmem:[%s0 + $0xa58] sm:$0xff]
    %v347 = vld [vmem:[%s0 + $0xa60] sm:$0xff]
    %v348 = vld [vmem:[%s0 + $0xa68] sm:$0xff]
    %v349 = vld [vmem:[%s0 + $0xa70] sm:$0xff]
    %v350 = vld [vmem:[%s0 + $0xa78] sm:$0xff]
    %v351 = vld [vmem:[%s0 + $0xa80] sm:$0xff]
    %v352 = vld [vmem:[%s0 + $0xa88] sm:$0xf]
    %v353 = vld [vmem:[%s0 + $0xa90] sm:$0xff]
    %v354 = vld [vmem:[%s0 + $0xa98] sm:$0xff]
    %v355 = vld [vmem:[%s0 + $0xaa0] sm:$0xff]
    %v356 = vld [vmem:[%s0 + $0xaa8] sm:$0xff]
    %v357 = vld [vmem:[%s0 + $0xab0] sm:$0xff]
    %v358 = vld [vmem:[%s0 + $0xab8] sm:$0xff]
    %v359 = vld [vmem:[%s0 + $0xac0] sm:$0xff]
    %v360 = vld [vmem:[%s0 + $0xac8] sm:$0xff]
    %v361 = vld [vmem:[%s0 + $0xad0] sm:$0xff]
    %v362 = vld [vmem:[%s0 + $0xad8] sm:$0xff]
    %v363 = vld [vmem:[%s0 + $0xae0] sm:$0xff]
    %v364 = vld [vmem:[%s0 + $0xae8] sm:$0xff]
    %v365 = vld [vmem:[%s0 + $0xaf0] sm:$0xf]
    %v366 = vld [vmem:[%s0 + $0xaf8] sm:$0xff]
    %v367 = vld [vmem:[%s0 + $0xb00] sm:$0xff]
    %v368 = vld [vmem:[%s0 + $0xb08] sm:$0xff]
    %v369 = vld [vmem:[%s0 + $0xb10] sm:$0xff]
    %v370 = vld [vmem:[%s0 + $0xb18] sm:$0xff]
    %v371 = vld [vmem:[%s0 + $0xb20] sm:$0xff]
    %v372 = vld [vmem:[%s0 + $0xb28] sm:$0xff]
    %v373 = vld [vmem:[%s0 + $0xb30] sm:$0xff]
    %v374 = vld [vmem:[%s0 + $0xb38] sm:$0xff]
    %v375 = vld [vmem:[%s0 + $0xb40] sm:$0xff]
    %v376 = vld [vmem:[%s0 + $0xb48] sm:$0xff]
    %v377 = vld [vmem:[%s0 + $0xb50] sm:$0xff]
    %v378 = vld [vmem:[%s0 + $0xb58] sm:$0xf]
    %v379 = vld [vmem:[%s0 + $0xb60] sm:$0xff]
    %v380 = vld [vmem:[%s0 + $0xb68] sm:$0xff]
    %v381 = vld [vmem:[%s0 + $0xb70] sm:$0xff]
    %v382 = vld [vmem:[%s0 + $0xb78] sm:$0xff]
    %v383 = vld [vmem:[%s0 + $0xb80] sm:$0xff]
    %v384 = vld [vmem:[%s0 + $0xb88] sm:$0xff]
    %v385 = vld [vmem:[%s0 + $0xb90] sm:$0xff]
    %v386 = vld [vmem:[%s0 + $0xb98] sm:$0xff]
    %v387 = vld [vmem:[%s0 + $0xba0] sm:$0xff]
    %v388 = vld [vmem:[%s0 + $0xba8] sm:$0xff]
    %v389 = vld [vmem:[%s0 + $0xbb0] sm:$0xff]
    %v390 = vld [vmem:[%s0 + $0xbb8] sm:$0xff]
    %v391 = vld [vmem:[%s0 + $0xbc0] sm:$0xf]
    %v392 = vld [vmem:[%s0 + $0xbc8] sm:$0xff]
    %v393 = vld [vmem:[%s0 + $0xbd0] sm:$0xff]
    %v394 = vld [vmem:[%s0 + $0xbd8] sm:$0xff]
    %v395 = vld [vmem:[%s0 + $0xbe0] sm:$0xff]
    %v396 = vld [vmem:[%s0 + $0xbe8] sm:$0xff]
    %v397 = vld [vmem:[%s0 + $0xbf0] sm:$0xff]
    %v398 = vld [vmem:[%s0 + $0xbf8] sm:$0xff]
    %v399 = vld [vmem:[%s0 + $0xc00] sm:$0xff]
    %v400 = vld [vmem:[%s0 + $0xc08] sm:$0xff]
    %v401 = vld [vmem:[%s0 + $0xc10] sm:$0xff]
    %v402 = vld [vmem:[%s0 + $0xc18] sm:$0xff]
    %v403 = vld [vmem:[%s0 + $0xc20] sm:$0xff]
    %v404 = vld [vmem:[%s0 + $0xc28] sm:$0xf]
    %v405 = vld [vmem:[%s0 + $0xc30] sm:$0xff]
    %v406 = vld [vmem:[%s0 + $0xc38] sm:$0xff]
    %v407 = vld [vmem:[%s0 + $0xc40] sm:$0xff]
    %v408 = vld [vmem:[%s0 + $0xc48] sm:$0xff]
    %v409 = vld [vmem:[%s0 + $0xc50] sm:$0xff]
    %v410 = vld [vmem:[%s0 + $0xc58] sm:$0xff]
    %v411 = vld [vmem:[%s0 + $0xc60] sm:$0xff]
    %v412 = vld [vmem:[%s0 + $0xc68] sm:$0xff]
    %v413 = vld [vmem:[%s0 + $0xc70] sm:$0xff]
    %v414 = vld [vmem:[%s0 + $0xc78] sm:$0xff]
    %v415 = vld [vmem:[%s0 + $0xc80] sm:$0xff]
    %v416 = vld [vmem:[%s0 + $0xc88] sm:$0xff]
    %v417 = vld [vmem:[%s0 + $0xc90] sm:$0xf]
    %v418 = vld [vmem:[%s0 + $0xc98] sm:$0xff]
    %v419 = vld [vmem:[%s0 + $0xca0] sm:$0xff]
    %v420 = vld [vmem:[%s0 + $0xca8] sm:$0xff]
    %v421 = vld [vmem:[%s0 + $0xcb0] sm:$0xff]
    %v422 = vld [vmem:[%s0 + $0xcb8] sm:$0xff]
    %v423 = vld [vmem:[%s0 + $0xcc0] sm:$0xff]
    %v424 = vld [vmem:[%s0 + $0xcc8] sm:$0xff]
    %v425 = vld [vmem:[%s0 + $0xcd0] sm:$0xff]
    %v426 = vld [vmem:[%s0 + $0xcd8] sm:$0xff]
    %v427 = vld [vmem:[%s0 + $0xce0] sm:$0xff]
    %v428 = vld [vmem:[%s0 + $0xce8] sm:$0xff]
    %v429 = vld [vmem:[%s0 + $0xcf0] sm:$0xff]
    %v430 = vld [vmem:[%s0 + $0xcf8] sm:$0xf]
    %v431 = vld [vmem:[%s0 + $0xd00] sm:$0xff]
    %v432 = vld [vmem:[%s0 + $0xd08] sm:$0xff]
    %v433 = vld [vmem:[%s0 + $0xd10] sm:$0xff]
    %v434 = vld [vmem:[%s0 + $0xd18] sm:$0xff]
    %v435 = vld [vmem:[%s0 + $0xd20] sm:$0xff]
    %v436 = vld [vmem:[%s0 + $0xd28] sm:$0xff]
    %v437 = vld [vmem:[%s0 + $0xd30] sm:$0xff]
    %v438 = vld [vmem:[%s0 + $0xd38] sm:$0xff]
    %v439 = vld [vmem:[%s0 + $0xd40] sm:$0xff]
    %v440 = vld [vmem:[%s0 + $0xd48] sm:$0xff]
    %v441 = vld [vmem:[%s0 + $0xd50] sm:$0xff]
    %v442 = vld [vmem:[%s0 + $0xd58] sm:$0xff]
    %v443 = vld [vmem:[%s0 + $0xd60] sm:$0xf]
    %v444 = vld [vmem:[%s0 + $0xd68] sm:$0xff]
    %v445 = vld [vmem:[%s0 + $0xd70] sm:$0xff]
    %v446 = vld [vmem:[%s0 + $0xd78] sm:$0xff]
    %v447 = vld [vmem:[%s0 + $0xd80] sm:$0xff]
    %v448 = vld [vmem:[%s0 + $0xd88] sm:$0xff]
    %v449 = vld [vmem:[%s0 + $0xd90] sm:$0xff]
    %v450 = vld [vmem:[%s0 + $0xd98] sm:$0xff]
    %v451 = vld [vmem:[%s0 + $0xda0] sm:$0xff]
    %v452 = vld [vmem:[%s0 + $0xda8] sm:$0xff]
    %v453 = vld [vmem:[%s0 + $0xdb0] sm:$0xff]
    %v454 = vld [vmem:[%s0 + $0xdb8] sm:$0xff]
    %v455 = vld [vmem:[%s0 + $0xdc0] sm:$0xff]
    %v456 = vld [vmem:[%s0 + $0xdc8] sm:$0xf]
    %v457 = vld [vmem:[%s0 + $0xdd0] sm:$0xff]
    %v458 = vld [vmem:[%s0 + $0xdd8] sm:$0xff]
    %v459 = vld [vmem:[%s0 + $0xde0] sm:$0xff]
    %v460 = vld [vmem:[%s0 + $0xde8] sm:$0xff]
    %v461 = vld [vmem:[%s0 + $0xdf0] sm:$0xff]
    %v462 = vld [vmem:[%s0 + $0xdf8] sm:$0xff]
    %v463 = vld [vmem:[%s0 + $0xe00] sm:$0xff]
    %v464 = vld [vmem:[%s0 + $0xe08] sm:$0xff]
    %v465 = vld [vmem:[%s0 + $0xe10] sm:$0xff]
    %v466 = vld [vmem:[%s0 + $0xe18] sm:$0xff]
    %v467 = vld [vmem:[%s0 + $0xe20] sm:$0xff]
    %v468 = vld [vmem:[%s0 + $0xe28] sm:$0xff]
    %v469 = vld [vmem:[%s0 + $0xe30] sm:$0xf]
    %v470 = vld [vmem:[%s0 + $0xe38] sm:$0xff]
    %v471 = vld [vmem:[%s0 + $0xe40] sm:$0xff]
    %v472 = vld [vmem:[%s0 + $0xe48] sm:$0xff]
    %v473 = vld [vmem:[%s0 + $0xe50] sm:$0xff]
    %v474 = vld [vmem:[%s0 + $0xe58] sm:$0xff]
    %v475 = vld [vmem:[%s0 + $0xe60] sm:$0xff]
    %v476 = vld [vmem:[%s0 + $0xe68] sm:$0xff]
    %v477 = vld [vmem:[%s0 + $0xe70] sm:$0xff]
    %v478 = vld [vmem:[%s0 + $0xe78] sm:$0xff]
    %v479 = vld [vmem:[%s0 + $0xe80] sm:$0xff]
    %v480 = vld [vmem:[%s0 + $0xe88] sm:$0xff]
    %v481 = vld [vmem:[%s0 + $0xe90] sm:$0xff]
    %v482 = vld [vmem:[%s0 + $0xe98] sm:$0xf]
    %v483 = vld [vmem:[%s0 + $0xea0] sm:$0xff]
    %v484 = vld [vmem:[%s0 + $0xea8] sm:$0xff]
    %v485 = vld [vmem:[%s0 + $0xeb0] sm:$0xff]
    %v486 = vld [vmem:[%s0 + $0xeb8] sm:$0xff]
    %v487 = vld [vmem:[%s0 + $0xec0] sm:$0xff]
    %v488 = vld [vmem:[%s0 + $0xec8] sm:$0xff]
    %v489 = vld [vmem:[%s0 + $0xed0] sm:$0xff]
    %v490 = vld [vmem:[%s0 + $0xed8] sm:$0xff]
    %v491 = vld [vmem:[%s0 + $0xee0] sm:$0xff]
    %v492 = vld [vmem:[%s0 + $0xee8] sm:$0xff]
    %v493 = vld [vmem:[%s0 + $0xef0] sm:$0xff]
    %v494 = vld [vmem:[%s0 + $0xef8] sm:$0xff]
    %v495 = vld [vmem:[%s0 + $0xf00] sm:$0xf]
    %v496 = vld [vmem:[%s0 + $0xf08] sm:$0xff]
    %v497 = vld [vmem:[%s0 + $0xf10] sm:$0xff]
    %v498 = vld [vmem:[%s0 + $0xf18] sm:$0xff]
    %v499 = vld [vmem:[%s0 + $0xf20] sm:$0xff]
    %v500 = vld [vmem:[%s0 + $0xf28] sm:$0xff]
    %v501 = vld [vmem:[%s0 + $0xf30] sm:$0xff]
    %v502 = vld [vmem:[%s0 + $0xf38] sm:$0xff]
    %v503 = vld [vmem:[%s0 + $0xf40] sm:$0xff]
    %v504 = vld [vmem:[%s0 + $0xf48] sm:$0xff]
    %v505 = vld [vmem:[%s0 + $0xf50] sm:$0xff]
    %v506 = vld [vmem:[%s0 + $0xf58] sm:$0xff]
    %v507 = vld [vmem:[%s0 + $0xf60] sm:$0xff]
    %v508 = vld [vmem:[%s0 + $0xf68] sm:$0xf]
    %v509 = vld [vmem:[%s0 + $0xf70] sm:$0xff]
    %v510 = vld [vmem:[%s0 + $0xf78] sm:$0xff]
    %v511 = vld [vmem:[%s0 + $0xf80] sm:$0xff]
    %v512 = vld [vmem:[%s0 + $0xf88] sm:$0xff]
    %v513 = vld [vmem:[%s0 + $0xf90] sm:$0xff]
    %v514 = vld [vmem:[%s0 + $0xf98] sm:$0xff]
    %v515 = vld [vmem:[%s0 + $0xfa0] sm:$0xff]
    %v516 = vld [vmem:[%s0 + $0xfa8] sm:$0xff]
    %v517 = vld [vmem:[%s0 + $0xfb0] sm:$0xff]
    %v518 = vld [vmem:[%s0 + $0xfb8] sm:$0xff]
    %v519 = vld [vmem:[%s0 + $0xfc0] sm:$0xff]
    %v520 = vld [vmem:[%s0 + $0xfc8] sm:$0xff]
    %v521 = vld [vmem:[%s0 + $0xfd0] sm:$0xf]
    %v522 = vld [vmem:[%s0 + $0xfd8] sm:$0xff]
    %v523 = vld [vmem:[%s0 + $0xfe0] sm:$0xff]
    %v524 = vld [vmem:[%s0 + $0xfe8] sm:$0xff]
    %v525 = vld [vmem:[%s0 + $0xff0] sm:$0xff]
    %v526 = vld [vmem:[%s0 + $0xff8] sm:$0xff]
    %v527 = vld [vmem:[%s0 + $0x1000] sm:$0xff]
    %v528 = vld [vmem:[%s0 + $0x1008] sm:$0xff]
    %v529 = vld [vmem:[%s0 + $0x1010] sm:$0xff]
    %v530 = vld [vmem:[%s0 + $0x1018] sm:$0xff]
    %v531 = vld [vmem:[%s0 + $0x1020] sm:$0xff]
    %v532 = vld [vmem:[%s0 + $0x1028] sm:$0xff]
    %v533 = vld [vmem:[%s0 + $0x1030] sm:$0xff]
    %v534 = vld [vmem:[%s0 + $0x1038] sm:$0xf]
    %v535 = vld [vmem:[%s0 + $0x1040] sm:$0xff]
    %v536 = vld [vmem:[%s0 + $0x1048] sm:$0xff]
    %v537 = vld [vmem:[%s0 + $0x1050] sm:$0xff]
    %v538 = vld [vmem:[%s0 + $0x1058] sm:$0xff]
    %v539 = vld [vmem:[%s0 + $0x1060] sm:$0xff]
    %v540 = vld [vmem:[%s0 + $0x1068] sm:$0xff]
    %v541 = vld [vmem:[%s0 + $0x1070] sm:$0xff]
    %v542 = vld [vmem:[%s0 + $0x1078] sm:$0xff]
    %v543 = vld [vmem:[%s0 + $0x1080] sm:$0xff]
    %v544 = vld [vmem:[%s0 + $0x1088] sm:$0xff]
    %v545 = vld [vmem:[%s0 + $0x1090] sm:$0xff]
    %v546 = vld [vmem:[%s0 + $0x1098] sm:$0xff]
    %v547 = vld [vmem:[%s0 + $0x10a0] sm:$0xf]
    %v548 = vld [vmem:[%s0 + $0x10a8] sm:$0xff]
    %v549 = vld [vmem:[%s0 + $0x10b0] sm:$0xff]
    %v550 = vld [vmem:[%s0 + $0x10b8] sm:$0xff]
    %v551 = vld [vmem:[%s0 + $0x10c0] sm:$0xff]
    %v552 = vld [vmem:[%s0 + $0x10c8] sm:$0xff]
    %v553 = vld [vmem:[%s0 + $0x10d0] sm:$0xff]
    %v554 = vld [vmem:[%s0 + $0x10d8] sm:$0xff]
    %v555 = vld [vmem:[%s0 + $0x10e0] sm:$0xff]
    %v556 = vld [vmem:[%s0 + $0x10e8] sm:$0xff]
    %v557 = vld [vmem:[%s0 + $0x10f0] sm:$0xff]
    %v558 = vld [vmem:[%s0 + $0x10f8] sm:$0xff]
    %v559 = vld [vmem:[%s0 + $0x1100] sm:$0xff]
    %v560 = vld [vmem:[%s0 + $0x1108] sm:$0xf]
    %v561 = vld [vmem:[%s0 + $0x1110] sm:$0xff]
    %v562 = vld [vmem:[%s0 + $0x1118] sm:$0xff]
    %v563 = vld [vmem:[%s0 + $0x1120] sm:$0xff]
    %v564 = vld [vmem:[%s0 + $0x1128] sm:$0xff]
    %v565 = vld [vmem:[%s0 + $0x1130] sm:$0xff]
    %v566 = vld [vmem:[%s0 + $0x1138] sm:$0xff]
    %v567 = vld [vmem:[%s0 + $0x1140] sm:$0xff]
    %v568 = vld [vmem:[%s0 + $0x1148] sm:$0xff]
    %v569 = vld [vmem:[%s0 + $0x1150] sm:$0xff]
    %v570 = vld [vmem:[%s0 + $0x1158] sm:$0xff]
    %v571 = vld [vmem:[%s0 + $0x1160] sm:$0xff]
    %v572 = vld [vmem:[%s0 + $0x1168] sm:$0xff]
    %v573 = vld [vmem:[%s0 + $0x1170] sm:$0xf]
    %v574 = vld [vmem:[%s0 + $0x1178] sm:$0xff]
    %v575 = vld [vmem:[%s0 + $0x1180] sm:$0xff]
    %v576 = vld [vmem:[%s0 + $0x1188] sm:$0xff]
    %v577 = vld [vmem:[%s0 + $0x1190] sm:$0xff]
    %v578 = vld [vmem:[%s0 + $0x1198] sm:$0xff]
    %v579 = vld [vmem:[%s0 + $0x11a0] sm:$0xff]
    %v580 = vld [vmem:[%s0 + $0x11a8] sm:$0xff]
    %v581 = vld [vmem:[%s0 + $0x11b0] sm:$0xff]
    %v582 = vld [vmem:[%s0 + $0x11b8] sm:$0xff]
    %v583 = vld [vmem:[%s0 + $0x11c0] sm:$0xff]
    %v584 = vld [vmem:[%s0 + $0x11c8] sm:$0xff]
    %v585 = vld [vmem:[%s0 + $0x11d0] sm:$0xff]
    %v586 = vld [vmem:[%s0 + $0x11d8] sm:$0xf]
    %v587 = vld [vmem:[%s0 + $0x11e0] sm:$0xff]
    %v588 = vld [vmem:[%s0 + $0x11e8] sm:$0xff]
    %v589 = vld [vmem:[%s0 + $0x11f0] sm:$0xff]
    %v590 = vld [vmem:[%s0 + $0x11f8] sm:$0xff]
    %v591 = vld [vmem:[%s0 + $0x1200] sm:$0xff]
    %v592 = vld [vmem:[%s0 + $0x1208] sm:$0xff]
    %v593 = vld [vmem:[%s0 + $0x1210] sm:$0xff]
    %v594 = vld [vmem:[%s0 + $0x1218] sm:$0xff]
    %v595 = vld [vmem:[%s0 + $0x1220] sm:$0xff]
    %v596 = vld [vmem:[%s0 + $0x1228] sm:$0xff]
    %v597 = vld [vmem:[%s0 + $0x1230] sm:$0xff]
    %v598 = vld [vmem:[%s0 + $0x1238] sm:$0xff]
    %v599 = vld [vmem:[%s0 + $0x1240] sm:$0xf]
    %v600 = vld [vmem:[%s0 + $0x1248] sm:$0xff]
    %v601 = vld [vmem:[%s0 + $0x1250] sm:$0xff]
    %v602 = vld [vmem:[%s0 + $0x1258] sm:$0xff]
    %v603 = vld [vmem:[%s0 + $0x1260] sm:$0xff]
    %v604 = vld [vmem:[%s0 + $0x1268] sm:$0xff]
    %v605 = vld [vmem:[%s0 + $0x1270] sm:$0xff]
    %v606 = vld [vmem:[%s0 + $0x1278] sm:$0xff]
    %v607 = vld [vmem:[%s0 + $0x1280] sm:$0xff]
    %v608 = vld [vmem:[%s0 + $0x1288] sm:$0xff]
    %v609 = vld [vmem:[%s0 + $0x1290] sm:$0xff]
    %v610 = vld [vmem:[%s0 + $0x1298] sm:$0xff]
    %v611 = vld [vmem:[%s0 + $0x12a0] sm:$0xff]
    %v612 = vld [vmem:[%s0 + $0x12a8] sm:$0xf]
    %v613 = vld [vmem:[%s0 + $0x12b0] sm:$0xff]
    %v614 = vld [vmem:[%s0 + $0x12b8] sm:$0xff]
    %v615 = vld [vmem:[%s0 + $0x12c0] sm:$0xff]
    %v616 = vld [vmem:[%s0 + $0x12c8] sm:$0xff]
    %v617 = vld [vmem:[%s0 + $0x12d0] sm:$0xff]
    %v618 = vld [vmem:[%s0 + $0x12d8] sm:$0xff]
    %v619 = vld [vmem:[%s0 + $0x12e0] sm:$0xff]
    %v620 = vld [vmem:[%s0 + $0x12e8] sm:$0xff]
    %v621 = vld [vmem:[%s0 + $0x12f0] sm:$0xff]
    %v622 = vld [vmem:[%s0 + $0x12f8] sm:$0xff]
    %v623 = vld [vmem:[%s0 + $0x1300] sm:$0xff]
    %v624 = vld [vmem:[%s0 + $0x1308] sm:$0xff]
    %v625 = vld [vmem:[%s0 + $0x1310] sm:$0xf]
    %v626 = vld [vmem:[%s0 + $0x1318] sm:$0xff]
    %v627 = vld [vmem:[%s0 + $0x1320] sm:$0xff]
    %v628 = vld [vmem:[%s0 + $0x1328] sm:$0xff]
    %v629 = vld [vmem:[%s0 + $0x1330] sm:$0xff]
    %v630 = vld [vmem:[%s0 + $0x1338] sm:$0xff]
    %v631 = vld [vmem:[%s0 + $0x1340] sm:$0xff]
    %v632 = vld [vmem:[%s0 + $0x1348] sm:$0xff]
    %v633 = vld [vmem:[%s0 + $0x1350] sm:$0xff]
    %v634 = vld [vmem:[%s0 + $0x1358] sm:$0xff]
    %v635 = vld [vmem:[%s0 + $0x1360] sm:$0xff]
    %v636 = vld [vmem:[%s0 + $0x1368] sm:$0xff]
    %v637 = vld [vmem:[%s0 + $0x1370] sm:$0xff]
    %v638 = vld [vmem:[%s0 + $0x1378] sm:$0xf]
    %v639 = vld [vmem:[%s0 + $0x1380] sm:$0xff]
    %v640 = vld [vmem:[%s0 + $0x1388] sm:$0xff]
    %v641 = vld [vmem:[%s0 + $0x1390] sm:$0xff]
    %v642 = vld [vmem:[%s0 + $0x1398] sm:$0xff]
    %v643 = vld [vmem:[%s0 + $0x13a0] sm:$0xff]
    %v644 = vld [vmem:[%s0 + $0x13a8] sm:$0xff]
    %v645 = vld [vmem:[%s0 + $0x13b0] sm:$0xff]
    %v646 = vld [vmem:[%s0 + $0x13b8] sm:$0xff]
    %v647 = vld [vmem:[%s0 + $0x13c0] sm:$0xff]
    %v648 = vld [vmem:[%s0 + $0x13c8] sm:$0xff]
    %v649 = vld [vmem:[%s0 + $0x13d0] sm:$0xff]
    %v650 = vld [vmem:[%s0 + $0x13d8] sm:$0xff]
    %v651 = vld [vmem:[%s0 + $0x13e0] sm:$0xf]
    %v652 = vld [vmem:[%s0 + $0x13e8] sm:$0xff]
    %v653 = vld [vmem:[%s0 + $0x13f0] sm:$0xff]
    %v654 = vld [vmem:[%s0 + $0x13f8] sm:$0xff]
    %v655 = vld [vmem:[%s0 + $0x1400] sm:$0xff]
    %v656 = vld [vmem:[%s0 + $0x1408] sm:$0xff]
    %v657 = vld [vmem:[%s0 + $0x1410] sm:$0xff]
    %v658 = vld [vmem:[%s0 + $0x1418] sm:$0xff]
    %v659 = vld [vmem:[%s0 + $0x1420] sm:$0xff]
    %v660 = vld [vmem:[%s0 + $0x1428] sm:$0xff]
    %v661 = vld [vmem:[%s0 + $0x1430] sm:$0xff]
    %v662 = vld [vmem:[%s0 + $0x1438] sm:$0xff]
    %v663 = vld [vmem:[%s0 + $0x1440] sm:$0xff]
    %v664 = vld [vmem:[%s0 + $0x1448] sm:$0xf]
    %v665 = vld [vmem:[%s0 + $0x1450] sm:$0xff]
    %v666 = vld [vmem:[%s0 + $0x1458] sm:$0xff]
    %v667 = vld [vmem:[%s0 + $0x1460] sm:$0xff]
    %v668 = vld [vmem:[%s0 + $0x1468] sm:$0xff]
    %v669 = vld [vmem:[%s0 + $0x1470] sm:$0xff]
    %v670 = vld [vmem:[%s0 + $0x1478] sm:$0xff]
    %v671 = vld [vmem:[%s0 + $0x1480] sm:$0xff]
    %v672 = vld [vmem:[%s0 + $0x1488] sm:$0xff]
    %v673 = vld [vmem:[%s0 + $0x1490] sm:$0xff]
    %v674 = vld [vmem:[%s0 + $0x1498] sm:$0xff]
    %v675 = vld [vmem:[%s0 + $0x14a0] sm:$0xff]
    %v676 = vld [vmem:[%s0 + $0x14a8] sm:$0xff]
    %v677 = vld [vmem:[%s0 + $0x14b0] sm:$0xf]
    %v678 = vld [vmem:[%s0 + $0x14b8] sm:$0xff]
    %v679 = vld [vmem:[%s0 + $0x14c0] sm:$0xff]
    %v680 = vld [vmem:[%s0 + $0x14c8] sm:$0xff]
    %v681 = vld [vmem:[%s0 + $0x14d0] sm:$0xff]
    %v682 = vld [vmem:[%s0 + $0x14d8] sm:$0xff]
    %v683 = vld [vmem:[%s0 + $0x14e0] sm:$0xff]
    %v684 = vld [vmem:[%s0 + $0x14e8] sm:$0xff]
    %v685 = vld [vmem:[%s0 + $0x14f0] sm:$0xff]
    %v686 = vld [vmem:[%s0 + $0x14f8] sm:$0xff]
    %v687 = vld [vmem:[%s0 + $0x1500] sm:$0xff]
    %v688 = vld [vmem:[%s0 + $0x1508] sm:$0xff]
    %v689 = vld [vmem:[%s0 + $0x1510] sm:$0xff]
    %v690 = vld [vmem:[%s0 + $0x1518] sm:$0xf]
    %v691 = vld [vmem:[%s0 + $0x1520] sm:$0xff]
    %v692 = vld [vmem:[%s0 + $0x1528] sm:$0xff]
    %v693 = vld [vmem:[%s0 + $0x1530] sm:$0xff]
    %v694 = vld [vmem:[%s0 + $0x1538] sm:$0xff]
    %v695 = vld [vmem:[%s0 + $0x1540] sm:$0xff]
    %v696 = vld [vmem:[%s0 + $0x1548] sm:$0xff]
    %v697 = vld [vmem:[%s0 + $0x1550] sm:$0xff]
    %v698 = vld [vmem:[%s0 + $0x1558] sm:$0xff]
    %v699 = vld [vmem:[%s0 + $0x1560] sm:$0xff]
    %v700 = vld [vmem:[%s0 + $0x1568] sm:$0xff]
    %v701 = vld [vmem:[%s0 + $0x1570] sm:$0xff]
    %v702 = vld [vmem:[%s0 + $0x1578] sm:$0xff]
    %v703 = vld [vmem:[%s0 + $0x1580] sm:$0xf]
    %v704 = vld [vmem:[%s0 + $0x1588] sm:$0xff]
    %v705 = vld [vmem:[%s0 + $0x1590] sm:$0xff]
    %v706 = vld [vmem:[%s0 + $0x1598] sm:$0xff]
    %v707 = vld [vmem:[%s0 + $0x15a0] sm:$0xff]
    %v708 = vld [vmem:[%s0 + $0x15a8] sm:$0xff]
    %v709 = vld [vmem:[%s0 + $0x15b0] sm:$0xff]
    %v710 = vld [vmem:[%s0 + $0x15b8] sm:$0xff]
    %v711 = vld [vmem:[%s0 + $0x15c0] sm:$0xff]
    %v712 = vld [vmem:[%s0 + $0x15c8] sm:$0xff]
    %v713 = vld [vmem:[%s0 + $0x15d0] sm:$0xff]
    %v714 = vld [vmem:[%s0 + $0x15d8] sm:$0xff]
    %v715 = vld [vmem:[%s0 + $0x15e0] sm:$0xff]
    %v716 = vld [vmem:[%s0 + $0x15e8] sm:$0xf]
    %v717 = vld [vmem:[%s0 + $0x15f0] sm:$0xff]
    %v718 = vld [vmem:[%s0 + $0x15f8] sm:$0xff]
    %v719 = vld [vmem:[%s0 + $0x1600] sm:$0xff]
    %v720 = vld [vmem:[%s0 + $0x1608] sm:$0xff]
    %v721 = vld [vmem:[%s0 + $0x1610] sm:$0xff]
    %v722 = vld [vmem:[%s0 + $0x1618] sm:$0xff]
    %v723 = vld [vmem:[%s0 + $0x1620] sm:$0xff]
    %v724 = vld [vmem:[%s0 + $0x1628] sm:$0xff]
    %v725 = vld [vmem:[%s0 + $0x1630] sm:$0xff]
    %v726 = vld [vmem:[%s0 + $0x1638] sm:$0xff]
    %v727 = vld [vmem:[%s0 + $0x1640] sm:$0xff]
    %v728 = vld [vmem:[%s0 + $0x1648] sm:$0xff]
    %v729 = vld [vmem:[%s0 + $0x1650] sm:$0xf]
    %v730 = vld [vmem:[%s0 + $0x1658] sm:$0xff]
    %v731 = vld [vmem:[%s0 + $0x1660] sm:$0xff]
    %v732 = vld [vmem:[%s0 + $0x1668] sm:$0xff]
    %v733 = vld [vmem:[%s0 + $0x1670] sm:$0xff]
    %v734 = vld [vmem:[%s0 + $0x1678] sm:$0xff]
    %v735 = vld [vmem:[%s0 + $0x1680] sm:$0xff]
    %v736 = vld [vmem:[%s0 + $0x1688] sm:$0xff]
    %v737 = vld [vmem:[%s0 + $0x1690] sm:$0xff]
    %v738 = vld [vmem:[%s0 + $0x1698] sm:$0xff]
    %v739 = vld [vmem:[%s0 + $0x16a0] sm:$0xff]
    %v740 = vld [vmem:[%s0 + $0x16a8] sm:$0xff]
    %v741 = vld [vmem:[%s0 + $0x16b0] sm:$0xff]
    %v742 = vld [vmem:[%s0 + $0x16b8] sm:$0xf]
    %v743 = vld [vmem:[%s0 + $0x16c0] sm:$0xff]
    %v744 = vld [vmem:[%s0 + $0x16c8] sm:$0xff]
    %v745 = vld [vmem:[%s0 + $0x16d0] sm:$0xff]
    %v746 = vld [vmem:[%s0 + $0x16d8] sm:$0xff]
    %v747 = vld [vmem:[%s0 + $0x16e0] sm:$0xff]
    %v748 = vld [vmem:[%s0 + $0x16e8] sm:$0xff]
    %v749 = vld [vmem:[%s0 + $0x16f0] sm:$0xff]
    %v750 = vld [vmem:[%s0 + $0x16f8] sm:$0xff]
    %v751 = vld [vmem:[%s0 + $0x1700] sm:$0xff]
    %v752 = vld [vmem:[%s0 + $0x1708] sm:$0xff]
    %v753 = vld [vmem:[%s0 + $0x1710] sm:$0xff]
    %v754 = vld [vmem:[%s0 + $0x1718] sm:$0xff]
    %v755 = vld [vmem:[%s0 + $0x1720] sm:$0xf]
    %v756 = vld [vmem:[%s0 + $0x1728] sm:$0xff]
    %v757 = vld [vmem:[%s0 + $0x1730] sm:$0xff]
    %v758 = vld [vmem:[%s0 + $0x1738] sm:$0xff]
    %v759 = vld [vmem:[%s0 + $0x1740] sm:$0xff]
    %v760 = vld [vmem:[%s0 + $0x1748] sm:$0xff]
    %v761 = vld [vmem:[%s0 + $0x1750] sm:$0xff]
    %v762 = vld [vmem:[%s0 + $0x1758] sm:$0xff]
    %v763 = vld [vmem:[%s0 + $0x1760] sm:$0xff]
    %v764 = vld [vmem:[%s0 + $0x1768] sm:$0xff]
    %v765 = vld [vmem:[%s0 + $0x1770] sm:$0xff]
    %v766 = vld [vmem:[%s0 + $0x1778] sm:$0xff]
    %v767 = vld [vmem:[%s0 + $0x1780] sm:$0xff]
    %v768 = vld [vmem:[%s0 + $0x1788] sm:$0xf]
    %v769 = vld [vmem:[%s0 + $0x1790] sm:$0xff]
    %v770 = vld [vmem:[%s0 + $0x1798] sm:$0xff]
    %v771 = vld [vmem:[%s0 + $0x17a0] sm:$0xff]
    %v772 = vld [vmem:[%s0 + $0x17a8] sm:$0xff]
    %v773 = vld [vmem:[%s0 + $0x17b0] sm:$0xff]
    %v774 = vld [vmem:[%s0 + $0x17b8] sm:$0xff]
    %v775 = vld [vmem:[%s0 + $0x17c0] sm:$0xff]
    %v776 = vld [vmem:[%s0 + $0x17c8] sm:$0xff]
    %v777 = vld [vmem:[%s0 + $0x17d0] sm:$0xff]
    %v778 = vld [vmem:[%s0 + $0x17d8] sm:$0xff]
    %v779 = vld [vmem:[%s0 + $0x17e0] sm:$0xff]
    %v780 = vld [vmem:[%s0 + $0x17e8] sm:$0xff]
    %v781 = vld [vmem:[%s0 + $0x17f0] sm:$0xf]
    %v782 = vld [vmem:[%s0 + $0x17f8] sm:$0xff]
    %v783 = vld [vmem:[%s0 + $0x1800] sm:$0xff]
    %v784 = vld [vmem:[%s0 + $0x1808] sm:$0xff]
    %v785 = vld [vmem:[%s0 + $0x1810] sm:$0xff]
    %v786 = vld [vmem:[%s0 + $0x1818] sm:$0xff]
    %v787 = vld [vmem:[%s0 + $0x1820] sm:$0xff]
    %v788 = vld [vmem:[%s0 + $0x1828] sm:$0xff]
    %v789 = vld [vmem:[%s0 + $0x1830] sm:$0xff]
    %v790 = vld [vmem:[%s0 + $0x1838] sm:$0xff]
    %v791 = vld [vmem:[%s0 + $0x1840] sm:$0xff]
    %v792 = vld [vmem:[%s0 + $0x1848] sm:$0xff]
    %v793 = vld [vmem:[%s0 + $0x1850] sm:$0xff]
    %v794 = vld [vmem:[%s0 + $0x1858] sm:$0xf]
    %v795 = vld [vmem:[%s0 + $0x1860] sm:$0xff]
    %v796 = vld [vmem:[%s0 + $0x1868] sm:$0xff]
    %v797 = vld [vmem:[%s0 + $0x1870] sm:$0xff]
    %v798 = vld [vmem:[%s0 + $0x1878] sm:$0xff]
    %v799 = vld [vmem:[%s0 + $0x1880] sm:$0xff]
    %v800 = vld [vmem:[%s0 + $0x1888] sm:$0xff]
    %v801 = vld [vmem:[%s0 + $0x1890] sm:$0xff]
    %v802 = vld [vmem:[%s0 + $0x1898] sm:$0xff]
    %v803 = vld [vmem:[%s0 + $0x18a0] sm:$0xff]
    %v804 = vld [vmem:[%s0 + $0x18a8] sm:$0xff]
    %v805 = vld [vmem:[%s0 + $0x18b0] sm:$0xff]
    %v806 = vld [vmem:[%s0 + $0x18b8] sm:$0xff]
    %v807 = vld [vmem:[%s0 + $0x18c0] sm:$0xf]
    %v808 = vld [vmem:[%s0 + $0x18c8] sm:$0xff]
    %v809 = vld [vmem:[%s0 + $0x18d0] sm:$0xff]
    %v810 = vld [vmem:[%s0 + $0x18d8] sm:$0xff]
    %v811 = vld [vmem:[%s0 + $0x18e0] sm:$0xff]
    %v812 = vld [vmem:[%s0 + $0x18e8] sm:$0xff]
    %v813 = vld [vmem:[%s0 + $0x18f0] sm:$0xff]
    %v814 = vld [vmem:[%s0 + $0x18f8] sm:$0xff]
    %v815 = vld [vmem:[%s0 + $0x1900] sm:$0xff]
    %v816 = vld [vmem:[%s0 + $0x1908] sm:$0xff]
    %v817 = vld [vmem:[%s0 + $0x1910] sm:$0xff]
    %v818 = vld [vmem:[%s0 + $0x1918] sm:$0xff]
    %v819 = vld [vmem:[%s0 + $0x1920] sm:$0xff]
    %v820 = vld [vmem:[%s0 + $0x1928] sm:$0xf]
    %v821 = vld [vmem:[%s0 + $0x1930] sm:$0xff]
    %v822 = vld [vmem:[%s0 + $0x1938] sm:$0xff]
    %v823 = vld [vmem:[%s0 + $0x1940] sm:$0xff]
    %v824 = vld [vmem:[%s0 + $0x1948] sm:$0xff]
    %v825 = vld [vmem:[%s0 + $0x1950] sm:$0xff]
    %v826 = vld [vmem:[%s0 + $0x1958] sm:$0xff]
    %v827 = vld [vmem:[%s0 + $0x1960] sm:$0xff]
    %v828 = vld [vmem:[%s0 + $0x1968] sm:$0xff]
    %v829 = vld [vmem:[%s0 + $0x1970] sm:$0xff]
    %v830 = vld [vmem:[%s0 + $0x1978] sm:$0xff]
    %v831 = vld [vmem:[%s0 + $0x1980] sm:$0xff]
    %v832 = vld [vmem:[%s0 + $0x1988] sm:$0xff]
    %v833 = vld [vmem:[%s0 + $0x1990] sm:$0xf]
    %v834 = vld [vmem:[%s0 + $0x1998] sm:$0xff]
    %v835 = vld [vmem:[%s0 + $0x19a0] sm:$0xff]
    %v836 = vld [vmem:[%s0 + $0x19a8] sm:$0xff]
    %v837 = vld [vmem:[%s0 + $0x19b0] sm:$0xff]
    %v838 = vld [vmem:[%s0 + $0x19b8] sm:$0xff]
    %v839 = vld [vmem:[%s0 + $0x19c0] sm:$0xff]
    %v840 = vld [vmem:[%s0 + $0x19c8] sm:$0xff]
    %v841 = vld [vmem:[%s0 + $0x19d0] sm:$0xff]
    %v842 = vld [vmem:[%s0 + $0x19d8] sm:$0xff]
    %v843 = vld [vmem:[%s0 + $0x19e0] sm:$0xff]
    %v844 = vld [vmem:[%s0 + $0x19e8] sm:$0xff]
    %v845 = vld [vmem:[%s0 + $0x19f0] sm:$0xff]
    %v846 = vld [vmem:[%s0 + $0x19f8] sm:$0xf]
    %v847 = vld [vmem:[%s0 + $0x1a00] sm:$0xff]
    %v848 = vld [vmem:[%s0 + $0x1a08] sm:$0xff]
    %v849 = vld [vmem:[%s0 + $0x1a10] sm:$0xff]
    %v850 = vld [vmem:[%s0 + $0x1a18] sm:$0xff]
    %v851 = vld [vmem:[%s0 + $0x1a20] sm:$0xff]
    %v852 = vld [vmem:[%s0 + $0x1a28] sm:$0xff]
    %v853 = vld [vmem:[%s0 + $0x1a30] sm:$0xff]
    %v854 = vld [vmem:[%s0 + $0x1a38] sm:$0xff]
    %v855 = vld [vmem:[%s0 + $0x1a40] sm:$0xff]
    %v856 = vld [vmem:[%s0 + $0x1a48] sm:$0xff]
    %v857 = vld [vmem:[%s0 + $0x1a50] sm:$0xff]
    %v858 = vld [vmem:[%s0 + $0x1a58] sm:$0xff]
    %v859 = vld [vmem:[%s0 + $0x1a60] sm:$0xf]
    %v860 = vld [vmem:[%s0 + $0x1a68] sm:$0xff]
    %v861 = vld [vmem:[%s0 + $0x1a70] sm:$0xff]
    %v862 = vld [vmem:[%s0 + $0x1a78] sm:$0xff]
    %v863 = vld [vmem:[%s0 + $0x1a80] sm:$0xff]
    %v864 = vld [vmem:[%s0 + $0x1a88] sm:$0xff]
    %v865 = vld [vmem:[%s0 + $0x1a90] sm:$0xff]
    %v866 = vld [vmem:[%s0 + $0x1a98] sm:$0xff]
    %v867 = vld [vmem:[%s0 + $0x1aa0] sm:$0xff]
    %v868 = vld [vmem:[%s0 + $0x1aa8] sm:$0xff]
    %v869 = vld [vmem:[%s0 + $0x1ab0] sm:$0xff]
    %v870 = vld [vmem:[%s0 + $0x1ab8] sm:$0xff]
    %v871 = vld [vmem:[%s0 + $0x1ac0] sm:$0xff]
    %v872 = vld [vmem:[%s0 + $0x1ac8] sm:$0xf]
    %v873 = vld [vmem:[%s0 + $0x1ad0] sm:$0xff]
    %v874 = vld [vmem:[%s0 + $0x1ad8] sm:$0xff]
    %v875 = vld [vmem:[%s0 + $0x1ae0] sm:$0xff]
    %v876 = vld [vmem:[%s0 + $0x1ae8] sm:$0xff]
    %v877 = vld [vmem:[%s0 + $0x1af0] sm:$0xff]
    %v878 = vld [vmem:[%s0 + $0x1af8] sm:$0xff]
    %v879 = vld [vmem:[%s0 + $0x1b00] sm:$0xff]
    %v880 = vld [vmem:[%s0 + $0x1b08] sm:$0xff]
    %v881 = vld [vmem:[%s0 + $0x1b10] sm:$0xff]
    %v882 = vld [vmem:[%s0 + $0x1b18] sm:$0xff]
    %v883 = vld [vmem:[%s0 + $0x1b20] sm:$0xff]
    %v884 = vld [vmem:[%s0 + $0x1b28] sm:$0xff]
    %v885 = vld [vmem:[%s0 + $0x1b30] sm:$0xf]
    %v886 = vld [vmem:[%s0 + $0x1b38] sm:$0xff]
    %v887 = vld [vmem:[%s0 + $0x1b40] sm:$0xff]
    %v888 = vld [vmem:[%s0 + $0x1b48] sm:$0xff]
    %v889 = vld [vmem:[%s0 + $0x1b50] sm:$0xff]
    %v890 = vld [vmem:[%s0 + $0x1b58] sm:$0xff]
    %v891 = vld [vmem:[%s0 + $0x1b60] sm:$0xff]
    %v892 = vld [vmem:[%s0 + $0x1b68] sm:$0xff]
    %v893 = vld [vmem:[%s0 + $0x1b70] sm:$0xff]
    %v894 = vld [vmem:[%s0 + $0x1b78] sm:$0xff]
    %v895 = vld [vmem:[%s0 + $0x1b80] sm:$0xff]
    %v896 = vld [vmem:[%s0 + $0x1b88] sm:$0xff]
    %v897 = vld [vmem:[%s0 + $0x1b90] sm:$0xff]
    %v898 = vld [vmem:[%s0 + $0x1b98] sm:$0xf]
    %v899 = vld [vmem:[%s0 + $0x1ba0] sm:$0xff]
    %v900 = vld [vmem:[%s0 + $0x1ba8] sm:$0xff]
    %v901 = vld [vmem:[%s0 + $0x1bb0] sm:$0xff]
    %v902 = vld [vmem:[%s0 + $0x1bb8] sm:$0xff]
    %v903 = vld [vmem:[%s0 + $0x1bc0] sm:$0xff]
    %v904 = vld [vmem:[%s0 + $0x1bc8] sm:$0xff]
    %v905 = vld [vmem:[%s0 + $0x1bd0] sm:$0xff]
    %v906 = vld [vmem:[%s0 + $0x1bd8] sm:$0xff]
    %v907 = vld [vmem:[%s0 + $0x1be0] sm:$0xff]
    %v908 = vld [vmem:[%s0 + $0x1be8] sm:$0xff]
    %v909 = vld [vmem:[%s0 + $0x1bf0] sm:$0xff]
    %v910 = vld [vmem:[%s0 + $0x1bf8] sm:$0xff]
    %v911 = vld [vmem:[%s0 + $0x1c00] sm:$0xf]
    %v912 = vld [vmem:[%s0 + $0x1c08] sm:$0xff]
    %v913 = vld [vmem:[%s0 + $0x1c10] sm:$0xff]
    %v914 = vld [vmem:[%s0 + $0x1c18] sm:$0xff]
    %v915 = vld [vmem:[%s0 + $0x1c20] sm:$0xff]
    %v916 = vld [vmem:[%s0 + $0x1c28] sm:$0xff]
    %v917 = vld [vmem:[%s0 + $0x1c30] sm:$0xff]
    %v918 = vld [vmem:[%s0 + $0x1c38] sm:$0xff]
    %v919 = vld [vmem:[%s0 + $0x1c40] sm:$0xff]
    %v920 = vld [vmem:[%s0 + $0x1c48] sm:$0xff]
    %v921 = vld [vmem:[%s0 + $0x1c50] sm:$0xff]
    %v922 = vld [vmem:[%s0 + $0x1c58] sm:$0xff]
    %v923 = vld [vmem:[%s0 + $0x1c60] sm:$0xff]
    %v924 = vld [vmem:[%s0 + $0x1c68] sm:$0xf]
    %v925 = vld [vmem:[%s0 + $0x1c70] sm:$0xff]
    %v926 = vld [vmem:[%s0 + $0x1c78] sm:$0xff]
    %v927 = vld [vmem:[%s0 + $0x1c80] sm:$0xff]
    %v928 = vld [vmem:[%s0 + $0x1c88] sm:$0xff]
    %v929 = vld [vmem:[%s0 + $0x1c90] sm:$0xff]
    %v930 = vld [vmem:[%s0 + $0x1c98] sm:$0xff]
    %v931 = vld [vmem:[%s0 + $0x1ca0] sm:$0xff]
    %v932 = vld [vmem:[%s0 + $0x1ca8] sm:$0xff]
    %v933 = vld [vmem:[%s0 + $0x1cb0] sm:$0xff]
    %v934 = vld [vmem:[%s0 + $0x1cb8] sm:$0xff]
    %v935 = vld [vmem:[%s0 + $0x1cc0] sm:$0xff]
    %v936 = vld [vmem:[%s0 + $0x1cc8] sm:$0xff]
    %v937 = vld [vmem:[%s0 + $0x1cd0] sm:$0xf]
    %v938 = vld [vmem:[%s0 + $0x1cd8] sm:$0xff]
    %v939 = vld [vmem:[%s0 + $0x1ce0] sm:$0xff]
    %v940 = vld [vmem:[%s0 + $0x1ce8] sm:$0xff]
    %v941 = vld [vmem:[%s0 + $0x1cf0] sm:$0xff]
    %v942 = vld [vmem:[%s0 + $0x1cf8] sm:$0xff]
    %v943 = vld [vmem:[%s0 + $0x1d00] sm:$0xff]
    %v944 = vld [vmem:[%s0 + $0x1d08] sm:$0xff]
    %v945 = vld [vmem:[%s0 + $0x1d10] sm:$0xff]
    %v946 = vld [vmem:[%s0 + $0x1d18] sm:$0xff]
    %v947 = vld [vmem:[%s0 + $0x1d20] sm:$0xff]
    %v948 = vld [vmem:[%s0 + $0x1d28] sm:$0xff]
    %v949 = vld [vmem:[%s0 + $0x1d30] sm:$0xff]
    %v950 = vld [vmem:[%s0 + $0x1d38] sm:$0xf]
    %v951 = vld [vmem:[%s0 + $0x1d40] sm:$0xff]
    %v952 = vld [vmem:[%s0 + $0x1d48] sm:$0xff]
    %v953 = vld [vmem:[%s0 + $0x1d50] sm:$0xff]
    %v954 = vld [vmem:[%s0 + $0x1d58] sm:$0xff]
    %v955 = vld [vmem:[%s0 + $0x1d60] sm:$0xff]
    %v956 = vld [vmem:[%s0 + $0x1d68] sm:$0xff]
    %v957 = vld [vmem:[%s0 + $0x1d70] sm:$0xff]
    %v958 = vld [vmem:[%s0 + $0x1d78] sm:$0xff]
    %v959 = vld [vmem:[%s0 + $0x1d80] sm:$0xff]
    %v960 = vld [vmem:[%s0 + $0x1d88] sm:$0xff]
    %v961 = vld [vmem:[%s0 + $0x1d90] sm:$0xff]
    %v962 = vld [vmem:[%s0 + $0x1d98] sm:$0xff]
    %v963 = vld [vmem:[%s0 + $0x1da0] sm:$0xf]
    %v964 = vld [vmem:[%s0 + $0x1da8] sm:$0xff]
    %v965 = vld [vmem:[%s0 + $0x1db0] sm:$0xff]
    %v966 = vld [vmem:[%s0 + $0x1db8] sm:$0xff]
    %v967 = vld [vmem:[%s0 + $0x1dc0] sm:$0xff]
    %v968 = vld [vmem:[%s0 + $0x1dc8] sm:$0xff]
    %v969 = vld [vmem:[%s0 + $0x1dd0] sm:$0xff]
    %v970 = vld [vmem:[%s0 + $0x1dd8] sm:$0xff]
    %v971 = vld [vmem:[%s0 + $0x1de0] sm:$0xff]
    %v972 = vld [vmem:[%s0 + $0x1de8] sm:$0xff]
    %v973 = vld [vmem:[%s0 + $0x1df0] sm:$0xff]
    %v974 = vld [vmem:[%s0 + $0x1df8] sm:$0xff]
    %v975 = vld [vmem:[%s0 + $0x1e00] sm:$0xff]
    %v976 = vld [vmem:[%s0 + $0x1e08] sm:$0xf]
    %v977 = vld [vmem:[%s0 + $0x1e10] sm:$0xff]
    %v978 = vld [vmem:[%s0 + $0x1e18] sm:$0xff]
    %v979 = vld [vmem:[%s0 + $0x1e20] sm:$0xff]
    %v980 = vld [vmem:[%s0 + $0x1e28] sm:$0xff]
    %v981 = vld [vmem:[%s0 + $0x1e30] sm:$0xff]
    %v982 = vld [vmem:[%s0 + $0x1e38] sm:$0xff]
    %v983 = vld [vmem:[%s0 + $0x1e40] sm:$0xff]
    %v984 = vld [vmem:[%s0 + $0x1e48] sm:$0xff]
    %v985 = vld [vmem:[%s0 + $0x1e50] sm:$0xff]
    %v986 = vld [vmem:[%s0 + $0x1e58] sm:$0xff]
    %v987 = vld [vmem:[%s0 + $0x1e60] sm:$0xff]
    %v988 = vld [vmem:[%s0 + $0x1e68] sm:$0xff]
    %v989 = vld [vmem:[%s0 + $0x1e70] sm:$0xf]
    %v990 = vld [vmem:[%s0 + $0x1e78] sm:$0xff]
    %v991 = vld [vmem:[%s0 + $0x1e80] sm:$0xff]
    %v992 = vld [vmem:[%s0 + $0x1e88] sm:$0xff]
    %v993 = vld [vmem:[%s0 + $0x1e90] sm:$0xff]
    %v994 = vld [vmem:[%s0 + $0x1e98] sm:$0xff]
    %v995 = vld [vmem:[%s0 + $0x1ea0] sm:$0xff]
    %v996 = vld [vmem:[%s0 + $0x1ea8] sm:$0xff]
    %v997 = vld [vmem:[%s0 + $0x1eb0] sm:$0xff]
    %v998 = vld [vmem:[%s0 + $0x1eb8] sm:$0xff]
    %v999 = vld [vmem:[%s0 + $0x1ec0] sm:$0xff]
    %v1000 = vld [vmem:[%s0 + $0x1ec8] sm:$0xff]
    %v1001 = vld [vmem:[%s0 + $0x1ed0] sm:$0xff]
    %v1002 = vld [vmem:[%s0 + $0x1ed8] sm:$0xf]
    %v1003 = vld [vmem:[%s0 + $0x1ee0] sm:$0xff]
    %v1004 = vld [vmem:[%s0 + $0x1ee8] sm:$0xff]
    %v1005 = vld [vmem:[%s0 + $0x1ef0] sm:$0xff]
    %v1006 = vld [vmem:[%s0 + $0x1ef8] sm:$0xff]
    %v1007 = vld [vmem:[%s0 + $0x1f00] sm:$0xff]
    %v1008 = vld [vmem:[%s0 + $0x1f08] sm:$0xff]
    %v1009 = vld [vmem:[%s0 + $0x1f10] sm:$0xff]
    %v1010 = vld [vmem:[%s0 + $0x1f18] sm:$0xff]
    %v1011 = vld [vmem:[%s0 + $0x1f20] sm:$0xff]
    %v1012 = vld [vmem:[%s0 + $0x1f28] sm:$0xff]
    %v1013 = vld [vmem:[%s0 + $0x1f30] sm:$0xff]
    %v1014 = vld [vmem:[%s0 + $0x1f38] sm:$0xff]
    %v1015 = vld [vmem:[%s0 + $0x1f40] sm:$0xf]
    %v1016 = vld [vmem:[%s0 + $0x1f48] sm:$0xff]
    %v1017 = vld [vmem:[%s0 + $0x1f50] sm:$0xff]
    %v1018 = vld [vmem:[%s0 + $0x1f58] sm:$0xff]
    %v1019 = vld [vmem:[%s0 + $0x1f60] sm:$0xff]
    %v1020 = vld [vmem:[%s0 + $0x1f68] sm:$0xff]
    %v1021 = vld [vmem:[%s0 + $0x1f70] sm:$0xff]
    %v1022 = vld [vmem:[%s0 + $0x1f78] sm:$0xff]
    %v1023 = vld [vmem:[%s0 + $0x1f80] sm:$0xff]
    %v1024 = vld [vmem:[%s0 + $0x1f88] sm:$0xff]
    %v1025 = vld [vmem:[%s0 + $0x1f90] sm:$0xff]
    %v1026 = vld [vmem:[%s0 + $0x1f98] sm:$0xff]
    %v1027 = vld [vmem:[%s0 + $0x1fa0] sm:$0xff]
    %v1028 = vld [vmem:[%s0 + $0x1fa8] sm:$0xf]
    %v1029 = vld [vmem:[%s0 + $0x1fb0] sm:$0xff]
    %v1030 = vld [vmem:[%s0 + $0x1fb8] sm:$0xff]
    %v1031 = vld [vmem:[%s0 + $0x1fc0] sm:$0xff]
    %v1032 = vld [vmem:[%s0 + $0x1fc8] sm:$0xff]
    %v1033 = vld [vmem:[%s0 + $0x1fd0] sm:$0xff]
    %v1034 = vld [vmem:[%s0 + $0x1fd8] sm:$0xff]
    %v1035 = vld [vmem:[%s0 + $0x1fe0] sm:$0xff]
    %v1036 = vld [vmem:[%s0 + $0x1fe8] sm:$0xff]
    %v1037 = vld [vmem:[%s0 + $0x1ff0] sm:$0xff]
    %v1038 = vld [vmem:[%s0 + $0x1ff8] sm:$0xff]
    %v1039 = vld [vmem:[%s0 + $0x2000] sm:$0xff]
    %v1040 = vld [vmem:[%s0 + $0x2008] sm:$0xff]
    %v1041 = vld [vmem:[%s0 + $0x2010] sm:$0xf]
    %v1042 = vld [vmem:[%s0 + $0x2018] sm:$0xff]
    %v1043 = vld [vmem:[%s0 + $0x2020] sm:$0xff]
    %v1044 = vld [vmem:[%s0 + $0x2028] sm:$0xff]
    %v1045 = vld [vmem:[%s0 + $0x2030] sm:$0xff]
    %v1046 = vld [vmem:[%s0 + $0x2038] sm:$0xff]
    %v1047 = vld [vmem:[%s0 + $0x2040] sm:$0xff]
    %v1048 = vld [vmem:[%s0 + $0x2048] sm:$0xff]
    %v1049 = vld [vmem:[%s0 + $0x2050] sm:$0xff]
    %v1050 = vld [vmem:[%s0 + $0x2058] sm:$0xff]
    %v1051 = vld [vmem:[%s0 + $0x2060] sm:$0xff]
    %v1052 = vld [vmem:[%s0 + $0x2068] sm:$0xff]
    %v1053 = vld [vmem:[%s0 + $0x2070] sm:$0xff]
    %v1054 = vld [vmem:[%s0 + $0x2078] sm:$0xf]
    %v1055 = vld [vmem:[%s0 + $0x2080] sm:$0xff]
    %v1056 = vld [vmem:[%s0 + $0x2088] sm:$0xff]
    %v1057 = vld [vmem:[%s0 + $0x2090] sm:$0xff]
    %v1058 = vld [vmem:[%s0 + $0x2098] sm:$0xff]
    %v1059 = vld [vmem:[%s0 + $0x20a0] sm:$0xff]
    %v1060 = vld [vmem:[%s0 + $0x20a8] sm:$0xff]
    %v1061 = vld [vmem:[%s0 + $0x20b0] sm:$0xff]
    %v1062 = vld [vmem:[%s0 + $0x20b8] sm:$0xff]
    %v1063 = vld [vmem:[%s0 + $0x20c0] sm:$0xff]
    %v1064 = vld [vmem:[%s0 + $0x20c8] sm:$0xff]
    %v1065 = vld [vmem:[%s0 + $0x20d0] sm:$0xff]
    %v1066 = vld [vmem:[%s0 + $0x20d8] sm:$0xff]
    %v1067 = vld [vmem:[%s0 + $0x20e0] sm:$0xf]
    %v1068 = vld [vmem:[%s0 + $0x20e8] sm:$0xff]
    %v1069 = vld [vmem:[%s0 + $0x20f0] sm:$0xff]
    %v1070 = vld [vmem:[%s0 + $0x20f8] sm:$0xff]
    %v1071 = vld [vmem:[%s0 + $0x2100] sm:$0xff]
    %v1072 = vld [vmem:[%s0 + $0x2108] sm:$0xff]
    %v1073 = vld [vmem:[%s0 + $0x2110] sm:$0xff]
    %v1074 = vld [vmem:[%s0 + $0x2118] sm:$0xff]
    %v1075 = vld [vmem:[%s0 + $0x2120] sm:$0xff]
    %v1076 = vld [vmem:[%s0 + $0x2128] sm:$0xff]
    %v1077 = vld [vmem:[%s0 + $0x2130] sm:$0xff]
    %v1078 = vld [vmem:[%s0 + $0x2138] sm:$0xff]
    %v1079 = vld [vmem:[%s0 + $0x2140] sm:$0xff]
    %v1080 = vld [vmem:[%s0 + $0x2148] sm:$0xf]
    %v1081 = vld [vmem:[%s0 + $0x2150] sm:$0xff]
    %v1082 = vld [vmem:[%s0 + $0x2158] sm:$0xff]
    %v1083 = vld [vmem:[%s0 + $0x2160] sm:$0xff]
    %v1084 = vld [vmem:[%s0 + $0x2168] sm:$0xff]
    %v1085 = vld [vmem:[%s0 + $0x2170] sm:$0xff]
    %v1086 = vld [vmem:[%s0 + $0x2178] sm:$0xff]
    %v1087 = vld [vmem:[%s0 + $0x2180] sm:$0xff]
    %v1088 = vld [vmem:[%s0 + $0x2188] sm:$0xff]
    %v1089 = vld [vmem:[%s0 + $0x2190] sm:$0xff]
    %v1090 = vld [vmem:[%s0 + $0x2198] sm:$0xff]
    %v1091 = vld [vmem:[%s0 + $0x21a0] sm:$0xff]
    %v1092 = vld [vmem:[%s0 + $0x21a8] sm:$0xff]
    %v1093 = vld [vmem:[%s0 + $0x21b0] sm:$0xf]
    %v1094 = vld [vmem:[%s0 + $0x21b8] sm:$0xff]
    %v1095 = vld [vmem:[%s0 + $0x21c0] sm:$0xff]
    %v1096 = vld [vmem:[%s0 + $0x21c8] sm:$0xff]
    %v1097 = vld [vmem:[%s0 + $0x21d0] sm:$0xff]
    %v1098 = vld [vmem:[%s0 + $0x21d8] sm:$0xff]
    %v1099 = vld [vmem:[%s0 + $0x21e0] sm:$0xff]
    %v1100 = vld [vmem:[%s0 + $0x21e8] sm:$0xff]
    %v1101 = vld [vmem:[%s0 + $0x21f0] sm:$0xff]
    %v1102 = vld [vmem:[%s0 + $0x21f8] sm:$0xff]
    %v1103 = vld [vmem:[%s0 + $0x2200] sm:$0xff]
    %v1104 = vld [vmem:[%s0 + $0x2208] sm:$0xff]
    %v1105 = vld [vmem:[%s0 + $0x2210] sm:$0xff]
    %v1106 = vld [vmem:[%s0 + $0x2218] sm:$0xf]
    %v1107 = vld [vmem:[%s0 + $0x2220] sm:$0xff]
    %v1108 = vld [vmem:[%s0 + $0x2228] sm:$0xff]
    %v1109 = vld [vmem:[%s0 + $0x2230] sm:$0xff]
    %v1110 = vld [vmem:[%s0 + $0x2238] sm:$0xff]
    %v1111 = vld [vmem:[%s0 + $0x2240] sm:$0xff]
    %v1112 = vld [vmem:[%s0 + $0x2248] sm:$0xff]
    %v1113 = vld [vmem:[%s0 + $0x2250] sm:$0xff]
    %v1114 = vld [vmem:[%s0 + $0x2258] sm:$0xff]
    %v1115 = vld [vmem:[%s0 + $0x2260] sm:$0xff]
    %v1116 = vld [vmem:[%s0 + $0x2268] sm:$0xff]
    %v1117 = vld [vmem:[%s0 + $0x2270] sm:$0xff]
    %v1118 = vld [vmem:[%s0 + $0x2278] sm:$0xff]
    %v1119 = vld [vmem:[%s0 + $0x2280] sm:$0xf]
    %v1120 = vld [vmem:[%s0 + $0x2288] sm:$0xff]
    %v1121 = vld [vmem:[%s0 + $0x2290] sm:$0xff]
    %v1122 = vld [vmem:[%s0 + $0x2298] sm:$0xff]
    %v1123 = vld [vmem:[%s0 + $0x22a0] sm:$0xff]
    %v1124 = vld [vmem:[%s0 + $0x22a8] sm:$0xff]
    %v1125 = vld [vmem:[%s0 + $0x22b0] sm:$0xff]
    %v1126 = vld [vmem:[%s0 + $0x22b8] sm:$0xff]
    %v1127 = vld [vmem:[%s0 + $0x22c0] sm:$0xff]
    %v1128 = vld [vmem:[%s0 + $0x22c8] sm:$0xff]
    %v1129 = vld [vmem:[%s0 + $0x22d0] sm:$0xff]
    %v1130 = vld [vmem:[%s0 + $0x22d8] sm:$0xff]
    %v1131 = vld [vmem:[%s0 + $0x22e0] sm:$0xff]
    %v1132 = vld [vmem:[%s0 + $0x22e8] sm:$0xf]
    %v1133 = vld [vmem:[%s0 + $0x22f0] sm:$0xff]
    %v1134 = vld [vmem:[%s0 + $0x22f8] sm:$0xff]
    %v1135 = vld [vmem:[%s0 + $0x2300] sm:$0xff]
    %v1136 = vld [vmem:[%s0 + $0x2308] sm:$0xff]
    %v1137 = vld [vmem:[%s0 + $0x2310] sm:$0xff]
    %v1138 = vld [vmem:[%s0 + $0x2318] sm:$0xff]
    %v1139 = vld [vmem:[%s0 + $0x2320] sm:$0xff]
    %v1140 = vld [vmem:[%s0 + $0x2328] sm:$0xff]
    %v1141 = vld [vmem:[%s0 + $0x2330] sm:$0xff]
    %v1142 = vld [vmem:[%s0 + $0x2338] sm:$0xff]
    %v1143 = vld [vmem:[%s0 + $0x2340] sm:$0xff]
    %v1144 = vld [vmem:[%s0 + $0x2348] sm:$0xff]
    %v1145 = vld [vmem:[%s0 + $0x2350] sm:$0xf]
    %v1146 = vld [vmem:[%s0 + $0x2358] sm:$0xff]
    %v1147 = vld [vmem:[%s0 + $0x2360] sm:$0xff]
    %v1148 = vld [vmem:[%s0 + $0x2368] sm:$0xff]
    %v1149 = vld [vmem:[%s0 + $0x2370] sm:$0xff]
    %v1150 = vld [vmem:[%s0 + $0x2378] sm:$0xff]
    %v1151 = vld [vmem:[%s0 + $0x2380] sm:$0xff]
    %v1152 = vld [vmem:[%s0 + $0x2388] sm:$0xff]
    %v1153 = vld [vmem:[%s0 + $0x2390] sm:$0xff]
    %v1154 = vld [vmem:[%s0 + $0x2398] sm:$0xff]
    %v1155 = vld [vmem:[%s0 + $0x23a0] sm:$0xff]
    %v1156 = vld [vmem:[%s0 + $0x23a8] sm:$0xff]
    %v1157 = vld [vmem:[%s0 + $0x23b0] sm:$0xff]
    %v1158 = vld [vmem:[%s0 + $0x23b8] sm:$0xf]
    %v1159 = vld [vmem:[%s0 + $0x23c0] sm:$0xff]
    %v1160 = vld [vmem:[%s0 + $0x23c8] sm:$0xff]
    %v1161 = vld [vmem:[%s0 + $0x23d0] sm:$0xff]
    %v1162 = vld [vmem:[%s0 + $0x23d8] sm:$0xff]
    %v1163 = vld [vmem:[%s0 + $0x23e0] sm:$0xff]
    %v1164 = vld [vmem:[%s0 + $0x23e8] sm:$0xff]
    %v1165 = vld [vmem:[%s0 + $0x23f0] sm:$0xff]
    %v1166 = vld [vmem:[%s0 + $0x23f8] sm:$0xff]
    %v1167 = vld [vmem:[%s0 + $0x2400] sm:$0xff]
    %v1168 = vld [vmem:[%s0 + $0x2408] sm:$0xff]
    %v1169 = vld [vmem:[%s0 + $0x2410] sm:$0xff]
    %v1170 = vld [vmem:[%s0 + $0x2418] sm:$0xff]
    %v1171 = vld [vmem:[%s0 + $0x2420] sm:$0xf]
    %v1172 = vld [vmem:[%s0 + $0x2428] sm:$0xff]
    %v1173 = vld [vmem:[%s0 + $0x2430] sm:$0xff]
    %v1174 = vld [vmem:[%s0 + $0x2438] sm:$0xff]
    %v1175 = vld [vmem:[%s0 + $0x2440] sm:$0xff]
    %v1176 = vld [vmem:[%s0 + $0x2448] sm:$0xff]
    %v1177 = vld [vmem:[%s0 + $0x2450] sm:$0xff]
    %v1178 = vld [vmem:[%s0 + $0x2458] sm:$0xff]
    %v1179 = vld [vmem:[%s0 + $0x2460] sm:$0xff]
    %v1180 = vld [vmem:[%s0 + $0x2468] sm:$0xff]
    %v1181 = vld [vmem:[%s0 + $0x2470] sm:$0xff]
    %v1182 = vld [vmem:[%s0 + $0x2478] sm:$0xff]
    %v1183 = vld [vmem:[%s0 + $0x2480] sm:$0xff]
    %v1184 = vld [vmem:[%s0 + $0x2488] sm:$0xf]
    %v1185 = vld [vmem:[%s0 + $0x2490] sm:$0xff]
    %v1186 = vld [vmem:[%s0 + $0x2498] sm:$0xff]
    %v1187 = vld [vmem:[%s0 + $0x24a0] sm:$0xff]
    %v1188 = vld [vmem:[%s0 + $0x24a8] sm:$0xff]
    %v1189 = vld [vmem:[%s0 + $0x24b0] sm:$0xff]
    %v1190 = vld [vmem:[%s0 + $0x24b8] sm:$0xff]
    %v1191 = vld [vmem:[%s0 + $0x24c0] sm:$0xff]
    %v1192 = vld [vmem:[%s0 + $0x24c8] sm:$0xff]
    %v1193 = vld [vmem:[%s0 + $0x24d0] sm:$0xff]
    %v1194 = vld [vmem:[%s0 + $0x24d8] sm:$0xff]
    %v1195 = vld [vmem:[%s0 + $0x24e0] sm:$0xff]
    %v1196 = vld [vmem:[%s0 + $0x24e8] sm:$0xff]
    %v1197 = vld [vmem:[%s0 + $0x24f0] sm:$0xf]
    %v1198 = vld [vmem:[%s0 + $0x24f8] sm:$0xff]
    %v1199 = vld [vmem:[%s0 + $0x2500] sm:$0xff]
    %v1200 = vld [vmem:[%s0 + $0x2508] sm:$0xff]
    %v1201 = vld [vmem:[%s0 + $0x2510] sm:$0xff]
    %v1202 = vld [vmem:[%s0 + $0x2518] sm:$0xff]
    %v1203 = vld [vmem:[%s0 + $0x2520] sm:$0xff]
    %v1204 = vld [vmem:[%s0 + $0x2528] sm:$0xff]
    %v1205 = vld [vmem:[%s0 + $0x2530] sm:$0xff]
    %v1206 = vld [vmem:[%s0 + $0x2538] sm:$0xff]
    %v1207 = vld [vmem:[%s0 + $0x2540] sm:$0xff]
    %v1208 = vld [vmem:[%s0 + $0x2548] sm:$0xff]
    %v1209 = vld [vmem:[%s0 + $0x2550] sm:$0xff]
    %v1210 = vld [vmem:[%s0 + $0x2558] sm:$0xf]
    %v1211 = vld [vmem:[%s0 + $0x2560] sm:$0xff]
    %v1212 = vld [vmem:[%s0 + $0x2568] sm:$0xff]
    %v1213 = vld [vmem:[%s0 + $0x2570] sm:$0xff]
    %v1214 = vld [vmem:[%s0 + $0x2578] sm:$0xff]
    %v1215 = vld [vmem:[%s0 + $0x2580] sm:$0xff]
    %v1216 = vld [vmem:[%s0 + $0x2588] sm:$0xff]
    %v1217 = vld [vmem:[%s0 + $0x2590] sm:$0xff]
    %v1218 = vld [vmem:[%s0 + $0x2598] sm:$0xff]
    %v1219 = vld [vmem:[%s0 + $0x25a0] sm:$0xff]
    %v1220 = vld [vmem:[%s0 + $0x25a8] sm:$0xff]
    %v1221 = vld [vmem:[%s0 + $0x25b0] sm:$0xff]
    %v1222 = vld [vmem:[%s0 + $0x25b8] sm:$0xff]
    %v1223 = vld [vmem:[%s0 + $0x25c0] sm:$0xf]
    %v1224 = vld [vmem:[%s0 + $0x25c8] sm:$0xff]
    %v1225 = vld [vmem:[%s0 + $0x25d0] sm:$0xff]
    %v1226 = vld [vmem:[%s0 + $0x25d8] sm:$0xff]
    %v1227 = vld [vmem:[%s0 + $0x25e0] sm:$0xff]
    %v1228 = vld [vmem:[%s0 + $0x25e8] sm:$0xff]
    %v1229 = vld [vmem:[%s0 + $0x25f0] sm:$0xff]
    %v1230 = vld [vmem:[%s0 + $0x25f8] sm:$0xff]
    %v1231 = vld [vmem:[%s0 + $0x2600] sm:$0xff]
    %v1232 = vld [vmem:[%s0 + $0x2608] sm:$0xff]
    %v1233 = vld [vmem:[%s0 + $0x2610] sm:$0xff]
    %v1234 = vld [vmem:[%s0 + $0x2618] sm:$0xff]
    %v1235 = vld [vmem:[%s0 + $0x2620] sm:$0xff]
    %v1236 = vld [vmem:[%s0 + $0x2628] sm:$0xf]
    %v1237 = vld [vmem:[%s0 + $0x2630] sm:$0xff]
    %v1238 = vld [vmem:[%s0 + $0x2638] sm:$0xff]
    %v1239 = vld [vmem:[%s0 + $0x2640] sm:$0xff]
    %v1240 = vld [vmem:[%s0 + $0x2648] sm:$0xff]
    %v1241 = vld [vmem:[%s0 + $0x2650] sm:$0xff]
    %v1242 = vld [vmem:[%s0 + $0x2658] sm:$0xff]
    %v1243 = vld [vmem:[%s0 + $0x2660] sm:$0xff]
    %v1244 = vld [vmem:[%s0 + $0x2668] sm:$0xff]
    %v1245 = vld [vmem:[%s0 + $0x2670] sm:$0xff]
    %v1246 = vld [vmem:[%s0 + $0x2678] sm:$0xff]
    %v1247 = vld [vmem:[%s0 + $0x2680] sm:$0xff]
    %v1248 = vld [vmem:[%s0 + $0x2688] sm:$0xff]
    %v1249 = vld [vmem:[%s0 + $0x2690] sm:$0xf]
    %v1250 = vld [vmem:[%s0 + $0x2698] sm:$0xff]
    %v1251 = vld [vmem:[%s0 + $0x26a0] sm:$0xff]
    %v1252 = vld [vmem:[%s0 + $0x26a8] sm:$0xff]
    %v1253 = vld [vmem:[%s0 + $0x26b0] sm:$0xff]
    %v1254 = vld [vmem:[%s0 + $0x26b8] sm:$0xff]
    %v1255 = vld [vmem:[%s0 + $0x26c0] sm:$0xff]
    %v1256 = vld [vmem:[%s0 + $0x26c8] sm:$0xff]
    %v1257 = vld [vmem:[%s0 + $0x26d0] sm:$0xff]
    %v1258 = vld [vmem:[%s0 + $0x26d8] sm:$0xff]
    %v1259 = vld [vmem:[%s0 + $0x26e0] sm:$0xff]
    %v1260 = vld [vmem:[%s0 + $0x26e8] sm:$0xff]
    %v1261 = vld [vmem:[%s0 + $0x26f0] sm:$0xff]
    %v1262 = vld [vmem:[%s0 + $0x26f8] sm:$0xf]
    %v1263 = vld [vmem:[%s0 + $0x2700] sm:$0xff]
    %v1264 = vld [vmem:[%s0 + $0x2708] sm:$0xff]
    %v1265 = vld [vmem:[%s0 + $0x2710] sm:$0xff]
    %v1266 = vld [vmem:[%s0 + $0x2718] sm:$0xff]
    %v1267 = vld [vmem:[%s0 + $0x2720] sm:$0xff]
    %v1268 = vld [vmem:[%s0 + $0x2728] sm:$0xff]
    %v1269 = vld [vmem:[%s0 + $0x2730] sm:$0xff]
    %v1270 = vld [vmem:[%s0 + $0x2738] sm:$0xff]
    %v1271 = vld [vmem:[%s0 + $0x2740] sm:$0xff]
    %v1272 = vld [vmem:[%s0 + $0x2748] sm:$0xff]
    %v1273 = vld [vmem:[%s0 + $0x2750] sm:$0xff]
    %v1274 = vld [vmem:[%s0 + $0x2758] sm:$0xff]
    %v1275 = vld [vmem:[%s0 + $0x2760] sm:$0xf]
    %v1276 = vld [vmem:[%s0 + $0x2768] sm:$0xff]
    %v1277 = vld [vmem:[%s0 + $0x2770] sm:$0xff]
    %v1278 = vld [vmem:[%s0 + $0x2778] sm:$0xff]
    %v1279 = vld [vmem:[%s0 + $0x2780] sm:$0xff]
    %v1280 = vld [vmem:[%s0 + $0x2788] sm:$0xff]
    %v1281 = vld [vmem:[%s0 + $0x2790] sm:$0xff]
    %v1282 = vld [vmem:[%s0 + $0x2798] sm:$0xff]
    %v1283 = vld [vmem:[%s0 + $0x27a0] sm:$0xff]
    %v1284 = vld [vmem:[%s0 + $0x27a8] sm:$0xff]
    %v1285 = vld [vmem:[%s0 + $0x27b0] sm:$0xff]
    %v1286 = vld [vmem:[%s0 + $0x27b8] sm:$0xff]
    %v1287 = vld [vmem:[%s0 + $0x27c0] sm:$0xff]
    %v1288 = vld [vmem:[%s0 + $0x27c8] sm:$0xf]
    %v1289 = vld [vmem:[%s0 + $0x27d0] sm:$0xff]
    %v1290 = vld [vmem:[%s0 + $0x27d8] sm:$0xff]
    %v1291 = vld [vmem:[%s0 + $0x27e0] sm:$0xff]
    %v1292 = vld [vmem:[%s0 + $0x27e8] sm:$0xff]
    %v1293 = vld [vmem:[%s0 + $0x27f0] sm:$0xff]
    %v1294 = vld [vmem:[%s0 + $0x27f8] sm:$0xff]
    %v1295 = vld [vmem:[%s0 + $0x2800] sm:$0xff]
    %v1296 = vld [vmem:[%s0 + $0x2808] sm:$0xff]
    %v1297 = vld [vmem:[%s0 + $0x2810] sm:$0xff]
    %v1298 = vld [vmem:[%s0 + $0x2818] sm:$0xff]
    %v1299 = vld [vmem:[%s0 + $0x2820] sm:$0xff]
    %v1300 = vld [vmem:[%s0 + $0x2828] sm:$0xff]
    %v1301 = vld [vmem:[%s0 + $0x2830] sm:$0xf]
    %v1302 = vld [vmem:[%s0 + $0x2838] sm:$0xff]
    %v1303 = vld [vmem:[%s0 + $0x2840] sm:$0xff]
    %v1304 = vld [vmem:[%s0 + $0x2848] sm:$0xff]
    %v1305 = vld [vmem:[%s0 + $0x2850] sm:$0xff]
    %v1306 = vld [vmem:[%s0 + $0x2858] sm:$0xff]
    %v1307 = vld [vmem:[%s0 + $0x2860] sm:$0xff]
    %v1308 = vld [vmem:[%s0 + $0x2868] sm:$0xff]
    %v1309 = vld [vmem:[%s0 + $0x2870] sm:$0xff]
    %v1310 = vld [vmem:[%s0 + $0x2878] sm:$0xff]
    %v1311 = vld [vmem:[%s0 + $0x2880] sm:$0xff]
    %v1312 = vld [vmem:[%s0 + $0x2888] sm:$0xff]
    %v1313 = vld [vmem:[%s0 + $0x2890] sm:$0xff]
    %v1314 = vld [vmem:[%s0 + $0x2898] sm:$0xf]
    %v1315 = vld [vmem:[%s0 + $0x28a0] sm:$0xff]
    %v1316 = vld [vmem:[%s0 + $0x28a8] sm:$0xff]
    %v1317 = vld [vmem:[%s0 + $0x28b0] sm:$0xff]
    %v1318 = vld [vmem:[%s0 + $0x28b8] sm:$0xff]
    %v1319 = vld [vmem:[%s0 + $0x28c0] sm:$0xff]
    %v1320 = vld [vmem:[%s0 + $0x28c8] sm:$0xff]
    %v1321 = vld [vmem:[%s0 + $0x28d0] sm:$0xff]
    %v1322 = vld [vmem:[%s0 + $0x28d8] sm:$0xff]
    %v1323 = vld [vmem:[%s0 + $0x28e0] sm:$0xff]
    %v1324 = vld [vmem:[%s0 + $0x28e8] sm:$0xff]
    %v1325 = vld [vmem:[%s0 + $0x28f0] sm:$0xff]
    %v1326 = vld [vmem:[%s0 + $0x28f8] sm:$0xff]
    %v1327 = vld [vmem:[%s0 + $0x2900] sm:$0xf]
    %v1328 = vld [vmem:[%s0 + $0x2908] sm:$0xff]
    %v1329 = vld [vmem:[%s0 + $0x2910] sm:$0xff]
    %v1330 = vld [vmem:[%s0 + $0x2918] sm:$0xff]
    %v1331 = vld [vmem:[%s0 + $0x2920] sm:$0xff]
    %v1332 = vld [vmem:[%s0 + $0x2928] sm:$0xff]
    %v1333 = vld [vmem:[%s0 + $0x2930] sm:$0xff]
    %v1334 = vld [vmem:[%s0 + $0x2938] sm:$0xff]
    %v1335 = vld [vmem:[%s0 + $0x2940] sm:$0xff]
    %v1336 = vld [vmem:[%s0 + $0x2948] sm:$0xff]
    %v1337 = vld [vmem:[%s0 + $0x2950] sm:$0xff]
    %v1338 = vld [vmem:[%s0 + $0x2958] sm:$0xff]
    %v1339 = vld [vmem:[%s0 + $0x2960] sm:$0xff]
    %v1340 = vld [vmem:[%s0 + $0x2968] sm:$0xf]
    %v1341 = vld [vmem:[%s0 + $0x2970] sm:$0xff]
    %v1342 = vld [vmem:[%s0 + $0x2978] sm:$0xff]
    %v1343 = vld [vmem:[%s0 + $0x2980] sm:$0xff]
    %v1344 = vld [vmem:[%s0 + $0x2988] sm:$0xff]
    %v1345 = vld [vmem:[%s0 + $0x2990] sm:$0xff]
    %v1346 = vld [vmem:[%s0 + $0x2998] sm:$0xff]
    %v1347 = vld [vmem:[%s0 + $0x29a0] sm:$0xff]
    %v1348 = vld [vmem:[%s0 + $0x29a8] sm:$0xff]
    %v1349 = vld [vmem:[%s0 + $0x29b0] sm:$0xff]
    %v1350 = vld [vmem:[%s0 + $0x29b8] sm:$0xff]
    %v1351 = vld [vmem:[%s0 + $0x29c0] sm:$0xff]
    %v1352 = vld [vmem:[%s0 + $0x29c8] sm:$0xff]
    %v1353 = vld [vmem:[%s0 + $0x29d0] sm:$0xf]
    %v1354 = vld [vmem:[%s0 + $0x29d8] sm:$0xff]
    %v1355 = vld [vmem:[%s0 + $0x29e0] sm:$0xff]
    %v1356 = vld [vmem:[%s0 + $0x29e8] sm:$0xff]
    %v1357 = vld [vmem:[%s0 + $0x29f0] sm:$0xff]
    %v1358 = vld [vmem:[%s0 + $0x29f8] sm:$0xff]
    %v1359 = vld [vmem:[%s0 + $0x2a00] sm:$0xff]
    %v1360 = vld [vmem:[%s0 + $0x2a08] sm:$0xff]
    %v1361 = vld [vmem:[%s0 + $0x2a10] sm:$0xff]
    %v1362 = vld [vmem:[%s0 + $0x2a18] sm:$0xff]
    %v1363 = vld [vmem:[%s0 + $0x2a20] sm:$0xff]
    %v1364 = vld [vmem:[%s0 + $0x2a28] sm:$0xff]
    %v1365 = vld [vmem:[%s0 + $0x2a30] sm:$0xff]
    %v1366 = vld [vmem:[%s0 + $0x2a38] sm:$0xf]
    %v1367 = vld [vmem:[%s0 + $0x2a40] sm:$0xff]
    %v1368 = vld [vmem:[%s0 + $0x2a48] sm:$0xff]
    %v1369 = vld [vmem:[%s0 + $0x2a50] sm:$0xff]
    %v1370 = vld [vmem:[%s0 + $0x2a58] sm:$0xff]
    %v1371 = vld [vmem:[%s0 + $0x2a60] sm:$0xff]
    %v1372 = vld [vmem:[%s0 + $0x2a68] sm:$0xff]
    %v1373 = vld [vmem:[%s0 + $0x2a70] sm:$0xff]
    %v1374 = vld [vmem:[%s0 + $0x2a78] sm:$0xff]
    %v1375 = vld [vmem:[%s0 + $0x2a80] sm:$0xff]
    %v1376 = vld [vmem:[%s0 + $0x2a88] sm:$0xff]
    %v1377 = vld [vmem:[%s0 + $0x2a90] sm:$0xff]
    %v1378 = vld [vmem:[%s0 + $0x2a98] sm:$0xff]
    %v1379 = vld [vmem:[%s0 + $0x2aa0] sm:$0xf]
    %v1380 = vld [vmem:[%s0 + $0x2aa8] sm:$0xff]
    %v1381 = vld [vmem:[%s0 + $0x2ab0] sm:$0xff]
    %v1382 = vld [vmem:[%s0 + $0x2ab8] sm:$0xff]
    %v1383 = vld [vmem:[%s0 + $0x2ac0] sm:$0xff]
    %v1384 = vld [vmem:[%s0 + $0x2ac8] sm:$0xff]
    %v1385 = vld [vmem:[%s0 + $0x2ad0] sm:$0xff]
    %v1386 = vld [vmem:[%s0 + $0x2ad8] sm:$0xff]
    %v1387 = vld [vmem:[%s0 + $0x2ae0] sm:$0xff]
    %v1388 = vld [vmem:[%s0 + $0x2ae8] sm:$0xff]
    %v1389 = vld [vmem:[%s0 + $0x2af0] sm:$0xff]
    %v1390 = vld [vmem:[%s0 + $0x2af8] sm:$0xff]
    %v1391 = vld [vmem:[%s0 + $0x2b00] sm:$0xff]
    %v1392 = vld [vmem:[%s0 + $0x2b08] sm:$0xf]
    %v1393 = vld [vmem:[%s0 + $0x2b10] sm:$0xff]
    %v1394 = vld [vmem:[%s0 + $0x2b18] sm:$0xff]
    %v1395 = vld [vmem:[%s0 + $0x2b20] sm:$0xff]
    %v1396 = vld [vmem:[%s0 + $0x2b28] sm:$0xff]
    %v1397 = vld [vmem:[%s0 + $0x2b30] sm:$0xff]
    %v1398 = vld [vmem:[%s0 + $0x2b38] sm:$0xff]
    %v1399 = vld [vmem:[%s0 + $0x2b40] sm:$0xff]
    %v1400 = vld [vmem:[%s0 + $0x2b48] sm:$0xff]
    %v1401 = vld [vmem:[%s0 + $0x2b50] sm:$0xff]
    %v1402 = vld [vmem:[%s0 + $0x2b58] sm:$0xff]
    %v1403 = vld [vmem:[%s0 + $0x2b60] sm:$0xff]
    %v1404 = vld [vmem:[%s0 + $0x2b68] sm:$0xff]
    %v1405 = vld [vmem:[%s0 + $0x2b70] sm:$0xf]
    %v1406 = vld [vmem:[%s0 + $0x2b78] sm:$0xff]
    %v1407 = vld [vmem:[%s0 + $0x2b80] sm:$0xff]
    %v1408 = vld [vmem:[%s0 + $0x2b88] sm:$0xff]
    %v1409 = vld [vmem:[%s0 + $0x2b90] sm:$0xff]
    %v1410 = vld [vmem:[%s0 + $0x2b98] sm:$0xff]
    %v1411 = vld [vmem:[%s0 + $0x2ba0] sm:$0xff]
    %v1412 = vld [vmem:[%s0 + $0x2ba8] sm:$0xff]
    %v1413 = vld [vmem:[%s0 + $0x2bb0] sm:$0xff]
    %v1414 = vld [vmem:[%s0 + $0x2bb8] sm:$0xff]
    %v1415 = vld [vmem:[%s0 + $0x2bc0] sm:$0xff]
    %v1416 = vld [vmem:[%s0 + $0x2bc8] sm:$0xff]
    %v1417 = vld [vmem:[%s0 + $0x2bd0] sm:$0xff]
    %v1418 = vld [vmem:[%s0 + $0x2bd8] sm:$0xf]
    %v1419 = vld [vmem:[%s0 + $0x2be0] sm:$0xff]
    %v1420 = vld [vmem:[%s0 + $0x2be8] sm:$0xff]
    %v1421 = vld [vmem:[%s0 + $0x2bf0] sm:$0xff]
    %v1422 = vld [vmem:[%s0 + $0x2bf8] sm:$0xff]
    %v1423 = vld [vmem:[%s0 + $0x2c00] sm:$0xff]
    %v1424 = vld [vmem:[%s0 + $0x2c08] sm:$0xff]
    %v1425 = vld [vmem:[%s0 + $0x2c10] sm:$0xff]
    %v1426 = vld [vmem:[%s0 + $0x2c18] sm:$0xff]
    %v1427 = vld [vmem:[%s0 + $0x2c20] sm:$0xff]
    %v1428 = vld [vmem:[%s0 + $0x2c28] sm:$0xff]
    %v1429 = vld [vmem:[%s0 + $0x2c30] sm:$0xff]
    %v1430 = vld [vmem:[%s0 + $0x2c38] sm:$0xff]
    %v1431 = vld [vmem:[%s0 + $0x2c40] sm:$0xf]
    %v1432 = vld [vmem:[%s0 + $0x2c48] sm:$0xff]
    %v1433 = vld [vmem:[%s0 + $0x2c50] sm:$0xff]
    %v1434 = vld [vmem:[%s0 + $0x2c58] sm:$0xff]
    %v1435 = vld [vmem:[%s0 + $0x2c60] sm:$0xff]
    %v1436 = vld [vmem:[%s0 + $0x2c68] sm:$0xff]
    %v1437 = vld [vmem:[%s0 + $0x2c70] sm:$0xff]
    %v1438 = vld [vmem:[%s0 + $0x2c78] sm:$0xff]
    %v1439 = vld [vmem:[%s0 + $0x2c80] sm:$0xff]
    %v1440 = vld [vmem:[%s0 + $0x2c88] sm:$0xff]
    %v1441 = vld [vmem:[%s0 + $0x2c90] sm:$0xff]
    %v1442 = vld [vmem:[%s0 + $0x2c98] sm:$0xff]
    %v1443 = vld [vmem:[%s0 + $0x2ca0] sm:$0xff]
    %v1444 = vld [vmem:[%s0 + $0x2ca8] sm:$0xf]
    %v1445 = vld [vmem:[%s0 + $0x2cb0] sm:$0xff]
    %v1446 = vld [vmem:[%s0 + $0x2cb8] sm:$0xff]
    %v1447 = vld [vmem:[%s0 + $0x2cc0] sm:$0xff]
    %v1448 = vld [vmem:[%s0 + $0x2cc8] sm:$0xff]
    %v1449 = vld [vmem:[%s0 + $0x2cd0] sm:$0xff]
    %v1450 = vld [vmem:[%s0 + $0x2cd8] sm:$0xff]
    %v1451 = vld [vmem:[%s0 + $0x2ce0] sm:$0xff]
    %v1452 = vld [vmem:[%s0 + $0x2ce8] sm:$0xff]
    %v1453 = vld [vmem:[%s0 + $0x2cf0] sm:$0xff]
    %v1454 = vld [vmem:[%s0 + $0x2cf8] sm:$0xff]
    %v1455 = vld [vmem:[%s0 + $0x2d00] sm:$0xff]
    %v1456 = vld [vmem:[%s0 + $0x2d08] sm:$0xff]
    %v1457 = vld [vmem:[%s0 + $0x2d10] sm:$0xf]
    %v1458 = vld [vmem:[%s0 + $0x2d18] sm:$0xff]
    %v1459 = vld [vmem:[%s0 + $0x2d20] sm:$0xff]
    %v1460 = vld [vmem:[%s0 + $0x2d28] sm:$0xff]
    %v1461 = vld [vmem:[%s0 + $0x2d30] sm:$0xff]
    %v1462 = vld [vmem:[%s0 + $0x2d38] sm:$0xff]
    %v1463 = vld [vmem:[%s0 + $0x2d40] sm:$0xff]
    %v1464 = vld [vmem:[%s0 + $0x2d48] sm:$0xff]
    %v1465 = vld [vmem:[%s0 + $0x2d50] sm:$0xff]
    %v1466 = vld [vmem:[%s0 + $0x2d58] sm:$0xff]
    %v1467 = vld [vmem:[%s0 + $0x2d60] sm:$0xff]
    %v1468 = vld [vmem:[%s0 + $0x2d68] sm:$0xff]
    %v1469 = vld [vmem:[%s0 + $0x2d70] sm:$0xff]
    %v1470 = vld [vmem:[%s0 + $0x2d78] sm:$0xf]
    %v1471 = vld [vmem:[%s0 + $0x2d80] sm:$0xff]
    %v1472 = vld [vmem:[%s0 + $0x2d88] sm:$0xff]
    %v1473 = vld [vmem:[%s0 + $0x2d90] sm:$0xff]
    %v1474 = vld [vmem:[%s0 + $0x2d98] sm:$0xff]
    %v1475 = vld [vmem:[%s0 + $0x2da0] sm:$0xff]
    %v1476 = vld [vmem:[%s0 + $0x2da8] sm:$0xff]
    %v1477 = vld [vmem:[%s0 + $0x2db0] sm:$0xff]
    %v1478 = vld [vmem:[%s0 + $0x2db8] sm:$0xff]
    %v1479 = vld [vmem:[%s0 + $0x2dc0] sm:$0xff]
    %v1480 = vld [vmem:[%s0 + $0x2dc8] sm:$0xff]
    %v1481 = vld [vmem:[%s0 + $0x2dd0] sm:$0xff]
    %v1482 = vld [vmem:[%s0 + $0x2dd8] sm:$0xff]
    %v1483 = vld [vmem:[%s0 + $0x2de0] sm:$0xf]
    %v1484 = vld [vmem:[%s0 + $0x2de8] sm:$0xff]
    %v1485 = vld [vmem:[%s0 + $0x2df0] sm:$0xff]
    %v1486 = vld [vmem:[%s0 + $0x2df8] sm:$0xff]
    %v1487 = vld [vmem:[%s0 + $0x2e00] sm:$0xff]
    %v1488 = vld [vmem:[%s0 + $0x2e08] sm:$0xff]
    %v1489 = vld [vmem:[%s0 + $0x2e10] sm:$0xff]
    %v1490 = vld [vmem:[%s0 + $0x2e18] sm:$0xff]
    %v1491 = vld [vmem:[%s0 + $0x2e20] sm:$0xff]
    %v1492 = vld [vmem:[%s0 + $0x2e28] sm:$0xff]
    %v1493 = vld [vmem:[%s0 + $0x2e30] sm:$0xff]
    %v1494 = vld [vmem:[%s0 + $0x2e38] sm:$0xff]
    %v1495 = vld [vmem:[%s0 + $0x2e40] sm:$0xff]
    %v1496 = vld [vmem:[%s0 + $0x2e48] sm:$0xf]
    %v1497 = vld [vmem:[%s0 + $0x2e50] sm:$0xff]
    %v1498 = vld [vmem:[%s0 + $0x2e58] sm:$0xff]
    %v1499 = vld [vmem:[%s0 + $0x2e60] sm:$0xff]
    %v1500 = vld [vmem:[%s0 + $0x2e68] sm:$0xff]
    %v1501 = vld [vmem:[%s0 + $0x2e70] sm:$0xff]
    %v1502 = vld [vmem:[%s0 + $0x2e78] sm:$0xff]
    %v1503 = vld [vmem:[%s0 + $0x2e80] sm:$0xff]
    %v1504 = vld [vmem:[%s0 + $0x2e88] sm:$0xff]
    %v1505 = vld [vmem:[%s0 + $0x2e90] sm:$0xff]
    %v1506 = vld [vmem:[%s0 + $0x2e98] sm:$0xff]
    %v1507 = vld [vmem:[%s0 + $0x2ea0] sm:$0xff]
    %v1508 = vld [vmem:[%s0 + $0x2ea8] sm:$0xff]
    %v1509 = vld [vmem:[%s0 + $0x2eb0] sm:$0xf]
    %v1510 = vld [vmem:[%s0 + $0x2eb8] sm:$0xff]
    %v1511 = vld [vmem:[%s0 + $0x2ec0] sm:$0xff]
    %v1512 = vld [vmem:[%s0 + $0x2ec8] sm:$0xff]
    %v1513 = vld [vmem:[%s0 + $0x2ed0] sm:$0xff]
    %v1514 = vld [vmem:[%s0 + $0x2ed8] sm:$0xff]
    %v1515 = vld [vmem:[%s0 + $0x2ee0] sm:$0xff]
    %v1516 = vld [vmem:[%s0 + $0x2ee8] sm:$0xff]
    %v1517 = vld [vmem:[%s0 + $0x2ef0] sm:$0xff]
    %v1518 = vld [vmem:[%s0 + $0x2ef8] sm:$0xff]
    %v1519 = vld [vmem:[%s0 + $0x2f00] sm:$0xff]
    %v1520 = vld [vmem:[%s0 + $0x2f08] sm:$0xff]
    %v1521 = vld [vmem:[%s0 + $0x2f10] sm:$0xff]
    %v1522 = vld [vmem:[%s0 + $0x2f18] sm:$0xf]
    %v1523 = vld [vmem:[%s0 + $0x2f20] sm:$0xff]
    %v1524 = vld [vmem:[%s0 + $0x2f28] sm:$0xff]
    %v1525 = vld [vmem:[%s0 + $0x2f30] sm:$0xff]
    %v1526 = vld [vmem:[%s0 + $0x2f38] sm:$0xff]
    %v1527 = vld [vmem:[%s0 + $0x2f40] sm:$0xff]
    %v1528 = vld [vmem:[%s0 + $0x2f48] sm:$0xff]
    %v1529 = vld [vmem:[%s0 + $0x2f50] sm:$0xff]
    %v1530 = vld [vmem:[%s0 + $0x2f58] sm:$0xff]
    %v1531 = vld [vmem:[%s0 + $0x2f60] sm:$0xff]
    %v1532 = vld [vmem:[%s0 + $0x2f68] sm:$0xff]
    %v1533 = vld [vmem:[%s0 + $0x2f70] sm:$0xff]
    %v1534 = vld [vmem:[%s0 + $0x2f78] sm:$0xff]
    %v1535 = vld [vmem:[%s0 + $0x2f80] sm:$0xf]
    %v1536 = vld [vmem:[%s0 + $0x2f88] sm:$0xff]
    %v1537 = vld [vmem:[%s0 + $0x2f90] sm:$0xff]
    %v1538 = vld [vmem:[%s0 + $0x2f98] sm:$0xff]
    %v1539 = vld [vmem:[%s0 + $0x2fa0] sm:$0xff]
    %v1540 = vld [vmem:[%s0 + $0x2fa8] sm:$0xff]
    %v1541 = vld [vmem:[%s0 + $0x2fb0] sm:$0xff]
    %v1542 = vld [vmem:[%s0 + $0x2fb8] sm:$0xff]
    %v1543 = vld [vmem:[%s0 + $0x2fc0] sm:$0xff]
    %v1544 = vld [vmem:[%s0 + $0x2fc8] sm:$0xff]
    %v1545 = vld [vmem:[%s0 + $0x2fd0] sm:$0xff]
    %v1546 = vld [vmem:[%s0 + $0x2fd8] sm:$0xff]
    %v1547 = vld [vmem:[%s0 + $0x2fe0] sm:$0xff]
    %v1548 = vld [vmem:[%s0 + $0x2fe8] sm:$0xf]
    %v1549 = vld [vmem:[%s0 + $0x2ff0] sm:$0xff]
    %v1550 = vld [vmem:[%s0 + $0x2ff8] sm:$0xff]
    %v1551 = vld [vmem:[%s0 + $0x3000] sm:$0xff]
    %v1552 = vld [vmem:[%s0 + $0x3008] sm:$0xff]
    %v1553 = vld [vmem:[%s0 + $0x3010] sm:$0xff]
    %v1554 = vld [vmem:[%s0 + $0x3018] sm:$0xff]
    %v1555 = vld [vmem:[%s0 + $0x3020] sm:$0xff]
    %v1556 = vld [vmem:[%s0 + $0x3028] sm:$0xff]
    %v1557 = vld [vmem:[%s0 + $0x3030] sm:$0xff]
    %v1558 = vld [vmem:[%s0 + $0x3038] sm:$0xff]
    %v1559 = vld [vmem:[%s0 + $0x3040] sm:$0xff]
    %v1560 = vld [vmem:[%s0 + $0x3048] sm:$0xff]
    %v1561 = vld [vmem:[%s0 + $0x3050] sm:$0xf]
    %v1562 = vld [vmem:[%s0 + $0x3058] sm:$0xff]
    %v1563 = vld [vmem:[%s0 + $0x3060] sm:$0xff]
    %v1564 = vld [vmem:[%s0 + $0x3068] sm:$0xff]
    %v1565 = vld [vmem:[%s0 + $0x3070] sm:$0xff]
    %v1566 = vld [vmem:[%s0 + $0x3078] sm:$0xff]
    %v1567 = vld [vmem:[%s0 + $0x3080] sm:$0xff]
    %v1568 = vld [vmem:[%s0 + $0x3088] sm:$0xff]
    %v1569 = vld [vmem:[%s0 + $0x3090] sm:$0xff]
    %v1570 = vld [vmem:[%s0 + $0x3098] sm:$0xff]
    %v1571 = vld [vmem:[%s0 + $0x30a0] sm:$0xff]
    %v1572 = vld [vmem:[%s0 + $0x30a8] sm:$0xff]
    %v1573 = vld [vmem:[%s0 + $0x30b0] sm:$0xff]
    %v1574 = vld [vmem:[%s0 + $0x30b8] sm:$0xf]
    %v1575 = vld [vmem:[%s1] sm:$0xff]
    %v1576 = vld [vmem:[%s1 + $0x8] sm:$0xff]
    %v1577 = vld [vmem:[%s1 + $0x10] sm:$0xff]
    %v1578 = vld [vmem:[%s1 + $0x18] sm:$0xff]
    %v1579 = vld [vmem:[%s1 + $0x20] sm:$0xff]
    %v1580 = vld [vmem:[%s1 + $0x28] sm:$0xff]
    %v1581 = vld [vmem:[%s1 + $0x30] sm:$0xff]
    %v1582 = vld [vmem:[%s1 + $0x38] sm:$0xff]
    %v1583 = vld [vmem:[%s1 + $0x40] sm:$0xff]
    %v1584 = vld [vmem:[%s1 + $0x48] sm:$0xff]
    %v1585 = vld [vmem:[%s1 + $0x50] sm:$0xff]
    %v1586 = vld [vmem:[%s1 + $0x58] sm:$0xff]
    %v1587 = vld [vmem:[%s1 + $0x60] sm:$0xf]
    %v1588 = vmul.f32 %v15, %v1575
    %v1589 = vmul.f32 %v16, %v1576
    %v1590 = vmul.f32 %v17, %v1577
    %v1591 = vmul.f32 %v18, %v1578
    %v1592 = vmul.f32 %v19, %v1579
    %v1593 = vmul.f32 %v20, %v1580
    %v1594 = vmul.f32 %v21, %v1581
    %v1595 = vmul.f32 %v22, %v1582
    %v1596 = vmul.f32 %v23, %v1583
    %v1597 = vmul.f32 %v24, %v1584
    %v1598 = vmul.f32 %v25, %v1585
    %v1599 = vmul.f32 %v26, %v1586
    %v1600 = vmul.f32 %v27, %v1587
    %v1601 = vmul.f32 %v28, %v1575
    %v1602 = vmul.f32 %v29, %v1576
    %v1603 = vmul.f32 %v30, %v1577
    %v1604 = vmul.f32 %v31, %v1578
    %v1605 = vmul.f32 %v32, %v1579
    %v1606 = vmul.f32 %v33, %v1580
    %v1607 = vmul.f32 %v34, %v1581
    %v1608 = vmul.f32 %v35, %v1582
    %v1609 = vmul.f32 %v36, %v1583
    %v1610 = vmul.f32 %v37, %v1584
    %v1611 = vmul.f32 %v38, %v1585
    %v1612 = vmul.f32 %v39, %v1586
    %v1613 = vmul.f32 %v40, %v1587
    %v1614 = vmul.f32 %v41, %v1575
    %v1615 = vmul.f32 %v42, %v1576
    %v1616 = vmul.f32 %v43, %v1577
    %v1617 = vmul.f32 %v44, %v1578
    %v1618 = vmul.f32 %v45, %v1579
    %v1619 = vmul.f32 %v46, %v1580
    %v1620 = vmul.f32 %v47, %v1581
    %v1621 = vmul.f32 %v48, %v1582
    %v1622 = vmul.f32 %v49, %v1583
    %v1623 = vmul.f32 %v50, %v1584
    %v1624 = vmul.f32 %v51, %v1585
    %v1625 = vmul.f32 %v52, %v1586
    %v1626 = vmul.f32 %v53, %v1587
    %v1627 = vmul.f32 %v54, %v1575
    %v1628 = vmul.f32 %v55, %v1576
    %v1629 = vmul.f32 %v56, %v1577
    %v1630 = vmul.f32 %v57, %v1578
    %v1631 = vmul.f32 %v58, %v1579
    %v1632 = vmul.f32 %v59, %v1580
    %v1633 = vmul.f32 %v60, %v1581
    %v1634 = vmul.f32 %v61, %v1582
    %v1635 = vmul.f32 %v62, %v1583
    %v1636 = vmul.f32 %v63, %v1584
    %v1637 = vmul.f32 %v64, %v1585
    %v1638 = vmul.f32 %v65, %v1586
    %v1639 = vmul.f32 %v66, %v1587
    %v1640 = vmul.f32 %v67, %v1575
    %v1641 = vmul.f32 %v68, %v1576
    %v1642 = vmul.f32 %v69, %v1577
    %v1643 = vmul.f32 %v70, %v1578
    %v1644 = vmul.f32 %v71, %v1579
    %v1645 = vmul.f32 %v72, %v1580
    %v1646 = vmul.f32 %v73, %v1581
    %v1647 = vmul.f32 %v74, %v1582
    %v1648 = vmul.f32 %v75, %v1583
    %v1649 = vmul.f32 %v76, %v1584
    %v1650 = vmul.f32 %v77, %v1585
    %v1651 = vmul.f32 %v78, %v1586
    %v1652 = vmul.f32 %v79, %v1587
    %v1653 = vmul.f32 %v80, %v1575
    %v1654 = vmul.f32 %v81, %v1576
    %v1655 = vmul.f32 %v82, %v1577
    %v1656 = vmul.f32 %v83, %v1578
    %v1657 = vmul.f32 %v84, %v1579
    %v1658 = vmul.f32 %v85, %v1580
    %v1659 = vmul.f32 %v86, %v1581
    %v1660 = vmul.f32 %v87, %v1582
    %v1661 = vmul.f32 %v88, %v1583
    %v1662 = vmul.f32 %v89, %v1584
    %v1663 = vmul.f32 %v90, %v1585
    %v1664 = vmul.f32 %v91, %v1586
    %v1665 = vmul.f32 %v92, %v1587
    %v1666 = vmul.f32 %v93, %v1575
    %v1667 = vmul.f32 %v94, %v1576
    %v1668 = vmul.f32 %v95, %v1577
    %v1669 = vmul.f32 %v96, %v1578
    %v1670 = vmul.f32 %v97, %v1579
    %v1671 = vmul.f32 %v98, %v1580
    %v1672 = vmul.f32 %v99, %v1581
    %v1673 = vmul.f32 %v100, %v1582
    %v1674 = vmul.f32 %v101, %v1583
    %v1675 = vmul.f32 %v102, %v1584
    %v1676 = vmul.f32 %v103, %v1585
    %v1677 = vmul.f32 %v104, %v1586
    %v1678 = vmul.f32 %v105, %v1587
    %v1679 = vmul.f32 %v106, %v1575
    %v1680 = vmul.f32 %v107, %v1576
    %v1681 = vmul.f32 %v108, %v1577
    %v1682 = vmul.f32 %v109, %v1578
    %v1683 = vmul.f32 %v110, %v1579
    %v1684 = vmul.f32 %v111, %v1580
    %v1685 = vmul.f32 %v112, %v1581
    %v1686 = vmul.f32 %v113, %v1582
    %v1687 = vmul.f32 %v114, %v1583
    %v1688 = vmul.f32 %v115, %v1584
    %v1689 = vmul.f32 %v116, %v1585
    %v1690 = vmul.f32 %v117, %v1586
    %v1691 = vmul.f32 %v118, %v1587
    %v1692 = vmul.f32 %v119, %v1575
    %v1693 = vmul.f32 %v120, %v1576
    %v1694 = vmul.f32 %v121, %v1577
    %v1695 = vmul.f32 %v122, %v1578
    %v1696 = vmul.f32 %v123, %v1579
    %v1697 = vmul.f32 %v124, %v1580
    %v1698 = vmul.f32 %v125, %v1581
    %v1699 = vmul.f32 %v126, %v1582
    %v1700 = vmul.f32 %v127, %v1583
    %v1701 = vmul.f32 %v128, %v1584
    %v1702 = vmul.f32 %v129, %v1585
    %v1703 = vmul.f32 %v130, %v1586
    %v1704 = vmul.f32 %v131, %v1587
    %v1705 = vmul.f32 %v132, %v1575
    %v1706 = vmul.f32 %v133, %v1576
    %v1707 = vmul.f32 %v134, %v1577
    %v1708 = vmul.f32 %v135, %v1578
    %v1709 = vmul.f32 %v136, %v1579
    %v1710 = vmul.f32 %v137, %v1580
    %v1711 = vmul.f32 %v138, %v1581
    %v1712 = vmul.f32 %v139, %v1582
    %v1713 = vmul.f32 %v140, %v1583
    %v1714 = vmul.f32 %v141, %v1584
    %v1715 = vmul.f32 %v142, %v1585
    %v1716 = vmul.f32 %v143, %v1586
    %v1717 = vmul.f32 %v144, %v1587
    %v1718 = vmul.f32 %v145, %v1575
    %v1719 = vmul.f32 %v146, %v1576
    %v1720 = vmul.f32 %v147, %v1577
    %v1721 = vmul.f32 %v148, %v1578
    %v1722 = vmul.f32 %v149, %v1579
    %v1723 = vmul.f32 %v150, %v1580
    %v1724 = vmul.f32 %v151, %v1581
    %v1725 = vmul.f32 %v152, %v1582
    %v1726 = vmul.f32 %v153, %v1583
    %v1727 = vmul.f32 %v154, %v1584
    %v1728 = vmul.f32 %v155, %v1585
    %v1729 = vmul.f32 %v156, %v1586
    %v1730 = vmul.f32 %v157, %v1587
    %v1731 = vmul.f32 %v158, %v1575
    %v1732 = vmul.f32 %v159, %v1576
    %v1733 = vmul.f32 %v160, %v1577
    %v1734 = vmul.f32 %v161, %v1578
    %v1735 = vmul.f32 %v162, %v1579
    %v1736 = vmul.f32 %v163, %v1580
    %v1737 = vmul.f32 %v164, %v1581
    %v1738 = vmul.f32 %v165, %v1582
    %v1739 = vmul.f32 %v166, %v1583
    %v1740 = vmul.f32 %v167, %v1584
    %v1741 = vmul.f32 %v168, %v1585
    %v1742 = vmul.f32 %v169, %v1586
    %v1743 = vmul.f32 %v170, %v1587
    %v1744 = vmul.f32 %v171, %v1575
    %v1745 = vmul.f32 %v172, %v1576
    %v1746 = vmul.f32 %v173, %v1577
    %v1747 = vmul.f32 %v174, %v1578
    %v1748 = vmul.f32 %v175, %v1579
    %v1749 = vmul.f32 %v176, %v1580
    %v1750 = vmul.f32 %v177, %v1581
    %v1751 = vmul.f32 %v178, %v1582
    %v1752 = vmul.f32 %v179, %v1583
    %v1753 = vmul.f32 %v180, %v1584
    %v1754 = vmul.f32 %v181, %v1585
    %v1755 = vmul.f32 %v182, %v1586
    %v1756 = vmul.f32 %v183, %v1587
    %v1757 = vmul.f32 %v184, %v1575
    %v1758 = vmul.f32 %v185, %v1576
    %v1759 = vmul.f32 %v186, %v1577
    %v1760 = vmul.f32 %v187, %v1578
    %v1761 = vmul.f32 %v188, %v1579
    %v1762 = vmul.f32 %v189, %v1580
    %v1763 = vmul.f32 %v190, %v1581
    %v1764 = vmul.f32 %v191, %v1582
    %v1765 = vmul.f32 %v192, %v1583
    %v1766 = vmul.f32 %v193, %v1584
    %v1767 = vmul.f32 %v194, %v1585
    %v1768 = vmul.f32 %v195, %v1586
    %v1769 = vmul.f32 %v196, %v1587
    %v1770 = vmul.f32 %v197, %v1575
    %v1771 = vmul.f32 %v198, %v1576
    %v1772 = vmul.f32 %v199, %v1577
    %v1773 = vmul.f32 %v200, %v1578
    %v1774 = vmul.f32 %v201, %v1579
    %v1775 = vmul.f32 %v202, %v1580
    %v1776 = vmul.f32 %v203, %v1581
    %v1777 = vmul.f32 %v204, %v1582
    %v1778 = vmul.f32 %v205, %v1583
    %v1779 = vmul.f32 %v206, %v1584
    %v1780 = vmul.f32 %v207, %v1585
    %v1781 = vmul.f32 %v208, %v1586
    %v1782 = vmul.f32 %v209, %v1587
    %v1783 = vmul.f32 %v210, %v1575
    %v1784 = vmul.f32 %v211, %v1576
    %v1785 = vmul.f32 %v212, %v1577
    %v1786 = vmul.f32 %v213, %v1578
    %v1787 = vmul.f32 %v214, %v1579
    %v1788 = vmul.f32 %v215, %v1580
    %v1789 = vmul.f32 %v216, %v1581
    %v1790 = vmul.f32 %v217, %v1582
    %v1791 = vmul.f32 %v218, %v1583
    %v1792 = vmul.f32 %v219, %v1584
    %v1793 = vmul.f32 %v220, %v1585
    %v1794 = vmul.f32 %v221, %v1586
    %v1795 = vmul.f32 %v222, %v1587
    %v1796 = vmul.f32 %v223, %v1575
    %v1797 = vmul.f32 %v224, %v1576
    %v1798 = vmul.f32 %v225, %v1577
    %v1799 = vmul.f32 %v226, %v1578
    %v1800 = vmul.f32 %v227, %v1579
    %v1801 = vmul.f32 %v228, %v1580
    %v1802 = vmul.f32 %v229, %v1581
    %v1803 = vmul.f32 %v230, %v1582
    %v1804 = vmul.f32 %v231, %v1583
    %v1805 = vmul.f32 %v232, %v1584
    %v1806 = vmul.f32 %v233, %v1585
    %v1807 = vmul.f32 %v234, %v1586
    %v1808 = vmul.f32 %v235, %v1587
    %v1809 = vmul.f32 %v236, %v1575
    %v1810 = vmul.f32 %v237, %v1576
    %v1811 = vmul.f32 %v238, %v1577
    %v1812 = vmul.f32 %v239, %v1578
    %v1813 = vmul.f32 %v240, %v1579
    %v1814 = vmul.f32 %v241, %v1580
    %v1815 = vmul.f32 %v242, %v1581
    %v1816 = vmul.f32 %v243, %v1582
    %v1817 = vmul.f32 %v244, %v1583
    %v1818 = vmul.f32 %v245, %v1584
    %v1819 = vmul.f32 %v246, %v1585
    %v1820 = vmul.f32 %v247, %v1586
    %v1821 = vmul.f32 %v248, %v1587
    %v1822 = vmul.f32 %v249, %v1575
    %v1823 = vmul.f32 %v250, %v1576
    %v1824 = vmul.f32 %v251, %v1577
    %v1825 = vmul.f32 %v252, %v1578
    %v1826 = vmul.f32 %v253, %v1579
    %v1827 = vmul.f32 %v254, %v1580
    %v1828 = vmul.f32 %v255, %v1581
    %v1829 = vmul.f32 %v256, %v1582
    %v1830 = vmul.f32 %v257, %v1583
    %v1831 = vmul.f32 %v258, %v1584
    %v1832 = vmul.f32 %v259, %v1585
    %v1833 = vmul.f32 %v260, %v1586
    %v1834 = vmul.f32 %v261, %v1587
    %v1835 = vmul.f32 %v262, %v1575
    %v1836 = vmul.f32 %v263, %v1576
    %v1837 = vmul.f32 %v264, %v1577
    %v1838 = vmul.f32 %v265, %v1578
    %v1839 = vmul.f32 %v266, %v1579
    %v1840 = vmul.f32 %v267, %v1580
    %v1841 = vmul.f32 %v268, %v1581
    %v1842 = vmul.f32 %v269, %v1582
    %v1843 = vmul.f32 %v270, %v1583
    %v1844 = vmul.f32 %v271, %v1584
    %v1845 = vmul.f32 %v272, %v1585
    %v1846 = vmul.f32 %v273, %v1586
    %v1847 = vmul.f32 %v274, %v1587
    %v1848 = vmul.f32 %v275, %v1575
    %v1849 = vmul.f32 %v276, %v1576
    %v1850 = vmul.f32 %v277, %v1577
    %v1851 = vmul.f32 %v278, %v1578
    %v1852 = vmul.f32 %v279, %v1579
    %v1853 = vmul.f32 %v280, %v1580
    %v1854 = vmul.f32 %v281, %v1581
    %v1855 = vmul.f32 %v282, %v1582
    %v1856 = vmul.f32 %v283, %v1583
    %v1857 = vmul.f32 %v284, %v1584
    %v1858 = vmul.f32 %v285, %v1585
    %v1859 = vmul.f32 %v286, %v1586
    %v1860 = vmul.f32 %v287, %v1587
    %v1861 = vmul.f32 %v288, %v1575
    %v1862 = vmul.f32 %v289, %v1576
    %v1863 = vmul.f32 %v290, %v1577
    %v1864 = vmul.f32 %v291, %v1578
    %v1865 = vmul.f32 %v292, %v1579
    %v1866 = vmul.f32 %v293, %v1580
    %v1867 = vmul.f32 %v294, %v1581
    %v1868 = vmul.f32 %v295, %v1582
    %v1869 = vmul.f32 %v296, %v1583
    %v1870 = vmul.f32 %v297, %v1584
    %v1871 = vmul.f32 %v298, %v1585
    %v1872 = vmul.f32 %v299, %v1586
    %v1873 = vmul.f32 %v300, %v1587
    %v1874 = vmul.f32 %v301, %v1575
    %v1875 = vmul.f32 %v302, %v1576
    %v1876 = vmul.f32 %v303, %v1577
    %v1877 = vmul.f32 %v304, %v1578
    %v1878 = vmul.f32 %v305, %v1579
    %v1879 = vmul.f32 %v306, %v1580
    %v1880 = vmul.f32 %v307, %v1581
    %v1881 = vmul.f32 %v308, %v1582
    %v1882 = vmul.f32 %v309, %v1583
    %v1883 = vmul.f32 %v310, %v1584
    %v1884 = vmul.f32 %v311, %v1585
    %v1885 = vmul.f32 %v312, %v1586
    %v1886 = vmul.f32 %v313, %v1587
    %v1887 = vmul.f32 %v314, %v1575
    %v1888 = vmul.f32 %v315, %v1576
    %v1889 = vmul.f32 %v316, %v1577
    %v1890 = vmul.f32 %v317, %v1578
    %v1891 = vmul.f32 %v318, %v1579
    %v1892 = vmul.f32 %v319, %v1580
    %v1893 = vmul.f32 %v320, %v1581
    %v1894 = vmul.f32 %v321, %v1582
    %v1895 = vmul.f32 %v322, %v1583
    %v1896 = vmul.f32 %v323, %v1584
    %v1897 = vmul.f32 %v324, %v1585
    %v1898 = vmul.f32 %v325, %v1586
    %v1899 = vmul.f32 %v326, %v1587
    %v1900 = vmul.f32 %v327, %v1575
    %v1901 = vmul.f32 %v328, %v1576
    %v1902 = vmul.f32 %v329, %v1577
    %v1903 = vmul.f32 %v330, %v1578
    %v1904 = vmul.f32 %v331, %v1579
    %v1905 = vmul.f32 %v332, %v1580
    %v1906 = vmul.f32 %v333, %v1581
    %v1907 = vmul.f32 %v334, %v1582
    %v1908 = vmul.f32 %v335, %v1583
    %v1909 = vmul.f32 %v336, %v1584
    %v1910 = vmul.f32 %v337, %v1585
    %v1911 = vmul.f32 %v338, %v1586
    %v1912 = vmul.f32 %v339, %v1587
    %v1913 = vmul.f32 %v340, %v1575
    %v1914 = vmul.f32 %v341, %v1576
    %v1915 = vmul.f32 %v342, %v1577
    %v1916 = vmul.f32 %v343, %v1578
    %v1917 = vmul.f32 %v344, %v1579
    %v1918 = vmul.f32 %v345, %v1580
    %v1919 = vmul.f32 %v346, %v1581
    %v1920 = vmul.f32 %v347, %v1582
    %v1921 = vmul.f32 %v348, %v1583
    %v1922 = vmul.f32 %v349, %v1584
    %v1923 = vmul.f32 %v350, %v1585
    %v1924 = vmul.f32 %v351, %v1586
    %v1925 = vmul.f32 %v352, %v1587
    %v1926 = vmul.f32 %v353, %v1575
    %v1927 = vmul.f32 %v354, %v1576
    %v1928 = vmul.f32 %v355, %v1577
    %v1929 = vmul.f32 %v356, %v1578
    %v1930 = vmul.f32 %v357, %v1579
    %v1931 = vmul.f32 %v358, %v1580
    %v1932 = vmul.f32 %v359, %v1581
    %v1933 = vmul.f32 %v360, %v1582
    %v1934 = vmul.f32 %v361, %v1583
    %v1935 = vmul.f32 %v362, %v1584
    %v1936 = vmul.f32 %v363, %v1585
    %v1937 = vmul.f32 %v364, %v1586
    %v1938 = vmul.f32 %v365, %v1587
    %v1939 = vmul.f32 %v366, %v1575
    %v1940 = vmul.f32 %v367, %v1576
    %v1941 = vmul.f32 %v368, %v1577
    %v1942 = vmul.f32 %v369, %v1578
    %v1943 = vmul.f32 %v370, %v1579
    %v1944 = vmul.f32 %v371, %v1580
    %v1945 = vmul.f32 %v372, %v1581
    %v1946 = vmul.f32 %v373, %v1582
    %v1947 = vmul.f32 %v374, %v1583
    %v1948 = vmul.f32 %v375, %v1584
    %v1949 = vmul.f32 %v376, %v1585
    %v1950 = vmul.f32 %v377, %v1586
    %v1951 = vmul.f32 %v378, %v1587
    %v1952 = vmul.f32 %v379, %v1575
    %v1953 = vmul.f32 %v380, %v1576
    %v1954 = vmul.f32 %v381, %v1577
    %v1955 = vmul.f32 %v382, %v1578
    %v1956 = vmul.f32 %v383, %v1579
    %v1957 = vmul.f32 %v384, %v1580
    %v1958 = vmul.f32 %v385, %v1581
    %v1959 = vmul.f32 %v386, %v1582
    %v1960 = vmul.f32 %v387, %v1583
    %v1961 = vmul.f32 %v388, %v1584
    %v1962 = vmul.f32 %v389, %v1585
    %v1963 = vmul.f32 %v390, %v1586
    %v1964 = vmul.f32 %v391, %v1587
    %v1965 = vmul.f32 %v392, %v1575
    %v1966 = vmul.f32 %v393, %v1576
    %v1967 = vmul.f32 %v394, %v1577
    %v1968 = vmul.f32 %v395, %v1578
    %v1969 = vmul.f32 %v396, %v1579
    %v1970 = vmul.f32 %v397, %v1580
    %v1971 = vmul.f32 %v398, %v1581
    %v1972 = vmul.f32 %v399, %v1582
    %v1973 = vmul.f32 %v400, %v1583
    %v1974 = vmul.f32 %v401, %v1584
    %v1975 = vmul.f32 %v402, %v1585
    %v1976 = vmul.f32 %v403, %v1586
    %v1977 = vmul.f32 %v404, %v1587
    %v1978 = vmul.f32 %v405, %v1575
    %v1979 = vmul.f32 %v406, %v1576
    %v1980 = vmul.f32 %v407, %v1577
    %v1981 = vmul.f32 %v408, %v1578
    %v1982 = vmul.f32 %v409, %v1579
    %v1983 = vmul.f32 %v410, %v1580
    %v1984 = vmul.f32 %v411, %v1581
    %v1985 = vmul.f32 %v412, %v1582
    %v1986 = vmul.f32 %v413, %v1583
    %v1987 = vmul.f32 %v414, %v1584
    %v1988 = vmul.f32 %v415, %v1585
    %v1989 = vmul.f32 %v416, %v1586
    %v1990 = vmul.f32 %v417, %v1587
    %v1991 = vmul.f32 %v418, %v1575
    %v1992 = vmul.f32 %v419, %v1576
    %v1993 = vmul.f32 %v420, %v1577
    %v1994 = vmul.f32 %v421, %v1578
    %v1995 = vmul.f32 %v422, %v1579
    %v1996 = vmul.f32 %v423, %v1580
    %v1997 = vmul.f32 %v424, %v1581
    %v1998 = vmul.f32 %v425, %v1582
    %v1999 = vmul.f32 %v426, %v1583
    %v2000 = vmul.f32 %v427, %v1584
    %v2001 = vmul.f32 %v428, %v1585
    %v2002 = vmul.f32 %v429, %v1586
    %v2003 = vmul.f32 %v430, %v1587
    %v2004 = vmul.f32 %v431, %v1575
    %v2005 = vmul.f32 %v432, %v1576
    %v2006 = vmul.f32 %v433, %v1577
    %v2007 = vmul.f32 %v434, %v1578
    %v2008 = vmul.f32 %v435, %v1579
    %v2009 = vmul.f32 %v436, %v1580
    %v2010 = vmul.f32 %v437, %v1581
    %v2011 = vmul.f32 %v438, %v1582
    %v2012 = vmul.f32 %v439, %v1583
    %v2013 = vmul.f32 %v440, %v1584
    %v2014 = vmul.f32 %v441, %v1585
    %v2015 = vmul.f32 %v442, %v1586
    %v2016 = vmul.f32 %v443, %v1587
    %v2017 = vmul.f32 %v444, %v1575
    %v2018 = vmul.f32 %v445, %v1576
    %v2019 = vmul.f32 %v446, %v1577
    %v2020 = vmul.f32 %v447, %v1578
    %v2021 = vmul.f32 %v448, %v1579
    %v2022 = vmul.f32 %v449, %v1580
    %v2023 = vmul.f32 %v450, %v1581
    %v2024 = vmul.f32 %v451, %v1582
    %v2025 = vmul.f32 %v452, %v1583
    %v2026 = vmul.f32 %v453, %v1584
    %v2027 = vmul.f32 %v454, %v1585
    %v2028 = vmul.f32 %v455, %v1586
    %v2029 = vmul.f32 %v456, %v1587
    %v2030 = vmul.f32 %v457, %v1575
    %v2031 = vmul.f32 %v458, %v1576
    %v2032 = vmul.f32 %v459, %v1577
    %v2033 = vmul.f32 %v460, %v1578
    %v2034 = vmul.f32 %v461, %v1579
    %v2035 = vmul.f32 %v462, %v1580
    %v2036 = vmul.f32 %v463, %v1581
    %v2037 = vmul.f32 %v464, %v1582
    %v2038 = vmul.f32 %v465, %v1583
    %v2039 = vmul.f32 %v466, %v1584
    %v2040 = vmul.f32 %v467, %v1585
    %v2041 = vmul.f32 %v468, %v1586
    %v2042 = vmul.f32 %v469, %v1587
    %v2043 = vmul.f32 %v470, %v1575
    %v2044 = vmul.f32 %v471, %v1576
    %v2045 = vmul.f32 %v472, %v1577
    %v2046 = vmul.f32 %v473, %v1578
    %v2047 = vmul.f32 %v474, %v1579
    %v2048 = vmul.f32 %v475, %v1580
    %v2049 = vmul.f32 %v476, %v1581
    %v2050 = vmul.f32 %v477, %v1582
    %v2051 = vmul.f32 %v478, %v1583
    %v2052 = vmul.f32 %v479, %v1584
    %v2053 = vmul.f32 %v480, %v1585
    %v2054 = vmul.f32 %v481, %v1586
    %v2055 = vmul.f32 %v482, %v1587
    %v2056 = vmul.f32 %v483, %v1575
    %v2057 = vmul.f32 %v484, %v1576
    %v2058 = vmul.f32 %v485, %v1577
    %v2059 = vmul.f32 %v486, %v1578
    %v2060 = vmul.f32 %v487, %v1579
    %v2061 = vmul.f32 %v488, %v1580
    %v2062 = vmul.f32 %v489, %v1581
    %v2063 = vmul.f32 %v490, %v1582
    %v2064 = vmul.f32 %v491, %v1583
    %v2065 = vmul.f32 %v492, %v1584
    %v2066 = vmul.f32 %v493, %v1585
    %v2067 = vmul.f32 %v494, %v1586
    %v2068 = vmul.f32 %v495, %v1587
    %v2069 = vmul.f32 %v496, %v1575
    %v2070 = vmul.f32 %v497, %v1576
    %v2071 = vmul.f32 %v498, %v1577
    %v2072 = vmul.f32 %v499, %v1578
    %v2073 = vmul.f32 %v500, %v1579
    %v2074 = vmul.f32 %v501, %v1580
    %v2075 = vmul.f32 %v502, %v1581
    %v2076 = vmul.f32 %v503, %v1582
    %v2077 = vmul.f32 %v504, %v1583
    %v2078 = vmul.f32 %v505, %v1584
    %v2079 = vmul.f32 %v506, %v1585
    %v2080 = vmul.f32 %v507, %v1586
    %v2081 = vmul.f32 %v508, %v1587
    %v2082 = vmul.f32 %v509, %v1575
    %v2083 = vmul.f32 %v510, %v1576
    %v2084 = vmul.f32 %v511, %v1577
    %v2085 = vmul.f32 %v512, %v1578
    %v2086 = vmul.f32 %v513, %v1579
    %v2087 = vmul.f32 %v514, %v1580
    %v2088 = vmul.f32 %v515, %v1581
    %v2089 = vmul.f32 %v516, %v1582
    %v2090 = vmul.f32 %v517, %v1583
    %v2091 = vmul.f32 %v518, %v1584
    %v2092 = vmul.f32 %v519, %v1585
    %v2093 = vmul.f32 %v520, %v1586
    %v2094 = vmul.f32 %v521, %v1587
    %v2095 = vmul.f32 %v522, %v1575
    %v2096 = vmul.f32 %v523, %v1576
    %v2097 = vmul.f32 %v524, %v1577
    %v2098 = vmul.f32 %v525, %v1578
    %v2099 = vmul.f32 %v526, %v1579
    %v2100 = vmul.f32 %v527, %v1580
    %v2101 = vmul.f32 %v528, %v1581
    %v2102 = vmul.f32 %v529, %v1582
    %v2103 = vmul.f32 %v530, %v1583
    %v2104 = vmul.f32 %v531, %v1584
    %v2105 = vmul.f32 %v532, %v1585
    %v2106 = vmul.f32 %v533, %v1586
    %v2107 = vmul.f32 %v534, %v1587
    %v2108 = vmul.f32 %v535, %v1575
    %v2109 = vmul.f32 %v536, %v1576
    %v2110 = vmul.f32 %v537, %v1577
    %v2111 = vmul.f32 %v538, %v1578
    %v2112 = vmul.f32 %v539, %v1579
    %v2113 = vmul.f32 %v540, %v1580
    %v2114 = vmul.f32 %v541, %v1581
    %v2115 = vmul.f32 %v542, %v1582
    %v2116 = vmul.f32 %v543, %v1583
    %v2117 = vmul.f32 %v544, %v1584
    %v2118 = vmul.f32 %v545, %v1585
    %v2119 = vmul.f32 %v546, %v1586
    %v2120 = vmul.f32 %v547, %v1587
    %v2121 = vmul.f32 %v548, %v1575
    %v2122 = vmul.f32 %v549, %v1576
    %v2123 = vmul.f32 %v550, %v1577
    %v2124 = vmul.f32 %v551, %v1578
    %v2125 = vmul.f32 %v552, %v1579
    %v2126 = vmul.f32 %v553, %v1580
    %v2127 = vmul.f32 %v554, %v1581
    %v2128 = vmul.f32 %v555, %v1582
    %v2129 = vmul.f32 %v556, %v1583
    %v2130 = vmul.f32 %v557, %v1584
    %v2131 = vmul.f32 %v558, %v1585
    %v2132 = vmul.f32 %v559, %v1586
    %v2133 = vmul.f32 %v560, %v1587
    %v2134 = vmul.f32 %v561, %v1575
    %v2135 = vmul.f32 %v562, %v1576
    %v2136 = vmul.f32 %v563, %v1577
    %v2137 = vmul.f32 %v564, %v1578
    %v2138 = vmul.f32 %v565, %v1579
    %v2139 = vmul.f32 %v566, %v1580
    %v2140 = vmul.f32 %v567, %v1581
    %v2141 = vmul.f32 %v568, %v1582
    %v2142 = vmul.f32 %v569, %v1583
    %v2143 = vmul.f32 %v570, %v1584
    %v2144 = vmul.f32 %v571, %v1585
    %v2145 = vmul.f32 %v572, %v1586
    %v2146 = vmul.f32 %v573, %v1587
    %v2147 = vmul.f32 %v574, %v1575
    %v2148 = vmul.f32 %v575, %v1576
    %v2149 = vmul.f32 %v576, %v1577
    %v2150 = vmul.f32 %v577, %v1578
    %v2151 = vmul.f32 %v578, %v1579
    %v2152 = vmul.f32 %v579, %v1580
    %v2153 = vmul.f32 %v580, %v1581
    %v2154 = vmul.f32 %v581, %v1582
    %v2155 = vmul.f32 %v582, %v1583
    %v2156 = vmul.f32 %v583, %v1584
    %v2157 = vmul.f32 %v584, %v1585
    %v2158 = vmul.f32 %v585, %v1586
    %v2159 = vmul.f32 %v586, %v1587
    %v2160 = vmul.f32 %v587, %v1575
    %v2161 = vmul.f32 %v588, %v1576
    %v2162 = vmul.f32 %v589, %v1577
    %v2163 = vmul.f32 %v590, %v1578
    %v2164 = vmul.f32 %v591, %v1579
    %v2165 = vmul.f32 %v592, %v1580
    %v2166 = vmul.f32 %v593, %v1581
    %v2167 = vmul.f32 %v594, %v1582
    %v2168 = vmul.f32 %v595, %v1583
    %v2169 = vmul.f32 %v596, %v1584
    %v2170 = vmul.f32 %v597, %v1585
    %v2171 = vmul.f32 %v598, %v1586
    %v2172 = vmul.f32 %v599, %v1587
    %v2173 = vmul.f32 %v600, %v1575
    %v2174 = vmul.f32 %v601, %v1576
    %v2175 = vmul.f32 %v602, %v1577
    %v2176 = vmul.f32 %v603, %v1578
    %v2177 = vmul.f32 %v604, %v1579
    %v2178 = vmul.f32 %v605, %v1580
    %v2179 = vmul.f32 %v606, %v1581
    %v2180 = vmul.f32 %v607, %v1582
    %v2181 = vmul.f32 %v608, %v1583
    %v2182 = vmul.f32 %v609, %v1584
    %v2183 = vmul.f32 %v610, %v1585
    %v2184 = vmul.f32 %v611, %v1586
    %v2185 = vmul.f32 %v612, %v1587
    %v2186 = vmul.f32 %v613, %v1575
    %v2187 = vmul.f32 %v614, %v1576
    %v2188 = vmul.f32 %v615, %v1577
    %v2189 = vmul.f32 %v616, %v1578
    %v2190 = vmul.f32 %v617, %v1579
    %v2191 = vmul.f32 %v618, %v1580
    %v2192 = vmul.f32 %v619, %v1581
    %v2193 = vmul.f32 %v620, %v1582
    %v2194 = vmul.f32 %v621, %v1583
    %v2195 = vmul.f32 %v622, %v1584
    %v2196 = vmul.f32 %v623, %v1585
    %v2197 = vmul.f32 %v624, %v1586
    %v2198 = vmul.f32 %v625, %v1587
    %v2199 = vmul.f32 %v626, %v1575
    %v2200 = vmul.f32 %v627, %v1576
    %v2201 = vmul.f32 %v628, %v1577
    %v2202 = vmul.f32 %v629, %v1578
    %v2203 = vmul.f32 %v630, %v1579
    %v2204 = vmul.f32 %v631, %v1580
    %v2205 = vmul.f32 %v632, %v1581
    %v2206 = vmul.f32 %v633, %v1582
    %v2207 = vmul.f32 %v634, %v1583
    %v2208 = vmul.f32 %v635, %v1584
    %v2209 = vmul.f32 %v636, %v1585
    %v2210 = vmul.f32 %v637, %v1586
    %v2211 = vmul.f32 %v638, %v1587
    %v2212 = vmul.f32 %v639, %v1575
    %v2213 = vmul.f32 %v640, %v1576
    %v2214 = vmul.f32 %v641, %v1577
    %v2215 = vmul.f32 %v642, %v1578
    %v2216 = vmul.f32 %v643, %v1579
    %v2217 = vmul.f32 %v644, %v1580
    %v2218 = vmul.f32 %v645, %v1581
    %v2219 = vmul.f32 %v646, %v1582
    %v2220 = vmul.f32 %v647, %v1583
    %v2221 = vmul.f32 %v648, %v1584
    %v2222 = vmul.f32 %v649, %v1585
    %v2223 = vmul.f32 %v650, %v1586
    %v2224 = vmul.f32 %v651, %v1587
    %v2225 = vmul.f32 %v652, %v1575
    %v2226 = vmul.f32 %v653, %v1576
    %v2227 = vmul.f32 %v654, %v1577
    %v2228 = vmul.f32 %v655, %v1578
    %v2229 = vmul.f32 %v656, %v1579
    %v2230 = vmul.f32 %v657, %v1580
    %v2231 = vmul.f32 %v658, %v1581
    %v2232 = vmul.f32 %v659, %v1582
    %v2233 = vmul.f32 %v660, %v1583
    %v2234 = vmul.f32 %v661, %v1584
    %v2235 = vmul.f32 %v662, %v1585
    %v2236 = vmul.f32 %v663, %v1586
    %v2237 = vmul.f32 %v664, %v1587
    %v2238 = vmul.f32 %v665, %v1575
    %v2239 = vmul.f32 %v666, %v1576
    %v2240 = vmul.f32 %v667, %v1577
    %v2241 = vmul.f32 %v668, %v1578
    %v2242 = vmul.f32 %v669, %v1579
    %v2243 = vmul.f32 %v670, %v1580
    %v2244 = vmul.f32 %v671, %v1581
    %v2245 = vmul.f32 %v672, %v1582
    %v2246 = vmul.f32 %v673, %v1583
    %v2247 = vmul.f32 %v674, %v1584
    %v2248 = vmul.f32 %v675, %v1585
    %v2249 = vmul.f32 %v676, %v1586
    %v2250 = vmul.f32 %v677, %v1587
    %v2251 = vmul.f32 %v678, %v1575
    %v2252 = vmul.f32 %v679, %v1576
    %v2253 = vmul.f32 %v680, %v1577
    %v2254 = vmul.f32 %v681, %v1578
    %v2255 = vmul.f32 %v682, %v1579
    %v2256 = vmul.f32 %v683, %v1580
    %v2257 = vmul.f32 %v684, %v1581
    %v2258 = vmul.f32 %v685, %v1582
    %v2259 = vmul.f32 %v686, %v1583
    %v2260 = vmul.f32 %v687, %v1584
    %v2261 = vmul.f32 %v688, %v1585
    %v2262 = vmul.f32 %v689, %v1586
    %v2263 = vmul.f32 %v690, %v1587
    %v2264 = vmul.f32 %v691, %v1575
    %v2265 = vmul.f32 %v692, %v1576
    %v2266 = vmul.f32 %v693, %v1577
    %v2267 = vmul.f32 %v694, %v1578
    %v2268 = vmul.f32 %v695, %v1579
    %v2269 = vmul.f32 %v696, %v1580
    %v2270 = vmul.f32 %v697, %v1581
    %v2271 = vmul.f32 %v698, %v1582
    %v2272 = vmul.f32 %v699, %v1583
    %v2273 = vmul.f32 %v700, %v1584
    %v2274 = vmul.f32 %v701, %v1585
    %v2275 = vmul.f32 %v702, %v1586
    %v2276 = vmul.f32 %v703, %v1587
    %v2277 = vmul.f32 %v704, %v1575
    %v2278 = vmul.f32 %v705, %v1576
    %v2279 = vmul.f32 %v706, %v1577
    %v2280 = vmul.f32 %v707, %v1578
    %v2281 = vmul.f32 %v708, %v1579
    %v2282 = vmul.f32 %v709, %v1580
    %v2283 = vmul.f32 %v710, %v1581
    %v2284 = vmul.f32 %v711, %v1582
    %v2285 = vmul.f32 %v712, %v1583
    %v2286 = vmul.f32 %v713, %v1584
    %v2287 = vmul.f32 %v714, %v1585
    %v2288 = vmul.f32 %v715, %v1586
    %v2289 = vmul.f32 %v716, %v1587
    %v2290 = vmul.f32 %v717, %v1575
    %v2291 = vmul.f32 %v718, %v1576
    %v2292 = vmul.f32 %v719, %v1577
    %v2293 = vmul.f32 %v720, %v1578
    %v2294 = vmul.f32 %v721, %v1579
    %v2295 = vmul.f32 %v722, %v1580
    %v2296 = vmul.f32 %v723, %v1581
    %v2297 = vmul.f32 %v724, %v1582
    %v2298 = vmul.f32 %v725, %v1583
    %v2299 = vmul.f32 %v726, %v1584
    %v2300 = vmul.f32 %v727, %v1585
    %v2301 = vmul.f32 %v728, %v1586
    %v2302 = vmul.f32 %v729, %v1587
    %v2303 = vmul.f32 %v730, %v1575
    %v2304 = vmul.f32 %v731, %v1576
    %v2305 = vmul.f32 %v732, %v1577
    %v2306 = vmul.f32 %v733, %v1578
    %v2307 = vmul.f32 %v734, %v1579
    %v2308 = vmul.f32 %v735, %v1580
    %v2309 = vmul.f32 %v736, %v1581
    %v2310 = vmul.f32 %v737, %v1582
    %v2311 = vmul.f32 %v738, %v1583
    %v2312 = vmul.f32 %v739, %v1584
    %v2313 = vmul.f32 %v740, %v1585
    %v2314 = vmul.f32 %v741, %v1586
    %v2315 = vmul.f32 %v742, %v1587
    %v2316 = vmul.f32 %v743, %v1575
    %v2317 = vmul.f32 %v744, %v1576
    %v2318 = vmul.f32 %v745, %v1577
    %v2319 = vmul.f32 %v746, %v1578
    %v2320 = vmul.f32 %v747, %v1579
    %v2321 = vmul.f32 %v748, %v1580
    %v2322 = vmul.f32 %v749, %v1581
    %v2323 = vmul.f32 %v750, %v1582
    %v2324 = vmul.f32 %v751, %v1583
    %v2325 = vmul.f32 %v752, %v1584
    %v2326 = vmul.f32 %v753, %v1585
    %v2327 = vmul.f32 %v754, %v1586
    %v2328 = vmul.f32 %v755, %v1587
    %v2329 = vmul.f32 %v756, %v1575
    %v2330 = vmul.f32 %v757, %v1576
    %v2331 = vmul.f32 %v758, %v1577
    %v2332 = vmul.f32 %v759, %v1578
    %v2333 = vmul.f32 %v760, %v1579
    %v2334 = vmul.f32 %v761, %v1580
    %v2335 = vmul.f32 %v762, %v1581
    %v2336 = vmul.f32 %v763, %v1582
    %v2337 = vmul.f32 %v764, %v1583
    %v2338 = vmul.f32 %v765, %v1584
    %v2339 = vmul.f32 %v766, %v1585
    %v2340 = vmul.f32 %v767, %v1586
    %v2341 = vmul.f32 %v768, %v1587
    %v2342 = vmul.f32 %v769, %v1575
    %v2343 = vmul.f32 %v770, %v1576
    %v2344 = vmul.f32 %v771, %v1577
    %v2345 = vmul.f32 %v772, %v1578
    %v2346 = vmul.f32 %v773, %v1579
    %v2347 = vmul.f32 %v774, %v1580
    %v2348 = vmul.f32 %v775, %v1581
    %v2349 = vmul.f32 %v776, %v1582
    %v2350 = vmul.f32 %v777, %v1583
    %v2351 = vmul.f32 %v778, %v1584
    %v2352 = vmul.f32 %v779, %v1585
    %v2353 = vmul.f32 %v780, %v1586
    %v2354 = vmul.f32 %v781, %v1587
    %v2355 = vmul.f32 %v782, %v1575
    %v2356 = vmul.f32 %v783, %v1576
    %v2357 = vmul.f32 %v784, %v1577
    %v2358 = vmul.f32 %v785, %v1578
    %v2359 = vmul.f32 %v786, %v1579
    %v2360 = vmul.f32 %v787, %v1580
    %v2361 = vmul.f32 %v788, %v1581
    %v2362 = vmul.f32 %v789, %v1582
    %v2363 = vmul.f32 %v790, %v1583
    %v2364 = vmul.f32 %v791, %v1584
    %v2365 = vmul.f32 %v792, %v1585
    %v2366 = vmul.f32 %v793, %v1586
    %v2367 = vmul.f32 %v794, %v1587
    %v2368 = vmul.f32 %v795, %v1575
    %v2369 = vmul.f32 %v796, %v1576
    %v2370 = vmul.f32 %v797, %v1577
    %v2371 = vmul.f32 %v798, %v1578
    %v2372 = vmul.f32 %v799, %v1579
    %v2373 = vmul.f32 %v800, %v1580
    %v2374 = vmul.f32 %v801, %v1581
    %v2375 = vmul.f32 %v802, %v1582
    %v2376 = vmul.f32 %v803, %v1583
    %v2377 = vmul.f32 %v804, %v1584
    %v2378 = vmul.f32 %v805, %v1585
    %v2379 = vmul.f32 %v806, %v1586
    %v2380 = vmul.f32 %v807, %v1587
    %v2381 = vmul.f32 %v808, %v1575
    %v2382 = vmul.f32 %v809, %v1576
    %v2383 = vmul.f32 %v810, %v1577
    %v2384 = vmul.f32 %v811, %v1578
    %v2385 = vmul.f32 %v812, %v1579
    %v2386 = vmul.f32 %v813, %v1580
    %v2387 = vmul.f32 %v814, %v1581
    %v2388 = vmul.f32 %v815, %v1582
    %v2389 = vmul.f32 %v816, %v1583
    %v2390 = vmul.f32 %v817, %v1584
    %v2391 = vmul.f32 %v818, %v1585
    %v2392 = vmul.f32 %v819, %v1586
    %v2393 = vmul.f32 %v820, %v1587
    %v2394 = vmul.f32 %v821, %v1575
    %v2395 = vmul.f32 %v822, %v1576
    %v2396 = vmul.f32 %v823, %v1577
    %v2397 = vmul.f32 %v824, %v1578
    %v2398 = vmul.f32 %v825, %v1579
    %v2399 = vmul.f32 %v826, %v1580
    %v2400 = vmul.f32 %v827, %v1581
    %v2401 = vmul.f32 %v828, %v1582
    %v2402 = vmul.f32 %v829, %v1583
    %v2403 = vmul.f32 %v830, %v1584
    %v2404 = vmul.f32 %v831, %v1585
    %v2405 = vmul.f32 %v832, %v1586
    %v2406 = vmul.f32 %v833, %v1587
    %v2407 = vmul.f32 %v834, %v1575
    %v2408 = vmul.f32 %v835, %v1576
    %v2409 = vmul.f32 %v836, %v1577
    %v2410 = vmul.f32 %v837, %v1578
    %v2411 = vmul.f32 %v838, %v1579
    %v2412 = vmul.f32 %v839, %v1580
    %v2413 = vmul.f32 %v840, %v1581
    %v2414 = vmul.f32 %v841, %v1582
    %v2415 = vmul.f32 %v842, %v1583
    %v2416 = vmul.f32 %v843, %v1584
    %v2417 = vmul.f32 %v844, %v1585
    %v2418 = vmul.f32 %v845, %v1586
    %v2419 = vmul.f32 %v846, %v1587
    %v2420 = vmul.f32 %v847, %v1575
    %v2421 = vmul.f32 %v848, %v1576
    %v2422 = vmul.f32 %v849, %v1577
    %v2423 = vmul.f32 %v850, %v1578
    %v2424 = vmul.f32 %v851, %v1579
    %v2425 = vmul.f32 %v852, %v1580
    %v2426 = vmul.f32 %v853, %v1581
    %v2427 = vmul.f32 %v854, %v1582
    %v2428 = vmul.f32 %v855, %v1583
    %v2429 = vmul.f32 %v856, %v1584
    %v2430 = vmul.f32 %v857, %v1585
    %v2431 = vmul.f32 %v858, %v1586
    %v2432 = vmul.f32 %v859, %v1587
    %v2433 = vmul.f32 %v860, %v1575
    %v2434 = vmul.f32 %v861, %v1576
    %v2435 = vmul.f32 %v862, %v1577
    %v2436 = vmul.f32 %v863, %v1578
    %v2437 = vmul.f32 %v864, %v1579
    %v2438 = vmul.f32 %v865, %v1580
    %v2439 = vmul.f32 %v866, %v1581
    %v2440 = vmul.f32 %v867, %v1582
    %v2441 = vmul.f32 %v868, %v1583
    %v2442 = vmul.f32 %v869, %v1584
    %v2443 = vmul.f32 %v870, %v1585
    %v2444 = vmul.f32 %v871, %v1586
    %v2445 = vmul.f32 %v872, %v1587
    %v2446 = vmul.f32 %v873, %v1575
    %v2447 = vmul.f32 %v874, %v1576
    %v2448 = vmul.f32 %v875, %v1577
    %v2449 = vmul.f32 %v876, %v1578
    %v2450 = vmul.f32 %v877, %v1579
    %v2451 = vmul.f32 %v878, %v1580
    %v2452 = vmul.f32 %v879, %v1581
    %v2453 = vmul.f32 %v880, %v1582
    %v2454 = vmul.f32 %v881, %v1583
    %v2455 = vmul.f32 %v882, %v1584
    %v2456 = vmul.f32 %v883, %v1585
    %v2457 = vmul.f32 %v884, %v1586
    %v2458 = vmul.f32 %v885, %v1587
    %v2459 = vmul.f32 %v886, %v1575
    %v2460 = vmul.f32 %v887, %v1576
    %v2461 = vmul.f32 %v888, %v1577
    %v2462 = vmul.f32 %v889, %v1578
    %v2463 = vmul.f32 %v890, %v1579
    %v2464 = vmul.f32 %v891, %v1580
    %v2465 = vmul.f32 %v892, %v1581
    %v2466 = vmul.f32 %v893, %v1582
    %v2467 = vmul.f32 %v894, %v1583
    %v2468 = vmul.f32 %v895, %v1584
    %v2469 = vmul.f32 %v896, %v1585
    %v2470 = vmul.f32 %v897, %v1586
    %v2471 = vmul.f32 %v898, %v1587
    %v2472 = vmul.f32 %v899, %v1575
    %v2473 = vmul.f32 %v900, %v1576
    %v2474 = vmul.f32 %v901, %v1577
    %v2475 = vmul.f32 %v902, %v1578
    %v2476 = vmul.f32 %v903, %v1579
    %v2477 = vmul.f32 %v904, %v1580
    %v2478 = vmul.f32 %v905, %v1581
    %v2479 = vmul.f32 %v906, %v1582
    %v2480 = vmul.f32 %v907, %v1583
    %v2481 = vmul.f32 %v908, %v1584
    %v2482 = vmul.f32 %v909, %v1585
    %v2483 = vmul.f32 %v910, %v1586
    %v2484 = vmul.f32 %v911, %v1587
    %v2485 = vmul.f32 %v912, %v1575
    %v2486 = vmul.f32 %v913, %v1576
    %v2487 = vmul.f32 %v914, %v1577
    %v2488 = vmul.f32 %v915, %v1578
    %v2489 = vmul.f32 %v916, %v1579
    %v2490 = vmul.f32 %v917, %v1580
    %v2491 = vmul.f32 %v918, %v1581
    %v2492 = vmul.f32 %v919, %v1582
    %v2493 = vmul.f32 %v920, %v1583
    %v2494 = vmul.f32 %v921, %v1584
    %v2495 = vmul.f32 %v922, %v1585
    %v2496 = vmul.f32 %v923, %v1586
    %v2497 = vmul.f32 %v924, %v1587
    %v2498 = vmul.f32 %v925, %v1575
    %v2499 = vmul.f32 %v926, %v1576
    %v2500 = vmul.f32 %v927, %v1577
    %v2501 = vmul.f32 %v928, %v1578
    %v2502 = vmul.f32 %v929, %v1579
    %v2503 = vmul.f32 %v930, %v1580
    %v2504 = vmul.f32 %v931, %v1581
    %v2505 = vmul.f32 %v932, %v1582
    %v2506 = vmul.f32 %v933, %v1583
    %v2507 = vmul.f32 %v934, %v1584
    %v2508 = vmul.f32 %v935, %v1585
    %v2509 = vmul.f32 %v936, %v1586
    %v2510 = vmul.f32 %v937, %v1587
    %v2511 = vmul.f32 %v938, %v1575
    %v2512 = vmul.f32 %v939, %v1576
    %v2513 = vmul.f32 %v940, %v1577
    %v2514 = vmul.f32 %v941, %v1578
    %v2515 = vmul.f32 %v942, %v1579
    %v2516 = vmul.f32 %v943, %v1580
    %v2517 = vmul.f32 %v944, %v1581
    %v2518 = vmul.f32 %v945, %v1582
    %v2519 = vmul.f32 %v946, %v1583
    %v2520 = vmul.f32 %v947, %v1584
    %v2521 = vmul.f32 %v948, %v1585
    %v2522 = vmul.f32 %v949, %v1586
    %v2523 = vmul.f32 %v950, %v1587
    %v2524 = vmul.f32 %v951, %v1575
    %v2525 = vmul.f32 %v952, %v1576
    %v2526 = vmul.f32 %v953, %v1577
    %v2527 = vmul.f32 %v954, %v1578
    %v2528 = vmul.f32 %v955, %v1579
    %v2529 = vmul.f32 %v956, %v1580
    %v2530 = vmul.f32 %v957, %v1581
    %v2531 = vmul.f32 %v958, %v1582
    %v2532 = vmul.f32 %v959, %v1583
    %v2533 = vmul.f32 %v960, %v1584
    %v2534 = vmul.f32 %v961, %v1585
    %v2535 = vmul.f32 %v962, %v1586
    %v2536 = vmul.f32 %v963, %v1587
    %v2537 = vmul.f32 %v964, %v1575
    %v2538 = vmul.f32 %v965, %v1576
    %v2539 = vmul.f32 %v966, %v1577
    %v2540 = vmul.f32 %v967, %v1578
    %v2541 = vmul.f32 %v968, %v1579
    %v2542 = vmul.f32 %v969, %v1580
    %v2543 = vmul.f32 %v970, %v1581
    %v2544 = vmul.f32 %v971, %v1582
    %v2545 = vmul.f32 %v972, %v1583
    %v2546 = vmul.f32 %v973, %v1584
    %v2547 = vmul.f32 %v974, %v1585
    %v2548 = vmul.f32 %v975, %v1586
    %v2549 = vmul.f32 %v976, %v1587
    %v2550 = vmul.f32 %v977, %v1575
    %v2551 = vmul.f32 %v978, %v1576
    %v2552 = vmul.f32 %v979, %v1577
    %v2553 = vmul.f32 %v980, %v1578
    %v2554 = vmul.f32 %v981, %v1579
    %v2555 = vmul.f32 %v982, %v1580
    %v2556 = vmul.f32 %v983, %v1581
    %v2557 = vmul.f32 %v984, %v1582
    %v2558 = vmul.f32 %v985, %v1583
    %v2559 = vmul.f32 %v986, %v1584
    %v2560 = vmul.f32 %v987, %v1585
    %v2561 = vmul.f32 %v988, %v1586
    %v2562 = vmul.f32 %v989, %v1587
    %v2563 = vmul.f32 %v990, %v1575
    %v2564 = vmul.f32 %v991, %v1576
    %v2565 = vmul.f32 %v992, %v1577
    %v2566 = vmul.f32 %v993, %v1578
    %v2567 = vmul.f32 %v994, %v1579
    %v2568 = vmul.f32 %v995, %v1580
    %v2569 = vmul.f32 %v996, %v1581
    %v2570 = vmul.f32 %v997, %v1582
    %v2571 = vmul.f32 %v998, %v1583
    %v2572 = vmul.f32 %v999, %v1584
    %v2573 = vmul.f32 %v1000, %v1585
    %v2574 = vmul.f32 %v1001, %v1586
    %v2575 = vmul.f32 %v1002, %v1587
    %v2576 = vmul.f32 %v1003, %v1575
    %v2577 = vmul.f32 %v1004, %v1576
    %v2578 = vmul.f32 %v1005, %v1577
    %v2579 = vmul.f32 %v1006, %v1578
    %v2580 = vmul.f32 %v1007, %v1579
    %v2581 = vmul.f32 %v1008, %v1580
    %v2582 = vmul.f32 %v1009, %v1581
    %v2583 = vmul.f32 %v1010, %v1582
    %v2584 = vmul.f32 %v1011, %v1583
    %v2585 = vmul.f32 %v1012, %v1584
    %v2586 = vmul.f32 %v1013, %v1585
    %v2587 = vmul.f32 %v1014, %v1586
    %v2588 = vmul.f32 %v1015, %v1587
    %v2589 = vmul.f32 %v1016, %v1575
    %v2590 = vmul.f32 %v1017, %v1576
    %v2591 = vmul.f32 %v1018, %v1577
    %v2592 = vmul.f32 %v1019, %v1578
    %v2593 = vmul.f32 %v1020, %v1579
    %v2594 = vmul.f32 %v1021, %v1580
    %v2595 = vmul.f32 %v1022, %v1581
    %v2596 = vmul.f32 %v1023, %v1582
    %v2597 = vmul.f32 %v1024, %v1583
    %v2598 = vmul.f32 %v1025, %v1584
    %v2599 = vmul.f32 %v1026, %v1585
    %v2600 = vmul.f32 %v1027, %v1586
    %v2601 = vmul.f32 %v1028, %v1587
    %v2602 = vmul.f32 %v1029, %v1575
    %v2603 = vmul.f32 %v1030, %v1576
    %v2604 = vmul.f32 %v1031, %v1577
    %v2605 = vmul.f32 %v1032, %v1578
    %v2606 = vmul.f32 %v1033, %v1579
    %v2607 = vmul.f32 %v1034, %v1580
    %v2608 = vmul.f32 %v1035, %v1581
    %v2609 = vmul.f32 %v1036, %v1582
    %v2610 = vmul.f32 %v1037, %v1583
    %v2611 = vmul.f32 %v1038, %v1584
    %v2612 = vmul.f32 %v1039, %v1585
    %v2613 = vmul.f32 %v1040, %v1586
    %v2614 = vmul.f32 %v1041, %v1587
    %v2615 = vmul.f32 %v1042, %v1575
    %v2616 = vmul.f32 %v1043, %v1576
    %v2617 = vmul.f32 %v1044, %v1577
    %v2618 = vmul.f32 %v1045, %v1578
    %v2619 = vmul.f32 %v1046, %v1579
    %v2620 = vmul.f32 %v1047, %v1580
    %v2621 = vmul.f32 %v1048, %v1581
    %v2622 = vmul.f32 %v1049, %v1582
    %v2623 = vmul.f32 %v1050, %v1583
    %v2624 = vmul.f32 %v1051, %v1584
    %v2625 = vmul.f32 %v1052, %v1585
    %v2626 = vmul.f32 %v1053, %v1586
    %v2627 = vmul.f32 %v1054, %v1587
    %v2628 = vmul.f32 %v1055, %v1575
    %v2629 = vmul.f32 %v1056, %v1576
    %v2630 = vmul.f32 %v1057, %v1577
    %v2631 = vmul.f32 %v1058, %v1578
    %v2632 = vmul.f32 %v1059, %v1579
    %v2633 = vmul.f32 %v1060, %v1580
    %v2634 = vmul.f32 %v1061, %v1581
    %v2635 = vmul.f32 %v1062, %v1582
    %v2636 = vmul.f32 %v1063, %v1583
    %v2637 = vmul.f32 %v1064, %v1584
    %v2638 = vmul.f32 %v1065, %v1585
    %v2639 = vmul.f32 %v1066, %v1586
    %v2640 = vmul.f32 %v1067, %v1587
    %v2641 = vmul.f32 %v1068, %v1575
    %v2642 = vmul.f32 %v1069, %v1576
    %v2643 = vmul.f32 %v1070, %v1577
    %v2644 = vmul.f32 %v1071, %v1578
    %v2645 = vmul.f32 %v1072, %v1579
    %v2646 = vmul.f32 %v1073, %v1580
    %v2647 = vmul.f32 %v1074, %v1581
    %v2648 = vmul.f32 %v1075, %v1582
    %v2649 = vmul.f32 %v1076, %v1583
    %v2650 = vmul.f32 %v1077, %v1584
    %v2651 = vmul.f32 %v1078, %v1585
    %v2652 = vmul.f32 %v1079, %v1586
    %v2653 = vmul.f32 %v1080, %v1587
    %v2654 = vmul.f32 %v1081, %v1575
    %v2655 = vmul.f32 %v1082, %v1576
    %v2656 = vmul.f32 %v1083, %v1577
    %v2657 = vmul.f32 %v1084, %v1578
    %v2658 = vmul.f32 %v1085, %v1579
    %v2659 = vmul.f32 %v1086, %v1580
    %v2660 = vmul.f32 %v1087, %v1581
    %v2661 = vmul.f32 %v1088, %v1582
    %v2662 = vmul.f32 %v1089, %v1583
    %v2663 = vmul.f32 %v1090, %v1584
    %v2664 = vmul.f32 %v1091, %v1585
    %v2665 = vmul.f32 %v1092, %v1586
    %v2666 = vmul.f32 %v1093, %v1587
    %v2667 = vmul.f32 %v1094, %v1575
    %v2668 = vmul.f32 %v1095, %v1576
    %v2669 = vmul.f32 %v1096, %v1577
    %v2670 = vmul.f32 %v1097, %v1578
    %v2671 = vmul.f32 %v1098, %v1579
    %v2672 = vmul.f32 %v1099, %v1580
    %v2673 = vmul.f32 %v1100, %v1581
    %v2674 = vmul.f32 %v1101, %v1582
    %v2675 = vmul.f32 %v1102, %v1583
    %v2676 = vmul.f32 %v1103, %v1584
    %v2677 = vmul.f32 %v1104, %v1585
    %v2678 = vmul.f32 %v1105, %v1586
    %v2679 = vmul.f32 %v1106, %v1587
    %v2680 = vmul.f32 %v1107, %v1575
    %v2681 = vmul.f32 %v1108, %v1576
    %v2682 = vmul.f32 %v1109, %v1577
    %v2683 = vmul.f32 %v1110, %v1578
    %v2684 = vmul.f32 %v1111, %v1579
    %v2685 = vmul.f32 %v1112, %v1580
    %v2686 = vmul.f32 %v1113, %v1581
    %v2687 = vmul.f32 %v1114, %v1582
    %v2688 = vmul.f32 %v1115, %v1583
    %v2689 = vmul.f32 %v1116, %v1584
    %v2690 = vmul.f32 %v1117, %v1585
    %v2691 = vmul.f32 %v1118, %v1586
    %v2692 = vmul.f32 %v1119, %v1587
    %v2693 = vmul.f32 %v1120, %v1575
    %v2694 = vmul.f32 %v1121, %v1576
    %v2695 = vmul.f32 %v1122, %v1577
    %v2696 = vmul.f32 %v1123, %v1578
    %v2697 = vmul.f32 %v1124, %v1579
    %v2698 = vmul.f32 %v1125, %v1580
    %v2699 = vmul.f32 %v1126, %v1581
    %v2700 = vmul.f32 %v1127, %v1582
    %v2701 = vmul.f32 %v1128, %v1583
    %v2702 = vmul.f32 %v1129, %v1584
    %v2703 = vmul.f32 %v1130, %v1585
    %v2704 = vmul.f32 %v1131, %v1586
    %v2705 = vmul.f32 %v1132, %v1587
    %v2706 = vmul.f32 %v1133, %v1575
    %v2707 = vmul.f32 %v1134, %v1576
    %v2708 = vmul.f32 %v1135, %v1577
    %v2709 = vmul.f32 %v1136, %v1578
    %v2710 = vmul.f32 %v1137, %v1579
    %v2711 = vmul.f32 %v1138, %v1580
    %v2712 = vmul.f32 %v1139, %v1581
    %v2713 = vmul.f32 %v1140, %v1582
    %v2714 = vmul.f32 %v1141, %v1583
    %v2715 = vmul.f32 %v1142, %v1584
    %v2716 = vmul.f32 %v1143, %v1585
    %v2717 = vmul.f32 %v1144, %v1586
    %v2718 = vmul.f32 %v1145, %v1587
    %v2719 = vmul.f32 %v1146, %v1575
    %v2720 = vmul.f32 %v1147, %v1576
    %v2721 = vmul.f32 %v1148, %v1577
    %v2722 = vmul.f32 %v1149, %v1578
    %v2723 = vmul.f32 %v1150, %v1579
    %v2724 = vmul.f32 %v1151, %v1580
    %v2725 = vmul.f32 %v1152, %v1581
    %v2726 = vmul.f32 %v1153, %v1582
    %v2727 = vmul.f32 %v1154, %v1583
    %v2728 = vmul.f32 %v1155, %v1584
    %v2729 = vmul.f32 %v1156, %v1585
    %v2730 = vmul.f32 %v1157, %v1586
    %v2731 = vmul.f32 %v1158, %v1587
    %v2732 = vmul.f32 %v1159, %v1575
    %v2733 = vmul.f32 %v1160, %v1576
    %v2734 = vmul.f32 %v1161, %v1577
    %v2735 = vmul.f32 %v1162, %v1578
    %v2736 = vmul.f32 %v1163, %v1579
    %v2737 = vmul.f32 %v1164, %v1580
    %v2738 = vmul.f32 %v1165, %v1581
    %v2739 = vmul.f32 %v1166, %v1582
    %v2740 = vmul.f32 %v1167, %v1583
    %v2741 = vmul.f32 %v1168, %v1584
    %v2742 = vmul.f32 %v1169, %v1585
    %v2743 = vmul.f32 %v1170, %v1586
    %v2744 = vmul.f32 %v1171, %v1587
    %v2745 = vmul.f32 %v1172, %v1575
    %v2746 = vmul.f32 %v1173, %v1576
    %v2747 = vmul.f32 %v1174, %v1577
    %v2748 = vmul.f32 %v1175, %v1578
    %v2749 = vmul.f32 %v1176, %v1579
    %v2750 = vmul.f32 %v1177, %v1580
    %v2751 = vmul.f32 %v1178, %v1581
    %v2752 = vmul.f32 %v1179, %v1582
    %v2753 = vmul.f32 %v1180, %v1583
    %v2754 = vmul.f32 %v1181, %v1584
    %v2755 = vmul.f32 %v1182, %v1585
    %v2756 = vmul.f32 %v1183, %v1586
    %v2757 = vmul.f32 %v1184, %v1587
    %v2758 = vmul.f32 %v1185, %v1575
    %v2759 = vmul.f32 %v1186, %v1576
    %v2760 = vmul.f32 %v1187, %v1577
    %v2761 = vmul.f32 %v1188, %v1578
    %v2762 = vmul.f32 %v1189, %v1579
    %v2763 = vmul.f32 %v1190, %v1580
    %v2764 = vmul.f32 %v1191, %v1581
    %v2765 = vmul.f32 %v1192, %v1582
    %v2766 = vmul.f32 %v1193, %v1583
    %v2767 = vmul.f32 %v1194, %v1584
    %v2768 = vmul.f32 %v1195, %v1585
    %v2769 = vmul.f32 %v1196, %v1586
    %v2770 = vmul.f32 %v1197, %v1587
    %v2771 = vmul.f32 %v1198, %v1575
    %v2772 = vmul.f32 %v1199, %v1576
    %v2773 = vmul.f32 %v1200, %v1577
    %v2774 = vmul.f32 %v1201, %v1578
    %v2775 = vmul.f32 %v1202, %v1579
    %v2776 = vmul.f32 %v1203, %v1580
    %v2777 = vmul.f32 %v1204, %v1581
    %v2778 = vmul.f32 %v1205, %v1582
    %v2779 = vmul.f32 %v1206, %v1583
    %v2780 = vmul.f32 %v1207, %v1584
    %v2781 = vmul.f32 %v1208, %v1585
    %v2782 = vmul.f32 %v1209, %v1586
    %v2783 = vmul.f32 %v1210, %v1587
    %v2784 = vmul.f32 %v1211, %v1575
    %v2785 = vmul.f32 %v1212, %v1576
    %v2786 = vmul.f32 %v1213, %v1577
    %v2787 = vmul.f32 %v1214, %v1578
    %v2788 = vmul.f32 %v1215, %v1579
    %v2789 = vmul.f32 %v1216, %v1580
    %v2790 = vmul.f32 %v1217, %v1581
    %v2791 = vmul.f32 %v1218, %v1582
    %v2792 = vmul.f32 %v1219, %v1583
    %v2793 = vmul.f32 %v1220, %v1584
    %v2794 = vmul.f32 %v1221, %v1585
    %v2795 = vmul.f32 %v1222, %v1586
    %v2796 = vmul.f32 %v1223, %v1587
    %v2797 = vmul.f32 %v1224, %v1575
    %v2798 = vmul.f32 %v1225, %v1576
    %v2799 = vmul.f32 %v1226, %v1577
    %v2800 = vmul.f32 %v1227, %v1578
    %v2801 = vmul.f32 %v1228, %v1579
    %v2802 = vmul.f32 %v1229, %v1580
    %v2803 = vmul.f32 %v1230, %v1581
    %v2804 = vmul.f32 %v1231, %v1582
    %v2805 = vmul.f32 %v1232, %v1583
    %v2806 = vmul.f32 %v1233, %v1584
    %v2807 = vmul.f32 %v1234, %v1585
    %v2808 = vmul.f32 %v1235, %v1586
    %v2809 = vmul.f32 %v1236, %v1587
    %v2810 = vmul.f32 %v1237, %v1575
    %v2811 = vmul.f32 %v1238, %v1576
    %v2812 = vmul.f32 %v1239, %v1577
    %v2813 = vmul.f32 %v1240, %v1578
    %v2814 = vmul.f32 %v1241, %v1579
    %v2815 = vmul.f32 %v1242, %v1580
    %v2816 = vmul.f32 %v1243, %v1581
    %v2817 = vmul.f32 %v1244, %v1582
    %v2818 = vmul.f32 %v1245, %v1583
    %v2819 = vmul.f32 %v1246, %v1584
    %v2820 = vmul.f32 %v1247, %v1585
    %v2821 = vmul.f32 %v1248, %v1586
    %v2822 = vmul.f32 %v1249, %v1587
    %v2823 = vmul.f32 %v1250, %v1575
    %v2824 = vmul.f32 %v1251, %v1576
    %v2825 = vmul.f32 %v1252, %v1577
    %v2826 = vmul.f32 %v1253, %v1578
    %v2827 = vmul.f32 %v1254, %v1579
    %v2828 = vmul.f32 %v1255, %v1580
    %v2829 = vmul.f32 %v1256, %v1581
    %v2830 = vmul.f32 %v1257, %v1582
    %v2831 = vmul.f32 %v1258, %v1583
    %v2832 = vmul.f32 %v1259, %v1584
    %v2833 = vmul.f32 %v1260, %v1585
    %v2834 = vmul.f32 %v1261, %v1586
    %v2835 = vmul.f32 %v1262, %v1587
    %v2836 = vmul.f32 %v1263, %v1575
    %v2837 = vmul.f32 %v1264, %v1576
    %v2838 = vmul.f32 %v1265, %v1577
    %v2839 = vmul.f32 %v1266, %v1578
    %v2840 = vmul.f32 %v1267, %v1579
    %v2841 = vmul.f32 %v1268, %v1580
    %v2842 = vmul.f32 %v1269, %v1581
    %v2843 = vmul.f32 %v1270, %v1582
    %v2844 = vmul.f32 %v1271, %v1583
    %v2845 = vmul.f32 %v1272, %v1584
    %v2846 = vmul.f32 %v1273, %v1585
    %v2847 = vmul.f32 %v1274, %v1586
    %v2848 = vmul.f32 %v1275, %v1587
    %v2849 = vmul.f32 %v1276, %v1575
    %v2850 = vmul.f32 %v1277, %v1576
    %v2851 = vmul.f32 %v1278, %v1577
    %v2852 = vmul.f32 %v1279, %v1578
    %v2853 = vmul.f32 %v1280, %v1579
    %v2854 = vmul.f32 %v1281, %v1580
    %v2855 = vmul.f32 %v1282, %v1581
    %v2856 = vmul.f32 %v1283, %v1582
    %v2857 = vmul.f32 %v1284, %v1583
    %v2858 = vmul.f32 %v1285, %v1584
    %v2859 = vmul.f32 %v1286, %v1585
    %v2860 = vmul.f32 %v1287, %v1586
    %v2861 = vmul.f32 %v1288, %v1587
    %v2862 = vmul.f32 %v1289, %v1575
    %v2863 = vmul.f32 %v1290, %v1576
    %v2864 = vmul.f32 %v1291, %v1577
    %v2865 = vmul.f32 %v1292, %v1578
    %v2866 = vmul.f32 %v1293, %v1579
    %v2867 = vmul.f32 %v1294, %v1580
    %v2868 = vmul.f32 %v1295, %v1581
    %v2869 = vmul.f32 %v1296, %v1582
    %v2870 = vmul.f32 %v1297, %v1583
    %v2871 = vmul.f32 %v1298, %v1584
    %v2872 = vmul.f32 %v1299, %v1585
    %v2873 = vmul.f32 %v1300, %v1586
    %v2874 = vmul.f32 %v1301, %v1587
    %v2875 = vmul.f32 %v1302, %v1575
    %v2876 = vmul.f32 %v1303, %v1576
    %v2877 = vmul.f32 %v1304, %v1577
    %v2878 = vmul.f32 %v1305, %v1578
    %v2879 = vmul.f32 %v1306, %v1579
    %v2880 = vmul.f32 %v1307, %v1580
    %v2881 = vmul.f32 %v1308, %v1581
    %v2882 = vmul.f32 %v1309, %v1582
    %v2883 = vmul.f32 %v1310, %v1583
    %v2884 = vmul.f32 %v1311, %v1584
    %v2885 = vmul.f32 %v1312, %v1585
    %v2886 = vmul.f32 %v1313, %v1586
    %v2887 = vmul.f32 %v1314, %v1587
    %v2888 = vmul.f32 %v1315, %v1575
    %v2889 = vmul.f32 %v1316, %v1576
    %v2890 = vmul.f32 %v1317, %v1577
    %v2891 = vmul.f32 %v1318, %v1578
    %v2892 = vmul.f32 %v1319, %v1579
    %v2893 = vmul.f32 %v1320, %v1580
    %v2894 = vmul.f32 %v1321, %v1581
    %v2895 = vmul.f32 %v1322, %v1582
    %v2896 = vmul.f32 %v1323, %v1583
    %v2897 = vmul.f32 %v1324, %v1584
    %v2898 = vmul.f32 %v1325, %v1585
    %v2899 = vmul.f32 %v1326, %v1586
    %v2900 = vmul.f32 %v1327, %v1587
    %v2901 = vmul.f32 %v1328, %v1575
    %v2902 = vmul.f32 %v1329, %v1576
    %v2903 = vmul.f32 %v1330, %v1577
    %v2904 = vmul.f32 %v1331, %v1578
    %v2905 = vmul.f32 %v1332, %v1579
    %v2906 = vmul.f32 %v1333, %v1580
    %v2907 = vmul.f32 %v1334, %v1581
    %v2908 = vmul.f32 %v1335, %v1582
    %v2909 = vmul.f32 %v1336, %v1583
    %v2910 = vmul.f32 %v1337, %v1584
    %v2911 = vmul.f32 %v1338, %v1585
    %v2912 = vmul.f32 %v1339, %v1586
    %v2913 = vmul.f32 %v1340, %v1587
    %v2914 = vmul.f32 %v1341, %v1575
    %v2915 = vmul.f32 %v1342, %v1576
    %v2916 = vmul.f32 %v1343, %v1577
    %v2917 = vmul.f32 %v1344, %v1578
    %v2918 = vmul.f32 %v1345, %v1579
    %v2919 = vmul.f32 %v1346, %v1580
    %v2920 = vmul.f32 %v1347, %v1581
    %v2921 = vmul.f32 %v1348, %v1582
    %v2922 = vmul.f32 %v1349, %v1583
    %v2923 = vmul.f32 %v1350, %v1584
    %v2924 = vmul.f32 %v1351, %v1585
    %v2925 = vmul.f32 %v1352, %v1586
    %v2926 = vmul.f32 %v1353, %v1587
    %v2927 = vmul.f32 %v1354, %v1575
    %v2928 = vmul.f32 %v1355, %v1576
    %v2929 = vmul.f32 %v1356, %v1577
    %v2930 = vmul.f32 %v1357, %v1578
    %v2931 = vmul.f32 %v1358, %v1579
    %v2932 = vmul.f32 %v1359, %v1580
    %v2933 = vmul.f32 %v1360, %v1581
    %v2934 = vmul.f32 %v1361, %v1582
    %v2935 = vmul.f32 %v1362, %v1583
    %v2936 = vmul.f32 %v1363, %v1584
    %v2937 = vmul.f32 %v1364, %v1585
    %v2938 = vmul.f32 %v1365, %v1586
    %v2939 = vmul.f32 %v1366, %v1587
    %v2940 = vmul.f32 %v1367, %v1575
    %v2941 = vmul.f32 %v1368, %v1576
    %v2942 = vmul.f32 %v1369, %v1577
    %v2943 = vmul.f32 %v1370, %v1578
    %v2944 = vmul.f32 %v1371, %v1579
    %v2945 = vmul.f32 %v1372, %v1580
    %v2946 = vmul.f32 %v1373, %v1581
    %v2947 = vmul.f32 %v1374, %v1582
    %v2948 = vmul.f32 %v1375, %v1583
    %v2949 = vmul.f32 %v1376, %v1584
    %v2950 = vmul.f32 %v1377, %v1585
    %v2951 = vmul.f32 %v1378, %v1586
    %v2952 = vmul.f32 %v1379, %v1587
    %v2953 = vmul.f32 %v1380, %v1575
    %v2954 = vmul.f32 %v1381, %v1576
    %v2955 = vmul.f32 %v1382, %v1577
    %v2956 = vmul.f32 %v1383, %v1578
    %v2957 = vmul.f32 %v1384, %v1579
    %v2958 = vmul.f32 %v1385, %v1580
    %v2959 = vmul.f32 %v1386, %v1581
    %v2960 = vmul.f32 %v1387, %v1582
    %v2961 = vmul.f32 %v1388, %v1583
    %v2962 = vmul.f32 %v1389, %v1584
    %v2963 = vmul.f32 %v1390, %v1585
    %v2964 = vmul.f32 %v1391, %v1586
    %v2965 = vmul.f32 %v1392, %v1587
    %v2966 = vmul.f32 %v1393, %v1575
    %v2967 = vmul.f32 %v1394, %v1576
    %v2968 = vmul.f32 %v1395, %v1577
    %v2969 = vmul.f32 %v1396, %v1578
    %v2970 = vmul.f32 %v1397, %v1579
    %v2971 = vmul.f32 %v1398, %v1580
    %v2972 = vmul.f32 %v1399, %v1581
    %v2973 = vmul.f32 %v1400, %v1582
    %v2974 = vmul.f32 %v1401, %v1583
    %v2975 = vmul.f32 %v1402, %v1584
    %v2976 = vmul.f32 %v1403, %v1585
    %v2977 = vmul.f32 %v1404, %v1586
    %v2978 = vmul.f32 %v1405, %v1587
    %v2979 = vmul.f32 %v1406, %v1575
    %v2980 = vmul.f32 %v1407, %v1576
    %v2981 = vmul.f32 %v1408, %v1577
    %v2982 = vmul.f32 %v1409, %v1578
    %v2983 = vmul.f32 %v1410, %v1579
    %v2984 = vmul.f32 %v1411, %v1580
    %v2985 = vmul.f32 %v1412, %v1581
    %v2986 = vmul.f32 %v1413, %v1582
    %v2987 = vmul.f32 %v1414, %v1583
    %v2988 = vmul.f32 %v1415, %v1584
    %v2989 = vmul.f32 %v1416, %v1585
    %v2990 = vmul.f32 %v1417, %v1586
    %v2991 = vmul.f32 %v1418, %v1587
    %v2992 = vmul.f32 %v1419, %v1575
    %v2993 = vmul.f32 %v1420, %v1576
    %v2994 = vmul.f32 %v1421, %v1577
    %v2995 = vmul.f32 %v1422, %v1578
    %v2996 = vmul.f32 %v1423, %v1579
    %v2997 = vmul.f32 %v1424, %v1580
    %v2998 = vmul.f32 %v1425, %v1581
    %v2999 = vmul.f32 %v1426, %v1582
    %v3000 = vmul.f32 %v1427, %v1583
    %v3001 = vmul.f32 %v1428, %v1584
    %v3002 = vmul.f32 %v1429, %v1585
    %v3003 = vmul.f32 %v1430, %v1586
    %v3004 = vmul.f32 %v1431, %v1587
    %v3005 = vmul.f32 %v1432, %v1575
    %v3006 = vmul.f32 %v1433, %v1576
    %v3007 = vmul.f32 %v1434, %v1577
    %v3008 = vmul.f32 %v1435, %v1578
    %v3009 = vmul.f32 %v1436, %v1579
    %v3010 = vmul.f32 %v1437, %v1580
    %v3011 = vmul.f32 %v1438, %v1581
    %v3012 = vmul.f32 %v1439, %v1582
    %v3013 = vmul.f32 %v1440, %v1583
    %v3014 = vmul.f32 %v1441, %v1584
    %v3015 = vmul.f32 %v1442, %v1585
    %v3016 = vmul.f32 %v1443, %v1586
    %v3017 = vmul.f32 %v1444, %v1587
    %v3018 = vmul.f32 %v1445, %v1575
    %v3019 = vmul.f32 %v1446, %v1576
    %v3020 = vmul.f32 %v1447, %v1577
    %v3021 = vmul.f32 %v1448, %v1578
    %v3022 = vmul.f32 %v1449, %v1579
    %v3023 = vmul.f32 %v1450, %v1580
    %v3024 = vmul.f32 %v1451, %v1581
    %v3025 = vmul.f32 %v1452, %v1582
    %v3026 = vmul.f32 %v1453, %v1583
    %v3027 = vmul.f32 %v1454, %v1584
    %v3028 = vmul.f32 %v1455, %v1585
    %v3029 = vmul.f32 %v1456, %v1586
    %v3030 = vmul.f32 %v1457, %v1587
    %v3031 = vmul.f32 %v1458, %v1575
    %v3032 = vmul.f32 %v1459, %v1576
    %v3033 = vmul.f32 %v1460, %v1577
    %v3034 = vmul.f32 %v1461, %v1578
    %v3035 = vmul.f32 %v1462, %v1579
    %v3036 = vmul.f32 %v1463, %v1580
    %v3037 = vmul.f32 %v1464, %v1581
    %v3038 = vmul.f32 %v1465, %v1582
    %v3039 = vmul.f32 %v1466, %v1583
    %v3040 = vmul.f32 %v1467, %v1584
    %v3041 = vmul.f32 %v1468, %v1585
    %v3042 = vmul.f32 %v1469, %v1586
    %v3043 = vmul.f32 %v1470, %v1587
    %v3044 = vmul.f32 %v1471, %v1575
    %v3045 = vmul.f32 %v1472, %v1576
    %v3046 = vmul.f32 %v1473, %v1577
    %v3047 = vmul.f32 %v1474, %v1578
    %v3048 = vmul.f32 %v1475, %v1579
    %v3049 = vmul.f32 %v1476, %v1580
    %v3050 = vmul.f32 %v1477, %v1581
    %v3051 = vmul.f32 %v1478, %v1582
    %v3052 = vmul.f32 %v1479, %v1583
    %v3053 = vmul.f32 %v1480, %v1584
    %v3054 = vmul.f32 %v1481, %v1585
    %v3055 = vmul.f32 %v1482, %v1586
    %v3056 = vmul.f32 %v1483, %v1587
    %v3057 = vmul.f32 %v1484, %v1575
    %v3058 = vmul.f32 %v1485, %v1576
    %v3059 = vmul.f32 %v1486, %v1577
    %v3060 = vmul.f32 %v1487, %v1578
    %v3061 = vmul.f32 %v1488, %v1579
    %v3062 = vmul.f32 %v1489, %v1580
    %v3063 = vmul.f32 %v1490, %v1581
    %v3064 = vmul.f32 %v1491, %v1582
    %v3065 = vmul.f32 %v1492, %v1583
    %v3066 = vmul.f32 %v1493, %v1584
    %v3067 = vmul.f32 %v1494, %v1585
    %v3068 = vmul.f32 %v1495, %v1586
    %v3069 = vmul.f32 %v1496, %v1587
    %v3070 = vmul.f32 %v1497, %v1575
    %v3071 = vmul.f32 %v1498, %v1576
    %v3072 = vmul.f32 %v1499, %v1577
    %v3073 = vmul.f32 %v1500, %v1578
    %v3074 = vmul.f32 %v1501, %v1579
    %v3075 = vmul.f32 %v1502, %v1580
    %v3076 = vmul.f32 %v1503, %v1581
    %v3077 = vmul.f32 %v1504, %v1582
    %v3078 = vmul.f32 %v1505, %v1583
    %v3079 = vmul.f32 %v1506, %v1584
    %v3080 = vmul.f32 %v1507, %v1585
    %v3081 = vmul.f32 %v1508, %v1586
    %v3082 = vmul.f32 %v1509, %v1587
    %v3083 = vmul.f32 %v1510, %v1575
    %v3084 = vmul.f32 %v1511, %v1576
    %v3085 = vmul.f32 %v1512, %v1577
    %v3086 = vmul.f32 %v1513, %v1578
    %v3087 = vmul.f32 %v1514, %v1579
    %v3088 = vmul.f32 %v1515, %v1580
    %v3089 = vmul.f32 %v1516, %v1581
    %v3090 = vmul.f32 %v1517, %v1582
    %v3091 = vmul.f32 %v1518, %v1583
    %v3092 = vmul.f32 %v1519, %v1584
    %v3093 = vmul.f32 %v1520, %v1585
    %v3094 = vmul.f32 %v1521, %v1586
    %v3095 = vmul.f32 %v1522, %v1587
    %v3096 = vmul.f32 %v1523, %v1575
    %v3097 = vmul.f32 %v1524, %v1576
    %v3098 = vmul.f32 %v1525, %v1577
    %v3099 = vmul.f32 %v1526, %v1578
    %v3100 = vmul.f32 %v1527, %v1579
    %v3101 = vmul.f32 %v1528, %v1580
    %v3102 = vmul.f32 %v1529, %v1581
    %v3103 = vmul.f32 %v1530, %v1582
    %v3104 = vmul.f32 %v1531, %v1583
    %v3105 = vmul.f32 %v1532, %v1584
    %v3106 = vmul.f32 %v1533, %v1585
    %v3107 = vmul.f32 %v1534, %v1586
    %v3108 = vmul.f32 %v1535, %v1587
    %v3109 = vmul.f32 %v1536, %v1575
    %v3110 = vmul.f32 %v1537, %v1576
    %v3111 = vmul.f32 %v1538, %v1577
    %v3112 = vmul.f32 %v1539, %v1578
    %v3113 = vmul.f32 %v1540, %v1579
    %v3114 = vmul.f32 %v1541, %v1580
    %v3115 = vmul.f32 %v1542, %v1581
    %v3116 = vmul.f32 %v1543, %v1582
    %v3117 = vmul.f32 %v1544, %v1583
    %v3118 = vmul.f32 %v1545, %v1584
    %v3119 = vmul.f32 %v1546, %v1585
    %v3120 = vmul.f32 %v1547, %v1586
    %v3121 = vmul.f32 %v1548, %v1587
    %v3122 = vmul.f32 %v1549, %v1575
    %v3123 = vmul.f32 %v1550, %v1576
    %v3124 = vmul.f32 %v1551, %v1577
    %v3125 = vmul.f32 %v1552, %v1578
    %v3126 = vmul.f32 %v1553, %v1579
    %v3127 = vmul.f32 %v1554, %v1580
    %v3128 = vmul.f32 %v1555, %v1581
    %v3129 = vmul.f32 %v1556, %v1582
    %v3130 = vmul.f32 %v1557, %v1583
    %v3131 = vmul.f32 %v1558, %v1584
    %v3132 = vmul.f32 %v1559, %v1585
    %v3133 = vmul.f32 %v1560, %v1586
    %v3134 = vmul.f32 %v1561, %v1587
    %v3135 = vmul.f32 %v1562, %v1575
    %v3136 = vmul.f32 %v1563, %v1576
    %v3137 = vmul.f32 %v1564, %v1577
    %v3138 = vmul.f32 %v1565, %v1578
    %v3139 = vmul.f32 %v1566, %v1579
    %v3140 = vmul.f32 %v1567, %v1580
    %v3141 = vmul.f32 %v1568, %v1581
    %v3142 = vmul.f32 %v1569, %v1582
    %v3143 = vmul.f32 %v1570, %v1583
    %v3144 = vmul.f32 %v1571, %v1584
    %v3145 = vmul.f32 %v1572, %v1585
    %v3146 = vmul.f32 %v1573, %v1586
    %v3147 = vmul.f32 %v1574, %v1587
    %v3148 = vadd.f32 %v1588, %v1589
    %v3149 = vadd.f32 %v3148, %v1590
    %v3150 = vadd.f32 %v3149, %v1591
    %v3151 = vadd.f32 %v3150, %v1592
    %v3152 = vadd.f32 %v3151, %v1593
    %v3153 = vadd.f32 %v3152, %v1594
    %v3154 = vadd.f32 %v3153, %v1595
    %v3155 = vadd.f32 %v3154, %v1596
    %v3156 = vadd.f32 %v3155, %v1597
    %v3157 = vadd.f32 %v3156, %v1598
    %v3158 = vadd.f32 %v3157, %v1599
    %vm3159 = vcmask 1043456
    %v3160 = vsel %vm3159, %v1600, 0.0
    %v3161 = vadd.f32 %v3158, %v3160
    %v3162 = vrot.slane %v3161, 4
    %v3163 = vadd.f32 %v3161, %v3162
    %v3164 = vrot.slane %v3163, 2
    %v3165 = vadd.f32 %v3163, %v3164
    %v3166 = vrot.slane %v3165, 1
    %v3167 = vadd.f32 %v3165, %v3166
    %v3168 = vadd.f32 %v1601, %v1602
    %v3169 = vadd.f32 %v3168, %v1603
    %v3170 = vadd.f32 %v3169, %v1604
    %v3171 = vadd.f32 %v3170, %v1605
    %v3172 = vadd.f32 %v3171, %v1606
    %v3173 = vadd.f32 %v3172, %v1607
    %v3174 = vadd.f32 %v3173, %v1608
    %v3175 = vadd.f32 %v3174, %v1609
    %v3176 = vadd.f32 %v3175, %v1610
    %v3177 = vadd.f32 %v3176, %v1611
    %v3178 = vadd.f32 %v3177, %v1612
    %v3179 = vsel %vm3159, %v1613, 0.0
    %v3180 = vadd.f32 %v3178, %v3179
    %v3181 = vrot.slane %v3180, 4
    %v3182 = vadd.f32 %v3180, %v3181
    %v3183 = vrot.slane %v3182, 2
    %v3184 = vadd.f32 %v3182, %v3183
    %v3185 = vrot.slane %v3184, 1
    %v3186 = vadd.f32 %v3184, %v3185
    %v3187 = vadd.f32 %v1614, %v1615
    %v3188 = vadd.f32 %v3187, %v1616
    %v3189 = vadd.f32 %v3188, %v1617
    %v3190 = vadd.f32 %v3189, %v1618
    %v3191 = vadd.f32 %v3190, %v1619
    %v3192 = vadd.f32 %v3191, %v1620
    %v3193 = vadd.f32 %v3192, %v1621
    %v3194 = vadd.f32 %v3193, %v1622
    %v3195 = vadd.f32 %v3194, %v1623
    %v3196 = vadd.f32 %v3195, %v1624
    %v3197 = vadd.f32 %v3196, %v1625
    %v3198 = vsel %vm3159, %v1626, 0.0
    %v3199 = vadd.f32 %v3197, %v3198
    %v3200 = vrot.slane %v3199, 4
    %v3201 = vadd.f32 %v3199, %v3200
    %v3202 = vrot.slane %v3201, 2
    %v3203 = vadd.f32 %v3201, %v3202
    %v3204 = vrot.slane %v3203, 1
    %v3205 = vadd.f32 %v3203, %v3204
    %v3206 = vadd.f32 %v1627, %v1628
    %v3207 = vadd.f32 %v3206, %v1629
    %v3208 = vadd.f32 %v3207, %v1630
    %v3209 = vadd.f32 %v3208, %v1631
    %v3210 = vadd.f32 %v3209, %v1632
    %v3211 = vadd.f32 %v3210, %v1633
    %v3212 = vadd.f32 %v3211, %v1634
    %v3213 = vadd.f32 %v3212, %v1635
    %v3214 = vadd.f32 %v3213, %v1636
    %v3215 = vadd.f32 %v3214, %v1637
    %v3216 = vadd.f32 %v3215, %v1638
    %v3217 = vsel %vm3159, %v1639, 0.0
    %v3218 = vadd.f32 %v3216, %v3217
    %v3219 = vrot.slane %v3218, 4
    %v3220 = vadd.f32 %v3218, %v3219
    %v3221 = vrot.slane %v3220, 2
    %v3222 = vadd.f32 %v3220, %v3221
    %v3223 = vrot.slane %v3222, 1
    %v3224 = vadd.f32 %v3222, %v3223
    %v3225 = vadd.f32 %v1640, %v1641
    %v3226 = vadd.f32 %v3225, %v1642
    %v3227 = vadd.f32 %v3226, %v1643
    %v3228 = vadd.f32 %v3227, %v1644
    %v3229 = vadd.f32 %v3228, %v1645
    %v3230 = vadd.f32 %v3229, %v1646
    %v3231 = vadd.f32 %v3230, %v1647
    %v3232 = vadd.f32 %v3231, %v1648
    %v3233 = vadd.f32 %v3232, %v1649
    %v3234 = vadd.f32 %v3233, %v1650
    %v3235 = vadd.f32 %v3234, %v1651
    %v3236 = vsel %vm3159, %v1652, 0.0
    %v3237 = vadd.f32 %v3235, %v3236
    %v3238 = vrot.slane %v3237, 4
    %v3239 = vadd.f32 %v3237, %v3238
    %v3240 = vrot.slane %v3239, 2
    %v3241 = vadd.f32 %v3239, %v3240
    %v3242 = vrot.slane %v3241, 1
    %v3243 = vadd.f32 %v3241, %v3242
    %v3244 = vadd.f32 %v1653, %v1654
    %v3245 = vadd.f32 %v3244, %v1655
    %v3246 = vadd.f32 %v3245, %v1656
    %v3247 = vadd.f32 %v3246, %v1657
    %v3248 = vadd.f32 %v3247, %v1658
    %v3249 = vadd.f32 %v3248, %v1659
    %v3250 = vadd.f32 %v3249, %v1660
    %v3251 = vadd.f32 %v3250, %v1661
    %v3252 = vadd.f32 %v3251, %v1662
    %v3253 = vadd.f32 %v3252, %v1663
    %v3254 = vadd.f32 %v3253, %v1664
    %v3255 = vsel %vm3159, %v1665, 0.0
    %v3256 = vadd.f32 %v3254, %v3255
    %v3257 = vrot.slane %v3256, 4
    %v3258 = vadd.f32 %v3256, %v3257
    %v3259 = vrot.slane %v3258, 2
    %v3260 = vadd.f32 %v3258, %v3259
    %v3261 = vrot.slane %v3260, 1
    %v3262 = vadd.f32 %v3260, %v3261
    %v3263 = vadd.f32 %v1666, %v1667
    %v3264 = vadd.f32 %v3263, %v1668
    %v3265 = vadd.f32 %v3264, %v1669
    %v3266 = vadd.f32 %v3265, %v1670
    %v3267 = vadd.f32 %v3266, %v1671
    %v3268 = vadd.f32 %v3267, %v1672
    %v3269 = vadd.f32 %v3268, %v1673
    %v3270 = vadd.f32 %v3269, %v1674
    %v3271 = vadd.f32 %v3270, %v1675
    %v3272 = vadd.f32 %v3271, %v1676
    %v3273 = vadd.f32 %v3272, %v1677
    %v3274 = vsel %vm3159, %v1678, 0.0
    %v3275 = vadd.f32 %v3273, %v3274
    %v3276 = vrot.slane %v3275, 4
    %v3277 = vadd.f32 %v3275, %v3276
    %v3278 = vrot.slane %v3277, 2
    %v3279 = vadd.f32 %v3277, %v3278
    %v3280 = vrot.slane %v3279, 1
    %v3281 = vadd.f32 %v3279, %v3280
    %v3282 = vadd.f32 %v1679, %v1680
    %v3283 = vadd.f32 %v3282, %v1681
    %v3284 = vadd.f32 %v3283, %v1682
    %v3285 = vadd.f32 %v3284, %v1683
    %v3286 = vadd.f32 %v3285, %v1684
    %v3287 = vadd.f32 %v3286, %v1685
    %v3288 = vadd.f32 %v3287, %v1686
    %v3289 = vadd.f32 %v3288, %v1687
    %v3290 = vadd.f32 %v3289, %v1688
    %v3291 = vadd.f32 %v3290, %v1689
    %v3292 = vadd.f32 %v3291, %v1690
    %v3293 = vsel %vm3159, %v1691, 0.0
    %v3294 = vadd.f32 %v3292, %v3293
    %v3295 = vrot.slane %v3294, 4
    %v3296 = vadd.f32 %v3294, %v3295
    %v3297 = vrot.slane %v3296, 2
    %v3298 = vadd.f32 %v3296, %v3297
    %v3299 = vrot.slane %v3298, 1
    %v3300 = vadd.f32 %v3298, %v3299
    %v3301 = vadd.f32 %v1692, %v1693
    %v3302 = vadd.f32 %v3301, %v1694
    %v3303 = vadd.f32 %v3302, %v1695
    %v3304 = vadd.f32 %v3303, %v1696
    %v3305 = vadd.f32 %v3304, %v1697
    %v3306 = vadd.f32 %v3305, %v1698
    %v3307 = vadd.f32 %v3306, %v1699
    %v3308 = vadd.f32 %v3307, %v1700
    %v3309 = vadd.f32 %v3308, %v1701
    %v3310 = vadd.f32 %v3309, %v1702
    %v3311 = vadd.f32 %v3310, %v1703
    %v3312 = vsel %vm3159, %v1704, 0.0
    %v3313 = vadd.f32 %v3311, %v3312
    %v3314 = vrot.slane %v3313, 4
    %v3315 = vadd.f32 %v3313, %v3314
    %v3316 = vrot.slane %v3315, 2
    %v3317 = vadd.f32 %v3315, %v3316
    %v3318 = vrot.slane %v3317, 1
    %v3319 = vadd.f32 %v3317, %v3318
    %v3320 = vadd.f32 %v1705, %v1706
    %v3321 = vadd.f32 %v3320, %v1707
    %v3322 = vadd.f32 %v3321, %v1708
    %v3323 = vadd.f32 %v3322, %v1709
    %v3324 = vadd.f32 %v3323, %v1710
    %v3325 = vadd.f32 %v3324, %v1711
    %v3326 = vadd.f32 %v3325, %v1712
    %v3327 = vadd.f32 %v3326, %v1713
    %v3328 = vadd.f32 %v3327, %v1714
    %v3329 = vadd.f32 %v3328, %v1715
    %v3330 = vadd.f32 %v3329, %v1716
    %v3331 = vsel %vm3159, %v1717, 0.0
    %v3332 = vadd.f32 %v3330, %v3331
    %v3333 = vrot.slane %v3332, 4
    %v3334 = vadd.f32 %v3332, %v3333
    %v3335 = vrot.slane %v3334, 2
    %v3336 = vadd.f32 %v3334, %v3335
    %v3337 = vrot.slane %v3336, 1
    %v3338 = vadd.f32 %v3336, %v3337
    %v3339 = vadd.f32 %v1718, %v1719
    %v3340 = vadd.f32 %v3339, %v1720
    %v3341 = vadd.f32 %v3340, %v1721
    %v3342 = vadd.f32 %v3341, %v1722
    %v3343 = vadd.f32 %v3342, %v1723
    %v3344 = vadd.f32 %v3343, %v1724
    %v3345 = vadd.f32 %v3344, %v1725
    %v3346 = vadd.f32 %v3345, %v1726
    %v3347 = vadd.f32 %v3346, %v1727
    %v3348 = vadd.f32 %v3347, %v1728
    %v3349 = vadd.f32 %v3348, %v1729
    %v3350 = vsel %vm3159, %v1730, 0.0
    %v3351 = vadd.f32 %v3349, %v3350
    %v3352 = vrot.slane %v3351, 4
    %v3353 = vadd.f32 %v3351, %v3352
    %v3354 = vrot.slane %v3353, 2
    %v3355 = vadd.f32 %v3353, %v3354
    %v3356 = vrot.slane %v3355, 1
    %v3357 = vadd.f32 %v3355, %v3356
    %v3358 = vadd.f32 %v1731, %v1732
    %v3359 = vadd.f32 %v3358, %v1733
    %v3360 = vadd.f32 %v3359, %v1734
    %v3361 = vadd.f32 %v3360, %v1735
    %v3362 = vadd.f32 %v3361, %v1736
    %v3363 = vadd.f32 %v3362, %v1737
    %v3364 = vadd.f32 %v3363, %v1738
    %v3365 = vadd.f32 %v3364, %v1739
    %v3366 = vadd.f32 %v3365, %v1740
    %v3367 = vadd.f32 %v3366, %v1741
    %v3368 = vadd.f32 %v3367, %v1742
    %v3369 = vsel %vm3159, %v1743, 0.0
    %v3370 = vadd.f32 %v3368, %v3369
    %v3371 = vrot.slane %v3370, 4
    %v3372 = vadd.f32 %v3370, %v3371
    %v3373 = vrot.slane %v3372, 2
    %v3374 = vadd.f32 %v3372, %v3373
    %v3375 = vrot.slane %v3374, 1
    %v3376 = vadd.f32 %v3374, %v3375
    %v3377 = vadd.f32 %v1744, %v1745
    %v3378 = vadd.f32 %v3377, %v1746
    %v3379 = vadd.f32 %v3378, %v1747
    %v3380 = vadd.f32 %v3379, %v1748
    %v3381 = vadd.f32 %v3380, %v1749
    %v3382 = vadd.f32 %v3381, %v1750
    %v3383 = vadd.f32 %v3382, %v1751
    %v3384 = vadd.f32 %v3383, %v1752
    %v3385 = vadd.f32 %v3384, %v1753
    %v3386 = vadd.f32 %v3385, %v1754
    %v3387 = vadd.f32 %v3386, %v1755
    %v3388 = vsel %vm3159, %v1756, 0.0
    %v3389 = vadd.f32 %v3387, %v3388
    %v3390 = vrot.slane %v3389, 4
    %v3391 = vadd.f32 %v3389, %v3390
    %v3392 = vrot.slane %v3391, 2
    %v3393 = vadd.f32 %v3391, %v3392
    %v3394 = vrot.slane %v3393, 1
    %v3395 = vadd.f32 %v3393, %v3394
    %v3396 = vadd.f32 %v1757, %v1758
    %v3397 = vadd.f32 %v3396, %v1759
    %v3398 = vadd.f32 %v3397, %v1760
    %v3399 = vadd.f32 %v3398, %v1761
    %v3400 = vadd.f32 %v3399, %v1762
    %v3401 = vadd.f32 %v3400, %v1763
    %v3402 = vadd.f32 %v3401, %v1764
    %v3403 = vadd.f32 %v3402, %v1765
    %v3404 = vadd.f32 %v3403, %v1766
    %v3405 = vadd.f32 %v3404, %v1767
    %v3406 = vadd.f32 %v3405, %v1768
    %v3407 = vsel %vm3159, %v1769, 0.0
    %v3408 = vadd.f32 %v3406, %v3407
    %v3409 = vrot.slane %v3408, 4
    %v3410 = vadd.f32 %v3408, %v3409
    %v3411 = vrot.slane %v3410, 2
    %v3412 = vadd.f32 %v3410, %v3411
    %v3413 = vrot.slane %v3412, 1
    %v3414 = vadd.f32 %v3412, %v3413
    %v3415 = vadd.f32 %v1770, %v1771
    %v3416 = vadd.f32 %v3415, %v1772
    %v3417 = vadd.f32 %v3416, %v1773
    %v3418 = vadd.f32 %v3417, %v1774
    %v3419 = vadd.f32 %v3418, %v1775
    %v3420 = vadd.f32 %v3419, %v1776
    %v3421 = vadd.f32 %v3420, %v1777
    %v3422 = vadd.f32 %v3421, %v1778
    %v3423 = vadd.f32 %v3422, %v1779
    %v3424 = vadd.f32 %v3423, %v1780
    %v3425 = vadd.f32 %v3424, %v1781
    %v3426 = vsel %vm3159, %v1782, 0.0
    %v3427 = vadd.f32 %v3425, %v3426
    %v3428 = vrot.slane %v3427, 4
    %v3429 = vadd.f32 %v3427, %v3428
    %v3430 = vrot.slane %v3429, 2
    %v3431 = vadd.f32 %v3429, %v3430
    %v3432 = vrot.slane %v3431, 1
    %v3433 = vadd.f32 %v3431, %v3432
    %v3434 = vadd.f32 %v1783, %v1784
    %v3435 = vadd.f32 %v3434, %v1785
    %v3436 = vadd.f32 %v3435, %v1786
    %v3437 = vadd.f32 %v3436, %v1787
    %v3438 = vadd.f32 %v3437, %v1788
    %v3439 = vadd.f32 %v3438, %v1789
    %v3440 = vadd.f32 %v3439, %v1790
    %v3441 = vadd.f32 %v3440, %v1791
    %v3442 = vadd.f32 %v3441, %v1792
    %v3443 = vadd.f32 %v3442, %v1793
    %v3444 = vadd.f32 %v3443, %v1794
    %v3445 = vsel %vm3159, %v1795, 0.0
    %v3446 = vadd.f32 %v3444, %v3445
    %v3447 = vrot.slane %v3446, 4
    %v3448 = vadd.f32 %v3446, %v3447
    %v3449 = vrot.slane %v3448, 2
    %v3450 = vadd.f32 %v3448, %v3449
    %v3451 = vrot.slane %v3450, 1
    %v3452 = vadd.f32 %v3450, %v3451
    %v3453 = vadd.f32 %v1796, %v1797
    %v3454 = vadd.f32 %v3453, %v1798
    %v3455 = vadd.f32 %v3454, %v1799
    %v3456 = vadd.f32 %v3455, %v1800
    %v3457 = vadd.f32 %v3456, %v1801
    %v3458 = vadd.f32 %v3457, %v1802
    %v3459 = vadd.f32 %v3458, %v1803
    %v3460 = vadd.f32 %v3459, %v1804
    %v3461 = vadd.f32 %v3460, %v1805
    %v3462 = vadd.f32 %v3461, %v1806
    %v3463 = vadd.f32 %v3462, %v1807
    %v3464 = vsel %vm3159, %v1808, 0.0
    %v3465 = vadd.f32 %v3463, %v3464
    %v3466 = vrot.slane %v3465, 4
    %v3467 = vadd.f32 %v3465, %v3466
    %v3468 = vrot.slane %v3467, 2
    %v3469 = vadd.f32 %v3467, %v3468
    %v3470 = vrot.slane %v3469, 1
    %v3471 = vadd.f32 %v3469, %v3470
    %v3472 = vadd.f32 %v1809, %v1810
    %v3473 = vadd.f32 %v3472, %v1811
    %v3474 = vadd.f32 %v3473, %v1812
    %v3475 = vadd.f32 %v3474, %v1813
    %v3476 = vadd.f32 %v3475, %v1814
    %v3477 = vadd.f32 %v3476, %v1815
    %v3478 = vadd.f32 %v3477, %v1816
    %v3479 = vadd.f32 %v3478, %v1817
    %v3480 = vadd.f32 %v3479, %v1818
    %v3481 = vadd.f32 %v3480, %v1819
    %v3482 = vadd.f32 %v3481, %v1820
    %v3483 = vsel %vm3159, %v1821, 0.0
    %v3484 = vadd.f32 %v3482, %v3483
    %v3485 = vrot.slane %v3484, 4
    %v3486 = vadd.f32 %v3484, %v3485
    %v3487 = vrot.slane %v3486, 2
    %v3488 = vadd.f32 %v3486, %v3487
    %v3489 = vrot.slane %v3488, 1
    %v3490 = vadd.f32 %v3488, %v3489
    %v3491 = vadd.f32 %v1822, %v1823
    %v3492 = vadd.f32 %v3491, %v1824
    %v3493 = vadd.f32 %v3492, %v1825
    %v3494 = vadd.f32 %v3493, %v1826
    %v3495 = vadd.f32 %v3494, %v1827
    %v3496 = vadd.f32 %v3495, %v1828
    %v3497 = vadd.f32 %v3496, %v1829
    %v3498 = vadd.f32 %v3497, %v1830
    %v3499 = vadd.f32 %v3498, %v1831
    %v3500 = vadd.f32 %v3499, %v1832
    %v3501 = vadd.f32 %v3500, %v1833
    %v3502 = vsel %vm3159, %v1834, 0.0
    %v3503 = vadd.f32 %v3501, %v3502
    %v3504 = vrot.slane %v3503, 4
    %v3505 = vadd.f32 %v3503, %v3504
    %v3506 = vrot.slane %v3505, 2
    %v3507 = vadd.f32 %v3505, %v3506
    %v3508 = vrot.slane %v3507, 1
    %v3509 = vadd.f32 %v3507, %v3508
    %v3510 = vadd.f32 %v1835, %v1836
    %v3511 = vadd.f32 %v3510, %v1837
    %v3512 = vadd.f32 %v3511, %v1838
    %v3513 = vadd.f32 %v3512, %v1839
    %v3514 = vadd.f32 %v3513, %v1840
    %v3515 = vadd.f32 %v3514, %v1841
    %v3516 = vadd.f32 %v3515, %v1842
    %v3517 = vadd.f32 %v3516, %v1843
    %v3518 = vadd.f32 %v3517, %v1844
    %v3519 = vadd.f32 %v3518, %v1845
    %v3520 = vadd.f32 %v3519, %v1846
    %v3521 = vsel %vm3159, %v1847, 0.0
    %v3522 = vadd.f32 %v3520, %v3521
    %v3523 = vrot.slane %v3522, 4
    %v3524 = vadd.f32 %v3522, %v3523
    %v3525 = vrot.slane %v3524, 2
    %v3526 = vadd.f32 %v3524, %v3525
    %v3527 = vrot.slane %v3526, 1
    %v3528 = vadd.f32 %v3526, %v3527
    %v3529 = vadd.f32 %v1848, %v1849
    %v3530 = vadd.f32 %v3529, %v1850
    %v3531 = vadd.f32 %v3530, %v1851
    %v3532 = vadd.f32 %v3531, %v1852
    %v3533 = vadd.f32 %v3532, %v1853
    %v3534 = vadd.f32 %v3533, %v1854
    %v3535 = vadd.f32 %v3534, %v1855
    %v3536 = vadd.f32 %v3535, %v1856
    %v3537 = vadd.f32 %v3536, %v1857
    %v3538 = vadd.f32 %v3537, %v1858
    %v3539 = vadd.f32 %v3538, %v1859
    %v3540 = vsel %vm3159, %v1860, 0.0
    %v3541 = vadd.f32 %v3539, %v3540
    %v3542 = vrot.slane %v3541, 4
    %v3543 = vadd.f32 %v3541, %v3542
    %v3544 = vrot.slane %v3543, 2
    %v3545 = vadd.f32 %v3543, %v3544
    %v3546 = vrot.slane %v3545, 1
    %v3547 = vadd.f32 %v3545, %v3546
    %v3548 = vadd.f32 %v1861, %v1862
    %v3549 = vadd.f32 %v3548, %v1863
    %v3550 = vadd.f32 %v3549, %v1864
    %v3551 = vadd.f32 %v3550, %v1865
    %v3552 = vadd.f32 %v3551, %v1866
    %v3553 = vadd.f32 %v3552, %v1867
    %v3554 = vadd.f32 %v3553, %v1868
    %v3555 = vadd.f32 %v3554, %v1869
    %v3556 = vadd.f32 %v3555, %v1870
    %v3557 = vadd.f32 %v3556, %v1871
    %v3558 = vadd.f32 %v3557, %v1872
    %v3559 = vsel %vm3159, %v1873, 0.0
    %v3560 = vadd.f32 %v3558, %v3559
    %v3561 = vrot.slane %v3560, 4
    %v3562 = vadd.f32 %v3560, %v3561
    %v3563 = vrot.slane %v3562, 2
    %v3564 = vadd.f32 %v3562, %v3563
    %v3565 = vrot.slane %v3564, 1
    %v3566 = vadd.f32 %v3564, %v3565
    %v3567 = vadd.f32 %v1874, %v1875
    %v3568 = vadd.f32 %v3567, %v1876
    %v3569 = vadd.f32 %v3568, %v1877
    %v3570 = vadd.f32 %v3569, %v1878
    %v3571 = vadd.f32 %v3570, %v1879
    %v3572 = vadd.f32 %v3571, %v1880
    %v3573 = vadd.f32 %v3572, %v1881
    %v3574 = vadd.f32 %v3573, %v1882
    %v3575 = vadd.f32 %v3574, %v1883
    %v3576 = vadd.f32 %v3575, %v1884
    %v3577 = vadd.f32 %v3576, %v1885
    %v3578 = vsel %vm3159, %v1886, 0.0
    %v3579 = vadd.f32 %v3577, %v3578
    %v3580 = vrot.slane %v3579, 4
    %v3581 = vadd.f32 %v3579, %v3580
    %v3582 = vrot.slane %v3581, 2
    %v3583 = vadd.f32 %v3581, %v3582
    %v3584 = vrot.slane %v3583, 1
    %v3585 = vadd.f32 %v3583, %v3584
    %v3586 = vadd.f32 %v1887, %v1888
    %v3587 = vadd.f32 %v3586, %v1889
    %v3588 = vadd.f32 %v3587, %v1890
    %v3589 = vadd.f32 %v3588, %v1891
    %v3590 = vadd.f32 %v3589, %v1892
    %v3591 = vadd.f32 %v3590, %v1893
    %v3592 = vadd.f32 %v3591, %v1894
    %v3593 = vadd.f32 %v3592, %v1895
    %v3594 = vadd.f32 %v3593, %v1896
    %v3595 = vadd.f32 %v3594, %v1897
    %v3596 = vadd.f32 %v3595, %v1898
    %v3597 = vsel %vm3159, %v1899, 0.0
    %v3598 = vadd.f32 %v3596, %v3597
    %v3599 = vrot.slane %v3598, 4
    %v3600 = vadd.f32 %v3598, %v3599
    %v3601 = vrot.slane %v3600, 2
    %v3602 = vadd.f32 %v3600, %v3601
    %v3603 = vrot.slane %v3602, 1
    %v3604 = vadd.f32 %v3602, %v3603
    %v3605 = vadd.f32 %v1900, %v1901
    %v3606 = vadd.f32 %v3605, %v1902
    %v3607 = vadd.f32 %v3606, %v1903
    %v3608 = vadd.f32 %v3607, %v1904
    %v3609 = vadd.f32 %v3608, %v1905
    %v3610 = vadd.f32 %v3609, %v1906
    %v3611 = vadd.f32 %v3610, %v1907
    %v3612 = vadd.f32 %v3611, %v1908
    %v3613 = vadd.f32 %v3612, %v1909
    %v3614 = vadd.f32 %v3613, %v1910
    %v3615 = vadd.f32 %v3614, %v1911
    %v3616 = vsel %vm3159, %v1912, 0.0
    %v3617 = vadd.f32 %v3615, %v3616
    %v3618 = vrot.slane %v3617, 4
    %v3619 = vadd.f32 %v3617, %v3618
    %v3620 = vrot.slane %v3619, 2
    %v3621 = vadd.f32 %v3619, %v3620
    %v3622 = vrot.slane %v3621, 1
    %v3623 = vadd.f32 %v3621, %v3622
    %v3624 = vadd.f32 %v1913, %v1914
    %v3625 = vadd.f32 %v3624, %v1915
    %v3626 = vadd.f32 %v3625, %v1916
    %v3627 = vadd.f32 %v3626, %v1917
    %v3628 = vadd.f32 %v3627, %v1918
    %v3629 = vadd.f32 %v3628, %v1919
    %v3630 = vadd.f32 %v3629, %v1920
    %v3631 = vadd.f32 %v3630, %v1921
    %v3632 = vadd.f32 %v3631, %v1922
    %v3633 = vadd.f32 %v3632, %v1923
    %v3634 = vadd.f32 %v3633, %v1924
    %v3635 = vsel %vm3159, %v1925, 0.0
    %v3636 = vadd.f32 %v3634, %v3635
    %v3637 = vrot.slane %v3636, 4
    %v3638 = vadd.f32 %v3636, %v3637
    %v3639 = vrot.slane %v3638, 2
    %v3640 = vadd.f32 %v3638, %v3639
    %v3641 = vrot.slane %v3640, 1
    %v3642 = vadd.f32 %v3640, %v3641
    %v3643 = vadd.f32 %v1926, %v1927
    %v3644 = vadd.f32 %v3643, %v1928
    %v3645 = vadd.f32 %v3644, %v1929
    %v3646 = vadd.f32 %v3645, %v1930
    %v3647 = vadd.f32 %v3646, %v1931
    %v3648 = vadd.f32 %v3647, %v1932
    %v3649 = vadd.f32 %v3648, %v1933
    %v3650 = vadd.f32 %v3649, %v1934
    %v3651 = vadd.f32 %v3650, %v1935
    %v3652 = vadd.f32 %v3651, %v1936
    %v3653 = vadd.f32 %v3652, %v1937
    %v3654 = vsel %vm3159, %v1938, 0.0
    %v3655 = vadd.f32 %v3653, %v3654
    %v3656 = vrot.slane %v3655, 4
    %v3657 = vadd.f32 %v3655, %v3656
    %v3658 = vrot.slane %v3657, 2
    %v3659 = vadd.f32 %v3657, %v3658
    %v3660 = vrot.slane %v3659, 1
    %v3661 = vadd.f32 %v3659, %v3660
    %v3662 = vadd.f32 %v1939, %v1940
    %v3663 = vadd.f32 %v3662, %v1941
    %v3664 = vadd.f32 %v3663, %v1942
    %v3665 = vadd.f32 %v3664, %v1943
    %v3666 = vadd.f32 %v3665, %v1944
    %v3667 = vadd.f32 %v3666, %v1945
    %v3668 = vadd.f32 %v3667, %v1946
    %v3669 = vadd.f32 %v3668, %v1947
    %v3670 = vadd.f32 %v3669, %v1948
    %v3671 = vadd.f32 %v3670, %v1949
    %v3672 = vadd.f32 %v3671, %v1950
    %v3673 = vsel %vm3159, %v1951, 0.0
    %v3674 = vadd.f32 %v3672, %v3673
    %v3675 = vrot.slane %v3674, 4
    %v3676 = vadd.f32 %v3674, %v3675
    %v3677 = vrot.slane %v3676, 2
    %v3678 = vadd.f32 %v3676, %v3677
    %v3679 = vrot.slane %v3678, 1
    %v3680 = vadd.f32 %v3678, %v3679
    %v3681 = vadd.f32 %v1952, %v1953
    %v3682 = vadd.f32 %v3681, %v1954
    %v3683 = vadd.f32 %v3682, %v1955
    %v3684 = vadd.f32 %v3683, %v1956
    %v3685 = vadd.f32 %v3684, %v1957
    %v3686 = vadd.f32 %v3685, %v1958
    %v3687 = vadd.f32 %v3686, %v1959
    %v3688 = vadd.f32 %v3687, %v1960
    %v3689 = vadd.f32 %v3688, %v1961
    %v3690 = vadd.f32 %v3689, %v1962
    %v3691 = vadd.f32 %v3690, %v1963
    %v3692 = vsel %vm3159, %v1964, 0.0
    %v3693 = vadd.f32 %v3691, %v3692
    %v3694 = vrot.slane %v3693, 4
    %v3695 = vadd.f32 %v3693, %v3694
    %v3696 = vrot.slane %v3695, 2
    %v3697 = vadd.f32 %v3695, %v3696
    %v3698 = vrot.slane %v3697, 1
    %v3699 = vadd.f32 %v3697, %v3698
    %v3700 = vadd.f32 %v1965, %v1966
    %v3701 = vadd.f32 %v3700, %v1967
    %v3702 = vadd.f32 %v3701, %v1968
    %v3703 = vadd.f32 %v3702, %v1969
    %v3704 = vadd.f32 %v3703, %v1970
    %v3705 = vadd.f32 %v3704, %v1971
    %v3706 = vadd.f32 %v3705, %v1972
    %v3707 = vadd.f32 %v3706, %v1973
    %v3708 = vadd.f32 %v3707, %v1974
    %v3709 = vadd.f32 %v3708, %v1975
    %v3710 = vadd.f32 %v3709, %v1976
    %v3711 = vsel %vm3159, %v1977, 0.0
    %v3712 = vadd.f32 %v3710, %v3711
    %v3713 = vrot.slane %v3712, 4
    %v3714 = vadd.f32 %v3712, %v3713
    %v3715 = vrot.slane %v3714, 2
    %v3716 = vadd.f32 %v3714, %v3715
    %v3717 = vrot.slane %v3716, 1
    %v3718 = vadd.f32 %v3716, %v3717
    %v3719 = vadd.f32 %v1978, %v1979
    %v3720 = vadd.f32 %v3719, %v1980
    %v3721 = vadd.f32 %v3720, %v1981
    %v3722 = vadd.f32 %v3721, %v1982
    %v3723 = vadd.f32 %v3722, %v1983
    %v3724 = vadd.f32 %v3723, %v1984
    %v3725 = vadd.f32 %v3724, %v1985
    %v3726 = vadd.f32 %v3725, %v1986
    %v3727 = vadd.f32 %v3726, %v1987
    %v3728 = vadd.f32 %v3727, %v1988
    %v3729 = vadd.f32 %v3728, %v1989
    %v3730 = vsel %vm3159, %v1990, 0.0
    %v3731 = vadd.f32 %v3729, %v3730
    %v3732 = vrot.slane %v3731, 4
    %v3733 = vadd.f32 %v3731, %v3732
    %v3734 = vrot.slane %v3733, 2
    %v3735 = vadd.f32 %v3733, %v3734
    %v3736 = vrot.slane %v3735, 1
    %v3737 = vadd.f32 %v3735, %v3736
    %v3738 = vadd.f32 %v1991, %v1992
    %v3739 = vadd.f32 %v3738, %v1993
    %v3740 = vadd.f32 %v3739, %v1994
    %v3741 = vadd.f32 %v3740, %v1995
    %v3742 = vadd.f32 %v3741, %v1996
    %v3743 = vadd.f32 %v3742, %v1997
    %v3744 = vadd.f32 %v3743, %v1998
    %v3745 = vadd.f32 %v3744, %v1999
    %v3746 = vadd.f32 %v3745, %v2000
    %v3747 = vadd.f32 %v3746, %v2001
    %v3748 = vadd.f32 %v3747, %v2002
    %v3749 = vsel %vm3159, %v2003, 0.0
    %v3750 = vadd.f32 %v3748, %v3749
    %v3751 = vrot.slane %v3750, 4
    %v3752 = vadd.f32 %v3750, %v3751
    %v3753 = vrot.slane %v3752, 2
    %v3754 = vadd.f32 %v3752, %v3753
    %v3755 = vrot.slane %v3754, 1
    %v3756 = vadd.f32 %v3754, %v3755
    %v3757 = vadd.f32 %v2004, %v2005
    %v3758 = vadd.f32 %v3757, %v2006
    %v3759 = vadd.f32 %v3758, %v2007
    %v3760 = vadd.f32 %v3759, %v2008
    %v3761 = vadd.f32 %v3760, %v2009
    %v3762 = vadd.f32 %v3761, %v2010
    %v3763 = vadd.f32 %v3762, %v2011
    %v3764 = vadd.f32 %v3763, %v2012
    %v3765 = vadd.f32 %v3764, %v2013
    %v3766 = vadd.f32 %v3765, %v2014
    %v3767 = vadd.f32 %v3766, %v2015
    %v3768 = vsel %vm3159, %v2016, 0.0
    %v3769 = vadd.f32 %v3767, %v3768
    %v3770 = vrot.slane %v3769, 4
    %v3771 = vadd.f32 %v3769, %v3770
    %v3772 = vrot.slane %v3771, 2
    %v3773 = vadd.f32 %v3771, %v3772
    %v3774 = vrot.slane %v3773, 1
    %v3775 = vadd.f32 %v3773, %v3774
    %v3776 = vadd.f32 %v2017, %v2018
    %v3777 = vadd.f32 %v3776, %v2019
    %v3778 = vadd.f32 %v3777, %v2020
    %v3779 = vadd.f32 %v3778, %v2021
    %v3780 = vadd.f32 %v3779, %v2022
    %v3781 = vadd.f32 %v3780, %v2023
    %v3782 = vadd.f32 %v3781, %v2024
    %v3783 = vadd.f32 %v3782, %v2025
    %v3784 = vadd.f32 %v3783, %v2026
    %v3785 = vadd.f32 %v3784, %v2027
    %v3786 = vadd.f32 %v3785, %v2028
    %v3787 = vsel %vm3159, %v2029, 0.0
    %v3788 = vadd.f32 %v3786, %v3787
    %v3789 = vrot.slane %v3788, 4
    %v3790 = vadd.f32 %v3788, %v3789
    %v3791 = vrot.slane %v3790, 2
    %v3792 = vadd.f32 %v3790, %v3791
    %v3793 = vrot.slane %v3792, 1
    %v3794 = vadd.f32 %v3792, %v3793
    %v3795 = vadd.f32 %v2030, %v2031
    %v3796 = vadd.f32 %v3795, %v2032
    %v3797 = vadd.f32 %v3796, %v2033
    %v3798 = vadd.f32 %v3797, %v2034
    %v3799 = vadd.f32 %v3798, %v2035
    %v3800 = vadd.f32 %v3799, %v2036
    %v3801 = vadd.f32 %v3800, %v2037
    %v3802 = vadd.f32 %v3801, %v2038
    %v3803 = vadd.f32 %v3802, %v2039
    %v3804 = vadd.f32 %v3803, %v2040
    %v3805 = vadd.f32 %v3804, %v2041
    %v3806 = vsel %vm3159, %v2042, 0.0
    %v3807 = vadd.f32 %v3805, %v3806
    %v3808 = vrot.slane %v3807, 4
    %v3809 = vadd.f32 %v3807, %v3808
    %v3810 = vrot.slane %v3809, 2
    %v3811 = vadd.f32 %v3809, %v3810
    %v3812 = vrot.slane %v3811, 1
    %v3813 = vadd.f32 %v3811, %v3812
    %v3814 = vadd.f32 %v2043, %v2044
    %v3815 = vadd.f32 %v3814, %v2045
    %v3816 = vadd.f32 %v3815, %v2046
    %v3817 = vadd.f32 %v3816, %v2047
    %v3818 = vadd.f32 %v3817, %v2048
    %v3819 = vadd.f32 %v3818, %v2049
    %v3820 = vadd.f32 %v3819, %v2050
    %v3821 = vadd.f32 %v3820, %v2051
    %v3822 = vadd.f32 %v3821, %v2052
    %v3823 = vadd.f32 %v3822, %v2053
    %v3824 = vadd.f32 %v3823, %v2054
    %v3825 = vsel %vm3159, %v2055, 0.0
    %v3826 = vadd.f32 %v3824, %v3825
    %v3827 = vrot.slane %v3826, 4
    %v3828 = vadd.f32 %v3826, %v3827
    %v3829 = vrot.slane %v3828, 2
    %v3830 = vadd.f32 %v3828, %v3829
    %v3831 = vrot.slane %v3830, 1
    %v3832 = vadd.f32 %v3830, %v3831
    %v3833 = vadd.f32 %v2056, %v2057
    %v3834 = vadd.f32 %v3833, %v2058
    %v3835 = vadd.f32 %v3834, %v2059
    %v3836 = vadd.f32 %v3835, %v2060
    %v3837 = vadd.f32 %v3836, %v2061
    %v3838 = vadd.f32 %v3837, %v2062
    %v3839 = vadd.f32 %v3838, %v2063
    %v3840 = vadd.f32 %v3839, %v2064
    %v3841 = vadd.f32 %v3840, %v2065
    %v3842 = vadd.f32 %v3841, %v2066
    %v3843 = vadd.f32 %v3842, %v2067
    %v3844 = vsel %vm3159, %v2068, 0.0
    %v3845 = vadd.f32 %v3843, %v3844
    %v3846 = vrot.slane %v3845, 4
    %v3847 = vadd.f32 %v3845, %v3846
    %v3848 = vrot.slane %v3847, 2
    %v3849 = vadd.f32 %v3847, %v3848
    %v3850 = vrot.slane %v3849, 1
    %v3851 = vadd.f32 %v3849, %v3850
    %v3852 = vadd.f32 %v2069, %v2070
    %v3853 = vadd.f32 %v3852, %v2071
    %v3854 = vadd.f32 %v3853, %v2072
    %v3855 = vadd.f32 %v3854, %v2073
    %v3856 = vadd.f32 %v3855, %v2074
    %v3857 = vadd.f32 %v3856, %v2075
    %v3858 = vadd.f32 %v3857, %v2076
    %v3859 = vadd.f32 %v3858, %v2077
    %v3860 = vadd.f32 %v3859, %v2078
    %v3861 = vadd.f32 %v3860, %v2079
    %v3862 = vadd.f32 %v3861, %v2080
    %v3863 = vsel %vm3159, %v2081, 0.0
    %v3864 = vadd.f32 %v3862, %v3863
    %v3865 = vrot.slane %v3864, 4
    %v3866 = vadd.f32 %v3864, %v3865
    %v3867 = vrot.slane %v3866, 2
    %v3868 = vadd.f32 %v3866, %v3867
    %v3869 = vrot.slane %v3868, 1
    %v3870 = vadd.f32 %v3868, %v3869
    %v3871 = vadd.f32 %v2082, %v2083
    %v3872 = vadd.f32 %v3871, %v2084
    %v3873 = vadd.f32 %v3872, %v2085
    %v3874 = vadd.f32 %v3873, %v2086
    %v3875 = vadd.f32 %v3874, %v2087
    %v3876 = vadd.f32 %v3875, %v2088
    %v3877 = vadd.f32 %v3876, %v2089
    %v3878 = vadd.f32 %v3877, %v2090
    %v3879 = vadd.f32 %v3878, %v2091
    %v3880 = vadd.f32 %v3879, %v2092
    %v3881 = vadd.f32 %v3880, %v2093
    %v3882 = vsel %vm3159, %v2094, 0.0
    %v3883 = vadd.f32 %v3881, %v3882
    %v3884 = vrot.slane %v3883, 4
    %v3885 = vadd.f32 %v3883, %v3884
    %v3886 = vrot.slane %v3885, 2
    %v3887 = vadd.f32 %v3885, %v3886
    %v3888 = vrot.slane %v3887, 1
    %v3889 = vadd.f32 %v3887, %v3888
    %v3890 = vadd.f32 %v2095, %v2096
    %v3891 = vadd.f32 %v3890, %v2097
    %v3892 = vadd.f32 %v3891, %v2098
    %v3893 = vadd.f32 %v3892, %v2099
    %v3894 = vadd.f32 %v3893, %v2100
    %v3895 = vadd.f32 %v3894, %v2101
    %v3896 = vadd.f32 %v3895, %v2102
    %v3897 = vadd.f32 %v3896, %v2103
    %v3898 = vadd.f32 %v3897, %v2104
    %v3899 = vadd.f32 %v3898, %v2105
    %v3900 = vadd.f32 %v3899, %v2106
    %v3901 = vsel %vm3159, %v2107, 0.0
    %v3902 = vadd.f32 %v3900, %v3901
    %v3903 = vrot.slane %v3902, 4
    %v3904 = vadd.f32 %v3902, %v3903
    %v3905 = vrot.slane %v3904, 2
    %v3906 = vadd.f32 %v3904, %v3905
    %v3907 = vrot.slane %v3906, 1
    %v3908 = vadd.f32 %v3906, %v3907
    %v3909 = vadd.f32 %v2108, %v2109
    %v3910 = vadd.f32 %v3909, %v2110
    %v3911 = vadd.f32 %v3910, %v2111
    %v3912 = vadd.f32 %v3911, %v2112
    %v3913 = vadd.f32 %v3912, %v2113
    %v3914 = vadd.f32 %v3913, %v2114
    %v3915 = vadd.f32 %v3914, %v2115
    %v3916 = vadd.f32 %v3915, %v2116
    %v3917 = vadd.f32 %v3916, %v2117
    %v3918 = vadd.f32 %v3917, %v2118
    %v3919 = vadd.f32 %v3918, %v2119
    %v3920 = vsel %vm3159, %v2120, 0.0
    %v3921 = vadd.f32 %v3919, %v3920
    %v3922 = vrot.slane %v3921, 4
    %v3923 = vadd.f32 %v3921, %v3922
    %v3924 = vrot.slane %v3923, 2
    %v3925 = vadd.f32 %v3923, %v3924
    %v3926 = vrot.slane %v3925, 1
    %v3927 = vadd.f32 %v3925, %v3926
    %v3928 = vadd.f32 %v2121, %v2122
    %v3929 = vadd.f32 %v3928, %v2123
    %v3930 = vadd.f32 %v3929, %v2124
    %v3931 = vadd.f32 %v3930, %v2125
    %v3932 = vadd.f32 %v3931, %v2126
    %v3933 = vadd.f32 %v3932, %v2127
    %v3934 = vadd.f32 %v3933, %v2128
    %v3935 = vadd.f32 %v3934, %v2129
    %v3936 = vadd.f32 %v3935, %v2130
    %v3937 = vadd.f32 %v3936, %v2131
    %v3938 = vadd.f32 %v3937, %v2132
    %v3939 = vsel %vm3159, %v2133, 0.0
    %v3940 = vadd.f32 %v3938, %v3939
    %v3941 = vrot.slane %v3940, 4
    %v3942 = vadd.f32 %v3940, %v3941
    %v3943 = vrot.slane %v3942, 2
    %v3944 = vadd.f32 %v3942, %v3943
    %v3945 = vrot.slane %v3944, 1
    %v3946 = vadd.f32 %v3944, %v3945
    %v3947 = vadd.f32 %v2134, %v2135
    %v3948 = vadd.f32 %v3947, %v2136
    %v3949 = vadd.f32 %v3948, %v2137
    %v3950 = vadd.f32 %v3949, %v2138
    %v3951 = vadd.f32 %v3950, %v2139
    %v3952 = vadd.f32 %v3951, %v2140
    %v3953 = vadd.f32 %v3952, %v2141
    %v3954 = vadd.f32 %v3953, %v2142
    %v3955 = vadd.f32 %v3954, %v2143
    %v3956 = vadd.f32 %v3955, %v2144
    %v3957 = vadd.f32 %v3956, %v2145
    %v3958 = vsel %vm3159, %v2146, 0.0
    %v3959 = vadd.f32 %v3957, %v3958
    %v3960 = vrot.slane %v3959, 4
    %v3961 = vadd.f32 %v3959, %v3960
    %v3962 = vrot.slane %v3961, 2
    %v3963 = vadd.f32 %v3961, %v3962
    %v3964 = vrot.slane %v3963, 1
    %v3965 = vadd.f32 %v3963, %v3964
    %v3966 = vadd.f32 %v2147, %v2148
    %v3967 = vadd.f32 %v3966, %v2149
    %v3968 = vadd.f32 %v3967, %v2150
    %v3969 = vadd.f32 %v3968, %v2151
    %v3970 = vadd.f32 %v3969, %v2152
    %v3971 = vadd.f32 %v3970, %v2153
    %v3972 = vadd.f32 %v3971, %v2154
    %v3973 = vadd.f32 %v3972, %v2155
    %v3974 = vadd.f32 %v3973, %v2156
    %v3975 = vadd.f32 %v3974, %v2157
    %v3976 = vadd.f32 %v3975, %v2158
    %v3977 = vsel %vm3159, %v2159, 0.0
    %v3978 = vadd.f32 %v3976, %v3977
    %v3979 = vrot.slane %v3978, 4
    %v3980 = vadd.f32 %v3978, %v3979
    %v3981 = vrot.slane %v3980, 2
    %v3982 = vadd.f32 %v3980, %v3981
    %v3983 = vrot.slane %v3982, 1
    %v3984 = vadd.f32 %v3982, %v3983
    %v3985 = vadd.f32 %v2160, %v2161
    %v3986 = vadd.f32 %v3985, %v2162
    %v3987 = vadd.f32 %v3986, %v2163
    %v3988 = vadd.f32 %v3987, %v2164
    %v3989 = vadd.f32 %v3988, %v2165
    %v3990 = vadd.f32 %v3989, %v2166
    %v3991 = vadd.f32 %v3990, %v2167
    %v3992 = vadd.f32 %v3991, %v2168
    %v3993 = vadd.f32 %v3992, %v2169
    %v3994 = vadd.f32 %v3993, %v2170
    %v3995 = vadd.f32 %v3994, %v2171
    %v3996 = vsel %vm3159, %v2172, 0.0
    %v3997 = vadd.f32 %v3995, %v3996
    %v3998 = vrot.slane %v3997, 4
    %v3999 = vadd.f32 %v3997, %v3998
    %v4000 = vrot.slane %v3999, 2
    %v4001 = vadd.f32 %v3999, %v4000
    %v4002 = vrot.slane %v4001, 1
    %v4003 = vadd.f32 %v4001, %v4002
    %v4004 = vadd.f32 %v2173, %v2174
    %v4005 = vadd.f32 %v4004, %v2175
    %v4006 = vadd.f32 %v4005, %v2176
    %v4007 = vadd.f32 %v4006, %v2177
    %v4008 = vadd.f32 %v4007, %v2178
    %v4009 = vadd.f32 %v4008, %v2179
    %v4010 = vadd.f32 %v4009, %v2180
    %v4011 = vadd.f32 %v4010, %v2181
    %v4012 = vadd.f32 %v4011, %v2182
    %v4013 = vadd.f32 %v4012, %v2183
    %v4014 = vadd.f32 %v4013, %v2184
    %v4015 = vsel %vm3159, %v2185, 0.0
    %v4016 = vadd.f32 %v4014, %v4015
    %v4017 = vrot.slane %v4016, 4
    %v4018 = vadd.f32 %v4016, %v4017
    %v4019 = vrot.slane %v4018, 2
    %v4020 = vadd.f32 %v4018, %v4019
    %v4021 = vrot.slane %v4020, 1
    %v4022 = vadd.f32 %v4020, %v4021
    %v4023 = vadd.f32 %v2186, %v2187
    %v4024 = vadd.f32 %v4023, %v2188
    %v4025 = vadd.f32 %v4024, %v2189
    %v4026 = vadd.f32 %v4025, %v2190
    %v4027 = vadd.f32 %v4026, %v2191
    %v4028 = vadd.f32 %v4027, %v2192
    %v4029 = vadd.f32 %v4028, %v2193
    %v4030 = vadd.f32 %v4029, %v2194
    %v4031 = vadd.f32 %v4030, %v2195
    %v4032 = vadd.f32 %v4031, %v2196
    %v4033 = vadd.f32 %v4032, %v2197
    %v4034 = vsel %vm3159, %v2198, 0.0
    %v4035 = vadd.f32 %v4033, %v4034
    %v4036 = vrot.slane %v4035, 4
    %v4037 = vadd.f32 %v4035, %v4036
    %v4038 = vrot.slane %v4037, 2
    %v4039 = vadd.f32 %v4037, %v4038
    %v4040 = vrot.slane %v4039, 1
    %v4041 = vadd.f32 %v4039, %v4040
    %v4042 = vadd.f32 %v2199, %v2200
    %v4043 = vadd.f32 %v4042, %v2201
    %v4044 = vadd.f32 %v4043, %v2202
    %v4045 = vadd.f32 %v4044, %v2203
    %v4046 = vadd.f32 %v4045, %v2204
    %v4047 = vadd.f32 %v4046, %v2205
    %v4048 = vadd.f32 %v4047, %v2206
    %v4049 = vadd.f32 %v4048, %v2207
    %v4050 = vadd.f32 %v4049, %v2208
    %v4051 = vadd.f32 %v4050, %v2209
    %v4052 = vadd.f32 %v4051, %v2210
    %v4053 = vsel %vm3159, %v2211, 0.0
    %v4054 = vadd.f32 %v4052, %v4053
    %v4055 = vrot.slane %v4054, 4
    %v4056 = vadd.f32 %v4054, %v4055
    %v4057 = vrot.slane %v4056, 2
    %v4058 = vadd.f32 %v4056, %v4057
    %v4059 = vrot.slane %v4058, 1
    %v4060 = vadd.f32 %v4058, %v4059
    %v4061 = vadd.f32 %v2212, %v2213
    %v4062 = vadd.f32 %v4061, %v2214
    %v4063 = vadd.f32 %v4062, %v2215
    %v4064 = vadd.f32 %v4063, %v2216
    %v4065 = vadd.f32 %v4064, %v2217
    %v4066 = vadd.f32 %v4065, %v2218
    %v4067 = vadd.f32 %v4066, %v2219
    %v4068 = vadd.f32 %v4067, %v2220
    %v4069 = vadd.f32 %v4068, %v2221
    %v4070 = vadd.f32 %v4069, %v2222
    %v4071 = vadd.f32 %v4070, %v2223
    %v4072 = vsel %vm3159, %v2224, 0.0
    %v4073 = vadd.f32 %v4071, %v4072
    %v4074 = vrot.slane %v4073, 4
    %v4075 = vadd.f32 %v4073, %v4074
    %v4076 = vrot.slane %v4075, 2
    %v4077 = vadd.f32 %v4075, %v4076
    %v4078 = vrot.slane %v4077, 1
    %v4079 = vadd.f32 %v4077, %v4078
    %v4080 = vadd.f32 %v2225, %v2226
    %v4081 = vadd.f32 %v4080, %v2227
    %v4082 = vadd.f32 %v4081, %v2228
    %v4083 = vadd.f32 %v4082, %v2229
    %v4084 = vadd.f32 %v4083, %v2230
    %v4085 = vadd.f32 %v4084, %v2231
    %v4086 = vadd.f32 %v4085, %v2232
    %v4087 = vadd.f32 %v4086, %v2233
    %v4088 = vadd.f32 %v4087, %v2234
    %v4089 = vadd.f32 %v4088, %v2235
    %v4090 = vadd.f32 %v4089, %v2236
    %v4091 = vsel %vm3159, %v2237, 0.0
    %v4092 = vadd.f32 %v4090, %v4091
    %v4093 = vrot.slane %v4092, 4
    %v4094 = vadd.f32 %v4092, %v4093
    %v4095 = vrot.slane %v4094, 2
    %v4096 = vadd.f32 %v4094, %v4095
    %v4097 = vrot.slane %v4096, 1
    %v4098 = vadd.f32 %v4096, %v4097
    %v4099 = vadd.f32 %v2238, %v2239
    %v4100 = vadd.f32 %v4099, %v2240
    %v4101 = vadd.f32 %v4100, %v2241
    %v4102 = vadd.f32 %v4101, %v2242
    %v4103 = vadd.f32 %v4102, %v2243
    %v4104 = vadd.f32 %v4103, %v2244
    %v4105 = vadd.f32 %v4104, %v2245
    %v4106 = vadd.f32 %v4105, %v2246
    %v4107 = vadd.f32 %v4106, %v2247
    %v4108 = vadd.f32 %v4107, %v2248
    %v4109 = vadd.f32 %v4108, %v2249
    %v4110 = vsel %vm3159, %v2250, 0.0
    %v4111 = vadd.f32 %v4109, %v4110
    %v4112 = vrot.slane %v4111, 4
    %v4113 = vadd.f32 %v4111, %v4112
    %v4114 = vrot.slane %v4113, 2
    %v4115 = vadd.f32 %v4113, %v4114
    %v4116 = vrot.slane %v4115, 1
    %v4117 = vadd.f32 %v4115, %v4116
    %v4118 = vadd.f32 %v2251, %v2252
    %v4119 = vadd.f32 %v4118, %v2253
    %v4120 = vadd.f32 %v4119, %v2254
    %v4121 = vadd.f32 %v4120, %v2255
    %v4122 = vadd.f32 %v4121, %v2256
    %v4123 = vadd.f32 %v4122, %v2257
    %v4124 = vadd.f32 %v4123, %v2258
    %v4125 = vadd.f32 %v4124, %v2259
    %v4126 = vadd.f32 %v4125, %v2260
    %v4127 = vadd.f32 %v4126, %v2261
    %v4128 = vadd.f32 %v4127, %v2262
    %v4129 = vsel %vm3159, %v2263, 0.0
    %v4130 = vadd.f32 %v4128, %v4129
    %v4131 = vrot.slane %v4130, 4
    %v4132 = vadd.f32 %v4130, %v4131
    %v4133 = vrot.slane %v4132, 2
    %v4134 = vadd.f32 %v4132, %v4133
    %v4135 = vrot.slane %v4134, 1
    %v4136 = vadd.f32 %v4134, %v4135
    %v4137 = vadd.f32 %v2264, %v2265
    %v4138 = vadd.f32 %v4137, %v2266
    %v4139 = vadd.f32 %v4138, %v2267
    %v4140 = vadd.f32 %v4139, %v2268
    %v4141 = vadd.f32 %v4140, %v2269
    %v4142 = vadd.f32 %v4141, %v2270
    %v4143 = vadd.f32 %v4142, %v2271
    %v4144 = vadd.f32 %v4143, %v2272
    %v4145 = vadd.f32 %v4144, %v2273
    %v4146 = vadd.f32 %v4145, %v2274
    %v4147 = vadd.f32 %v4146, %v2275
    %v4148 = vsel %vm3159, %v2276, 0.0
    %v4149 = vadd.f32 %v4147, %v4148
    %v4150 = vrot.slane %v4149, 4
    %v4151 = vadd.f32 %v4149, %v4150
    %v4152 = vrot.slane %v4151, 2
    %v4153 = vadd.f32 %v4151, %v4152
    %v4154 = vrot.slane %v4153, 1
    %v4155 = vadd.f32 %v4153, %v4154
    %v4156 = vadd.f32 %v2277, %v2278
    %v4157 = vadd.f32 %v4156, %v2279
    %v4158 = vadd.f32 %v4157, %v2280
    %v4159 = vadd.f32 %v4158, %v2281
    %v4160 = vadd.f32 %v4159, %v2282
    %v4161 = vadd.f32 %v4160, %v2283
    %v4162 = vadd.f32 %v4161, %v2284
    %v4163 = vadd.f32 %v4162, %v2285
    %v4164 = vadd.f32 %v4163, %v2286
    %v4165 = vadd.f32 %v4164, %v2287
    %v4166 = vadd.f32 %v4165, %v2288
    %v4167 = vsel %vm3159, %v2289, 0.0
    %v4168 = vadd.f32 %v4166, %v4167
    %v4169 = vrot.slane %v4168, 4
    %v4170 = vadd.f32 %v4168, %v4169
    %v4171 = vrot.slane %v4170, 2
    %v4172 = vadd.f32 %v4170, %v4171
    %v4173 = vrot.slane %v4172, 1
    %v4174 = vadd.f32 %v4172, %v4173
    %v4175 = vadd.f32 %v2290, %v2291
    %v4176 = vadd.f32 %v4175, %v2292
    %v4177 = vadd.f32 %v4176, %v2293
    %v4178 = vadd.f32 %v4177, %v2294
    %v4179 = vadd.f32 %v4178, %v2295
    %v4180 = vadd.f32 %v4179, %v2296
    %v4181 = vadd.f32 %v4180, %v2297
    %v4182 = vadd.f32 %v4181, %v2298
    %v4183 = vadd.f32 %v4182, %v2299
    %v4184 = vadd.f32 %v4183, %v2300
    %v4185 = vadd.f32 %v4184, %v2301
    %v4186 = vsel %vm3159, %v2302, 0.0
    %v4187 = vadd.f32 %v4185, %v4186
    %v4188 = vrot.slane %v4187, 4
    %v4189 = vadd.f32 %v4187, %v4188
    %v4190 = vrot.slane %v4189, 2
    %v4191 = vadd.f32 %v4189, %v4190
    %v4192 = vrot.slane %v4191, 1
    %v4193 = vadd.f32 %v4191, %v4192
    %v4194 = vadd.f32 %v2303, %v2304
    %v4195 = vadd.f32 %v4194, %v2305
    %v4196 = vadd.f32 %v4195, %v2306
    %v4197 = vadd.f32 %v4196, %v2307
    %v4198 = vadd.f32 %v4197, %v2308
    %v4199 = vadd.f32 %v4198, %v2309
    %v4200 = vadd.f32 %v4199, %v2310
    %v4201 = vadd.f32 %v4200, %v2311
    %v4202 = vadd.f32 %v4201, %v2312
    %v4203 = vadd.f32 %v4202, %v2313
    %v4204 = vadd.f32 %v4203, %v2314
    %v4205 = vsel %vm3159, %v2315, 0.0
    %v4206 = vadd.f32 %v4204, %v4205
    %v4207 = vrot.slane %v4206, 4
    %v4208 = vadd.f32 %v4206, %v4207
    %v4209 = vrot.slane %v4208, 2
    %v4210 = vadd.f32 %v4208, %v4209
    %v4211 = vrot.slane %v4210, 1
    %v4212 = vadd.f32 %v4210, %v4211
    %v4213 = vadd.f32 %v2316, %v2317
    %v4214 = vadd.f32 %v4213, %v2318
    %v4215 = vadd.f32 %v4214, %v2319
    %v4216 = vadd.f32 %v4215, %v2320
    %v4217 = vadd.f32 %v4216, %v2321
    %v4218 = vadd.f32 %v4217, %v2322
    %v4219 = vadd.f32 %v4218, %v2323
    %v4220 = vadd.f32 %v4219, %v2324
    %v4221 = vadd.f32 %v4220, %v2325
    %v4222 = vadd.f32 %v4221, %v2326
    %v4223 = vadd.f32 %v4222, %v2327
    %v4224 = vsel %vm3159, %v2328, 0.0
    %v4225 = vadd.f32 %v4223, %v4224
    %v4226 = vrot.slane %v4225, 4
    %v4227 = vadd.f32 %v4225, %v4226
    %v4228 = vrot.slane %v4227, 2
    %v4229 = vadd.f32 %v4227, %v4228
    %v4230 = vrot.slane %v4229, 1
    %v4231 = vadd.f32 %v4229, %v4230
    %v4232 = vadd.f32 %v2329, %v2330
    %v4233 = vadd.f32 %v4232, %v2331
    %v4234 = vadd.f32 %v4233, %v2332
    %v4235 = vadd.f32 %v4234, %v2333
    %v4236 = vadd.f32 %v4235, %v2334
    %v4237 = vadd.f32 %v4236, %v2335
    %v4238 = vadd.f32 %v4237, %v2336
    %v4239 = vadd.f32 %v4238, %v2337
    %v4240 = vadd.f32 %v4239, %v2338
    %v4241 = vadd.f32 %v4240, %v2339
    %v4242 = vadd.f32 %v4241, %v2340
    %v4243 = vsel %vm3159, %v2341, 0.0
    %v4244 = vadd.f32 %v4242, %v4243
    %v4245 = vrot.slane %v4244, 4
    %v4246 = vadd.f32 %v4244, %v4245
    %v4247 = vrot.slane %v4246, 2
    %v4248 = vadd.f32 %v4246, %v4247
    %v4249 = vrot.slane %v4248, 1
    %v4250 = vadd.f32 %v4248, %v4249
    %v4251 = vadd.f32 %v2342, %v2343
    %v4252 = vadd.f32 %v4251, %v2344
    %v4253 = vadd.f32 %v4252, %v2345
    %v4254 = vadd.f32 %v4253, %v2346
    %v4255 = vadd.f32 %v4254, %v2347
    %v4256 = vadd.f32 %v4255, %v2348
    %v4257 = vadd.f32 %v4256, %v2349
    %v4258 = vadd.f32 %v4257, %v2350
    %v4259 = vadd.f32 %v4258, %v2351
    %v4260 = vadd.f32 %v4259, %v2352
    %v4261 = vadd.f32 %v4260, %v2353
    %v4262 = vsel %vm3159, %v2354, 0.0
    %v4263 = vadd.f32 %v4261, %v4262
    %v4264 = vrot.slane %v4263, 4
    %v4265 = vadd.f32 %v4263, %v4264
    %v4266 = vrot.slane %v4265, 2
    %v4267 = vadd.f32 %v4265, %v4266
    %v4268 = vrot.slane %v4267, 1
    %v4269 = vadd.f32 %v4267, %v4268
    %v4270 = vadd.f32 %v2355, %v2356
    %v4271 = vadd.f32 %v4270, %v2357
    %v4272 = vadd.f32 %v4271, %v2358
    %v4273 = vadd.f32 %v4272, %v2359
    %v4274 = vadd.f32 %v4273, %v2360
    %v4275 = vadd.f32 %v4274, %v2361
    %v4276 = vadd.f32 %v4275, %v2362
    %v4277 = vadd.f32 %v4276, %v2363
    %v4278 = vadd.f32 %v4277, %v2364
    %v4279 = vadd.f32 %v4278, %v2365
    %v4280 = vadd.f32 %v4279, %v2366
    %v4281 = vsel %vm3159, %v2367, 0.0
    %v4282 = vadd.f32 %v4280, %v4281
    %v4283 = vrot.slane %v4282, 4
    %v4284 = vadd.f32 %v4282, %v4283
    %v4285 = vrot.slane %v4284, 2
    %v4286 = vadd.f32 %v4284, %v4285
    %v4287 = vrot.slane %v4286, 1
    %v4288 = vadd.f32 %v4286, %v4287
    %v4289 = vadd.f32 %v2368, %v2369
    %v4290 = vadd.f32 %v4289, %v2370
    %v4291 = vadd.f32 %v4290, %v2371
    %v4292 = vadd.f32 %v4291, %v2372
    %v4293 = vadd.f32 %v4292, %v2373
    %v4294 = vadd.f32 %v4293, %v2374
    %v4295 = vadd.f32 %v4294, %v2375
    %v4296 = vadd.f32 %v4295, %v2376
    %v4297 = vadd.f32 %v4296, %v2377
    %v4298 = vadd.f32 %v4297, %v2378
    %v4299 = vadd.f32 %v4298, %v2379
    %v4300 = vsel %vm3159, %v2380, 0.0
    %v4301 = vadd.f32 %v4299, %v4300
    %v4302 = vrot.slane %v4301, 4
    %v4303 = vadd.f32 %v4301, %v4302
    %v4304 = vrot.slane %v4303, 2
    %v4305 = vadd.f32 %v4303, %v4304
    %v4306 = vrot.slane %v4305, 1
    %v4307 = vadd.f32 %v4305, %v4306
    %v4308 = vadd.f32 %v2381, %v2382
    %v4309 = vadd.f32 %v4308, %v2383
    %v4310 = vadd.f32 %v4309, %v2384
    %v4311 = vadd.f32 %v4310, %v2385
    %v4312 = vadd.f32 %v4311, %v2386
    %v4313 = vadd.f32 %v4312, %v2387
    %v4314 = vadd.f32 %v4313, %v2388
    %v4315 = vadd.f32 %v4314, %v2389
    %v4316 = vadd.f32 %v4315, %v2390
    %v4317 = vadd.f32 %v4316, %v2391
    %v4318 = vadd.f32 %v4317, %v2392
    %v4319 = vsel %vm3159, %v2393, 0.0
    %v4320 = vadd.f32 %v4318, %v4319
    %v4321 = vrot.slane %v4320, 4
    %v4322 = vadd.f32 %v4320, %v4321
    %v4323 = vrot.slane %v4322, 2
    %v4324 = vadd.f32 %v4322, %v4323
    %v4325 = vrot.slane %v4324, 1
    %v4326 = vadd.f32 %v4324, %v4325
    %v4327 = vadd.f32 %v2394, %v2395
    %v4328 = vadd.f32 %v4327, %v2396
    %v4329 = vadd.f32 %v4328, %v2397
    %v4330 = vadd.f32 %v4329, %v2398
    %v4331 = vadd.f32 %v4330, %v2399
    %v4332 = vadd.f32 %v4331, %v2400
    %v4333 = vadd.f32 %v4332, %v2401
    %v4334 = vadd.f32 %v4333, %v2402
    %v4335 = vadd.f32 %v4334, %v2403
    %v4336 = vadd.f32 %v4335, %v2404
    %v4337 = vadd.f32 %v4336, %v2405
    %v4338 = vsel %vm3159, %v2406, 0.0
    %v4339 = vadd.f32 %v4337, %v4338
    %v4340 = vrot.slane %v4339, 4
    %v4341 = vadd.f32 %v4339, %v4340
    %v4342 = vrot.slane %v4341, 2
    %v4343 = vadd.f32 %v4341, %v4342
    %v4344 = vrot.slane %v4343, 1
    %v4345 = vadd.f32 %v4343, %v4344
    %v4346 = vadd.f32 %v2407, %v2408
    %v4347 = vadd.f32 %v4346, %v2409
    %v4348 = vadd.f32 %v4347, %v2410
    %v4349 = vadd.f32 %v4348, %v2411
    %v4350 = vadd.f32 %v4349, %v2412
    %v4351 = vadd.f32 %v4350, %v2413
    %v4352 = vadd.f32 %v4351, %v2414
    %v4353 = vadd.f32 %v4352, %v2415
    %v4354 = vadd.f32 %v4353, %v2416
    %v4355 = vadd.f32 %v4354, %v2417
    %v4356 = vadd.f32 %v4355, %v2418
    %v4357 = vsel %vm3159, %v2419, 0.0
    %v4358 = vadd.f32 %v4356, %v4357
    %v4359 = vrot.slane %v4358, 4
    %v4360 = vadd.f32 %v4358, %v4359
    %v4361 = vrot.slane %v4360, 2
    %v4362 = vadd.f32 %v4360, %v4361
    %v4363 = vrot.slane %v4362, 1
    %v4364 = vadd.f32 %v4362, %v4363
    %v4365 = vadd.f32 %v2420, %v2421
    %v4366 = vadd.f32 %v4365, %v2422
    %v4367 = vadd.f32 %v4366, %v2423
    %v4368 = vadd.f32 %v4367, %v2424
    %v4369 = vadd.f32 %v4368, %v2425
    %v4370 = vadd.f32 %v4369, %v2426
    %v4371 = vadd.f32 %v4370, %v2427
    %v4372 = vadd.f32 %v4371, %v2428
    %v4373 = vadd.f32 %v4372, %v2429
    %v4374 = vadd.f32 %v4373, %v2430
    %v4375 = vadd.f32 %v4374, %v2431
    %v4376 = vsel %vm3159, %v2432, 0.0
    %v4377 = vadd.f32 %v4375, %v4376
    %v4378 = vrot.slane %v4377, 4
    %v4379 = vadd.f32 %v4377, %v4378
    %v4380 = vrot.slane %v4379, 2
    %v4381 = vadd.f32 %v4379, %v4380
    %v4382 = vrot.slane %v4381, 1
    %v4383 = vadd.f32 %v4381, %v4382
    %v4384 = vadd.f32 %v2433, %v2434
    %v4385 = vadd.f32 %v4384, %v2435
    %v4386 = vadd.f32 %v4385, %v2436
    %v4387 = vadd.f32 %v4386, %v2437
    %v4388 = vadd.f32 %v4387, %v2438
    %v4389 = vadd.f32 %v4388, %v2439
    %v4390 = vadd.f32 %v4389, %v2440
    %v4391 = vadd.f32 %v4390, %v2441
    %v4392 = vadd.f32 %v4391, %v2442
    %v4393 = vadd.f32 %v4392, %v2443
    %v4394 = vadd.f32 %v4393, %v2444
    %v4395 = vsel %vm3159, %v2445, 0.0
    %v4396 = vadd.f32 %v4394, %v4395
    %v4397 = vrot.slane %v4396, 4
    %v4398 = vadd.f32 %v4396, %v4397
    %v4399 = vrot.slane %v4398, 2
    %v4400 = vadd.f32 %v4398, %v4399
    %v4401 = vrot.slane %v4400, 1
    %v4402 = vadd.f32 %v4400, %v4401
    %v4403 = vadd.f32 %v2446, %v2447
    %v4404 = vadd.f32 %v4403, %v2448
    %v4405 = vadd.f32 %v4404, %v2449
    %v4406 = vadd.f32 %v4405, %v2450
    %v4407 = vadd.f32 %v4406, %v2451
    %v4408 = vadd.f32 %v4407, %v2452
    %v4409 = vadd.f32 %v4408, %v2453
    %v4410 = vadd.f32 %v4409, %v2454
    %v4411 = vadd.f32 %v4410, %v2455
    %v4412 = vadd.f32 %v4411, %v2456
    %v4413 = vadd.f32 %v4412, %v2457
    %v4414 = vsel %vm3159, %v2458, 0.0
    %v4415 = vadd.f32 %v4413, %v4414
    %v4416 = vrot.slane %v4415, 4
    %v4417 = vadd.f32 %v4415, %v4416
    %v4418 = vrot.slane %v4417, 2
    %v4419 = vadd.f32 %v4417, %v4418
    %v4420 = vrot.slane %v4419, 1
    %v4421 = vadd.f32 %v4419, %v4420
    %v4422 = vadd.f32 %v2459, %v2460
    %v4423 = vadd.f32 %v4422, %v2461
    %v4424 = vadd.f32 %v4423, %v2462
    %v4425 = vadd.f32 %v4424, %v2463
    %v4426 = vadd.f32 %v4425, %v2464
    %v4427 = vadd.f32 %v4426, %v2465
    %v4428 = vadd.f32 %v4427, %v2466
    %v4429 = vadd.f32 %v4428, %v2467
    %v4430 = vadd.f32 %v4429, %v2468
    %v4431 = vadd.f32 %v4430, %v2469
    %v4432 = vadd.f32 %v4431, %v2470
    %v4433 = vsel %vm3159, %v2471, 0.0
    %v4434 = vadd.f32 %v4432, %v4433
    %v4435 = vrot.slane %v4434, 4
    %v4436 = vadd.f32 %v4434, %v4435
    %v4437 = vrot.slane %v4436, 2
    %v4438 = vadd.f32 %v4436, %v4437
    %v4439 = vrot.slane %v4438, 1
    %v4440 = vadd.f32 %v4438, %v4439
    %v4441 = vadd.f32 %v2472, %v2473
    %v4442 = vadd.f32 %v4441, %v2474
    %v4443 = vadd.f32 %v4442, %v2475
    %v4444 = vadd.f32 %v4443, %v2476
    %v4445 = vadd.f32 %v4444, %v2477
    %v4446 = vadd.f32 %v4445, %v2478
    %v4447 = vadd.f32 %v4446, %v2479
    %v4448 = vadd.f32 %v4447, %v2480
    %v4449 = vadd.f32 %v4448, %v2481
    %v4450 = vadd.f32 %v4449, %v2482
    %v4451 = vadd.f32 %v4450, %v2483
    %v4452 = vsel %vm3159, %v2484, 0.0
    %v4453 = vadd.f32 %v4451, %v4452
    %v4454 = vrot.slane %v4453, 4
    %v4455 = vadd.f32 %v4453, %v4454
    %v4456 = vrot.slane %v4455, 2
    %v4457 = vadd.f32 %v4455, %v4456
    %v4458 = vrot.slane %v4457, 1
    %v4459 = vadd.f32 %v4457, %v4458
    %v4460 = vadd.f32 %v2485, %v2486
    %v4461 = vadd.f32 %v4460, %v2487
    %v4462 = vadd.f32 %v4461, %v2488
    %v4463 = vadd.f32 %v4462, %v2489
    %v4464 = vadd.f32 %v4463, %v2490
    %v4465 = vadd.f32 %v4464, %v2491
    %v4466 = vadd.f32 %v4465, %v2492
    %v4467 = vadd.f32 %v4466, %v2493
    %v4468 = vadd.f32 %v4467, %v2494
    %v4469 = vadd.f32 %v4468, %v2495
    %v4470 = vadd.f32 %v4469, %v2496
    %v4471 = vsel %vm3159, %v2497, 0.0
    %v4472 = vadd.f32 %v4470, %v4471
    %v4473 = vrot.slane %v4472, 4
    %v4474 = vadd.f32 %v4472, %v4473
    %v4475 = vrot.slane %v4474, 2
    %v4476 = vadd.f32 %v4474, %v4475
    %v4477 = vrot.slane %v4476, 1
    %v4478 = vadd.f32 %v4476, %v4477
    %v4479 = vadd.f32 %v2498, %v2499
    %v4480 = vadd.f32 %v4479, %v2500
    %v4481 = vadd.f32 %v4480, %v2501
    %v4482 = vadd.f32 %v4481, %v2502
    %v4483 = vadd.f32 %v4482, %v2503
    %v4484 = vadd.f32 %v4483, %v2504
    %v4485 = vadd.f32 %v4484, %v2505
    %v4486 = vadd.f32 %v4485, %v2506
    %v4487 = vadd.f32 %v4486, %v2507
    %v4488 = vadd.f32 %v4487, %v2508
    %v4489 = vadd.f32 %v4488, %v2509
    %v4490 = vsel %vm3159, %v2510, 0.0
    %v4491 = vadd.f32 %v4489, %v4490
    %v4492 = vrot.slane %v4491, 4
    %v4493 = vadd.f32 %v4491, %v4492
    %v4494 = vrot.slane %v4493, 2
    %v4495 = vadd.f32 %v4493, %v4494
    %v4496 = vrot.slane %v4495, 1
    %v4497 = vadd.f32 %v4495, %v4496
    %v4498 = vadd.f32 %v2511, %v2512
    %v4499 = vadd.f32 %v4498, %v2513
    %v4500 = vadd.f32 %v4499, %v2514
    %v4501 = vadd.f32 %v4500, %v2515
    %v4502 = vadd.f32 %v4501, %v2516
    %v4503 = vadd.f32 %v4502, %v2517
    %v4504 = vadd.f32 %v4503, %v2518
    %v4505 = vadd.f32 %v4504, %v2519
    %v4506 = vadd.f32 %v4505, %v2520
    %v4507 = vadd.f32 %v4506, %v2521
    %v4508 = vadd.f32 %v4507, %v2522
    %v4509 = vsel %vm3159, %v2523, 0.0
    %v4510 = vadd.f32 %v4508, %v4509
    %v4511 = vrot.slane %v4510, 4
    %v4512 = vadd.f32 %v4510, %v4511
    %v4513 = vrot.slane %v4512, 2
    %v4514 = vadd.f32 %v4512, %v4513
    %v4515 = vrot.slane %v4514, 1
    %v4516 = vadd.f32 %v4514, %v4515
    %v4517 = vadd.f32 %v2524, %v2525
    %v4518 = vadd.f32 %v4517, %v2526
    %v4519 = vadd.f32 %v4518, %v2527
    %v4520 = vadd.f32 %v4519, %v2528
    %v4521 = vadd.f32 %v4520, %v2529
    %v4522 = vadd.f32 %v4521, %v2530
    %v4523 = vadd.f32 %v4522, %v2531
    %v4524 = vadd.f32 %v4523, %v2532
    %v4525 = vadd.f32 %v4524, %v2533
    %v4526 = vadd.f32 %v4525, %v2534
    %v4527 = vadd.f32 %v4526, %v2535
    %v4528 = vsel %vm3159, %v2536, 0.0
    %v4529 = vadd.f32 %v4527, %v4528
    %v4530 = vrot.slane %v4529, 4
    %v4531 = vadd.f32 %v4529, %v4530
    %v4532 = vrot.slane %v4531, 2
    %v4533 = vadd.f32 %v4531, %v4532
    %v4534 = vrot.slane %v4533, 1
    %v4535 = vadd.f32 %v4533, %v4534
    %v4536 = vadd.f32 %v2537, %v2538
    %v4537 = vadd.f32 %v4536, %v2539
    %v4538 = vadd.f32 %v4537, %v2540
    %v4539 = vadd.f32 %v4538, %v2541
    %v4540 = vadd.f32 %v4539, %v2542
    %v4541 = vadd.f32 %v4540, %v2543
    %v4542 = vadd.f32 %v4541, %v2544
    %v4543 = vadd.f32 %v4542, %v2545
    %v4544 = vadd.f32 %v4543, %v2546
    %v4545 = vadd.f32 %v4544, %v2547
    %v4546 = vadd.f32 %v4545, %v2548
    %v4547 = vsel %vm3159, %v2549, 0.0
    %v4548 = vadd.f32 %v4546, %v4547
    %v4549 = vrot.slane %v4548, 4
    %v4550 = vadd.f32 %v4548, %v4549
    %v4551 = vrot.slane %v4550, 2
    %v4552 = vadd.f32 %v4550, %v4551
    %v4553 = vrot.slane %v4552, 1
    %v4554 = vadd.f32 %v4552, %v4553
    %v4555 = vadd.f32 %v2550, %v2551
    %v4556 = vadd.f32 %v4555, %v2552
    %v4557 = vadd.f32 %v4556, %v2553
    %v4558 = vadd.f32 %v4557, %v2554
    %v4559 = vadd.f32 %v4558, %v2555
    %v4560 = vadd.f32 %v4559, %v2556
    %v4561 = vadd.f32 %v4560, %v2557
    %v4562 = vadd.f32 %v4561, %v2558
    %v4563 = vadd.f32 %v4562, %v2559
    %v4564 = vadd.f32 %v4563, %v2560
    %v4565 = vadd.f32 %v4564, %v2561
    %v4566 = vsel %vm3159, %v2562, 0.0
    %v4567 = vadd.f32 %v4565, %v4566
    %v4568 = vrot.slane %v4567, 4
    %v4569 = vadd.f32 %v4567, %v4568
    %v4570 = vrot.slane %v4569, 2
    %v4571 = vadd.f32 %v4569, %v4570
    %v4572 = vrot.slane %v4571, 1
    %v4573 = vadd.f32 %v4571, %v4572
    %v4574 = vadd.f32 %v2563, %v2564
    %v4575 = vadd.f32 %v4574, %v2565
    %v4576 = vadd.f32 %v4575, %v2566
    %v4577 = vadd.f32 %v4576, %v2567
    %v4578 = vadd.f32 %v4577, %v2568
    %v4579 = vadd.f32 %v4578, %v2569
    %v4580 = vadd.f32 %v4579, %v2570
    %v4581 = vadd.f32 %v4580, %v2571
    %v4582 = vadd.f32 %v4581, %v2572
    %v4583 = vadd.f32 %v4582, %v2573
    %v4584 = vadd.f32 %v4583, %v2574
    %v4585 = vsel %vm3159, %v2575, 0.0
    %v4586 = vadd.f32 %v4584, %v4585
    %v4587 = vrot.slane %v4586, 4
    %v4588 = vadd.f32 %v4586, %v4587
    %v4589 = vrot.slane %v4588, 2
    %v4590 = vadd.f32 %v4588, %v4589
    %v4591 = vrot.slane %v4590, 1
    %v4592 = vadd.f32 %v4590, %v4591
    %v4593 = vadd.f32 %v2576, %v2577
    %v4594 = vadd.f32 %v4593, %v2578
    %v4595 = vadd.f32 %v4594, %v2579
    %v4596 = vadd.f32 %v4595, %v2580
    %v4597 = vadd.f32 %v4596, %v2581
    %v4598 = vadd.f32 %v4597, %v2582
    %v4599 = vadd.f32 %v4598, %v2583
    %v4600 = vadd.f32 %v4599, %v2584
    %v4601 = vadd.f32 %v4600, %v2585
    %v4602 = vadd.f32 %v4601, %v2586
    %v4603 = vadd.f32 %v4602, %v2587
    %v4604 = vsel %vm3159, %v2588, 0.0
    %v4605 = vadd.f32 %v4603, %v4604
    %v4606 = vrot.slane %v4605, 4
    %v4607 = vadd.f32 %v4605, %v4606
    %v4608 = vrot.slane %v4607, 2
    %v4609 = vadd.f32 %v4607, %v4608
    %v4610 = vrot.slane %v4609, 1
    %v4611 = vadd.f32 %v4609, %v4610
    %v4612 = vadd.f32 %v2589, %v2590
    %v4613 = vadd.f32 %v4612, %v2591
    %v4614 = vadd.f32 %v4613, %v2592
    %v4615 = vadd.f32 %v4614, %v2593
    %v4616 = vadd.f32 %v4615, %v2594
    %v4617 = vadd.f32 %v4616, %v2595
    %v4618 = vadd.f32 %v4617, %v2596
    %v4619 = vadd.f32 %v4618, %v2597
    %v4620 = vadd.f32 %v4619, %v2598
    %v4621 = vadd.f32 %v4620, %v2599
    %v4622 = vadd.f32 %v4621, %v2600
    %v4623 = vsel %vm3159, %v2601, 0.0
    %v4624 = vadd.f32 %v4622, %v4623
    %v4625 = vrot.slane %v4624, 4
    %v4626 = vadd.f32 %v4624, %v4625
    %v4627 = vrot.slane %v4626, 2
    %v4628 = vadd.f32 %v4626, %v4627
    %v4629 = vrot.slane %v4628, 1
    %v4630 = vadd.f32 %v4628, %v4629
    %v4631 = vadd.f32 %v2602, %v2603
    %v4632 = vadd.f32 %v4631, %v2604
    %v4633 = vadd.f32 %v4632, %v2605
    %v4634 = vadd.f32 %v4633, %v2606
    %v4635 = vadd.f32 %v4634, %v2607
    %v4636 = vadd.f32 %v4635, %v2608
    %v4637 = vadd.f32 %v4636, %v2609
    %v4638 = vadd.f32 %v4637, %v2610
    %v4639 = vadd.f32 %v4638, %v2611
    %v4640 = vadd.f32 %v4639, %v2612
    %v4641 = vadd.f32 %v4640, %v2613
    %v4642 = vsel %vm3159, %v2614, 0.0
    %v4643 = vadd.f32 %v4641, %v4642
    %v4644 = vrot.slane %v4643, 4
    %v4645 = vadd.f32 %v4643, %v4644
    %v4646 = vrot.slane %v4645, 2
    %v4647 = vadd.f32 %v4645, %v4646
    %v4648 = vrot.slane %v4647, 1
    %v4649 = vadd.f32 %v4647, %v4648
    %v4650 = vadd.f32 %v2615, %v2616
    %v4651 = vadd.f32 %v4650, %v2617
    %v4652 = vadd.f32 %v4651, %v2618
    %v4653 = vadd.f32 %v4652, %v2619
    %v4654 = vadd.f32 %v4653, %v2620
    %v4655 = vadd.f32 %v4654, %v2621
    %v4656 = vadd.f32 %v4655, %v2622
    %v4657 = vadd.f32 %v4656, %v2623
    %v4658 = vadd.f32 %v4657, %v2624
    %v4659 = vadd.f32 %v4658, %v2625
    %v4660 = vadd.f32 %v4659, %v2626
    %v4661 = vsel %vm3159, %v2627, 0.0
    %v4662 = vadd.f32 %v4660, %v4661
    %v4663 = vrot.slane %v4662, 4
    %v4664 = vadd.f32 %v4662, %v4663
    %v4665 = vrot.slane %v4664, 2
    %v4666 = vadd.f32 %v4664, %v4665
    %v4667 = vrot.slane %v4666, 1
    %v4668 = vadd.f32 %v4666, %v4667
    %v4669 = vadd.f32 %v2628, %v2629
    %v4670 = vadd.f32 %v4669, %v2630
    %v4671 = vadd.f32 %v4670, %v2631
    %v4672 = vadd.f32 %v4671, %v2632
    %v4673 = vadd.f32 %v4672, %v2633
    %v4674 = vadd.f32 %v4673, %v2634
    %v4675 = vadd.f32 %v4674, %v2635
    %v4676 = vadd.f32 %v4675, %v2636
    %v4677 = vadd.f32 %v4676, %v2637
    %v4678 = vadd.f32 %v4677, %v2638
    %v4679 = vadd.f32 %v4678, %v2639
    %v4680 = vsel %vm3159, %v2640, 0.0
    %v4681 = vadd.f32 %v4679, %v4680
    %v4682 = vrot.slane %v4681, 4
    %v4683 = vadd.f32 %v4681, %v4682
    %v4684 = vrot.slane %v4683, 2
    %v4685 = vadd.f32 %v4683, %v4684
    %v4686 = vrot.slane %v4685, 1
    %v4687 = vadd.f32 %v4685, %v4686
    %v4688 = vadd.f32 %v2641, %v2642
    %v4689 = vadd.f32 %v4688, %v2643
    %v4690 = vadd.f32 %v4689, %v2644
    %v4691 = vadd.f32 %v4690, %v2645
    %v4692 = vadd.f32 %v4691, %v2646
    %v4693 = vadd.f32 %v4692, %v2647
    %v4694 = vadd.f32 %v4693, %v2648
    %v4695 = vadd.f32 %v4694, %v2649
    %v4696 = vadd.f32 %v4695, %v2650
    %v4697 = vadd.f32 %v4696, %v2651
    %v4698 = vadd.f32 %v4697, %v2652
    %v4699 = vsel %vm3159, %v2653, 0.0
    %v4700 = vadd.f32 %v4698, %v4699
    %v4701 = vrot.slane %v4700, 4
    %v4702 = vadd.f32 %v4700, %v4701
    %v4703 = vrot.slane %v4702, 2
    %v4704 = vadd.f32 %v4702, %v4703
    %v4705 = vrot.slane %v4704, 1
    %v4706 = vadd.f32 %v4704, %v4705
    %v4707 = vadd.f32 %v2654, %v2655
    %v4708 = vadd.f32 %v4707, %v2656
    %v4709 = vadd.f32 %v4708, %v2657
    %v4710 = vadd.f32 %v4709, %v2658
    %v4711 = vadd.f32 %v4710, %v2659
    %v4712 = vadd.f32 %v4711, %v2660
    %v4713 = vadd.f32 %v4712, %v2661
    %v4714 = vadd.f32 %v4713, %v2662
    %v4715 = vadd.f32 %v4714, %v2663
    %v4716 = vadd.f32 %v4715, %v2664
    %v4717 = vadd.f32 %v4716, %v2665
    %v4718 = vsel %vm3159, %v2666, 0.0
    %v4719 = vadd.f32 %v4717, %v4718
    %v4720 = vrot.slane %v4719, 4
    %v4721 = vadd.f32 %v4719, %v4720
    %v4722 = vrot.slane %v4721, 2
    %v4723 = vadd.f32 %v4721, %v4722
    %v4724 = vrot.slane %v4723, 1
    %v4725 = vadd.f32 %v4723, %v4724
    %v4726 = vadd.f32 %v2667, %v2668
    %v4727 = vadd.f32 %v4726, %v2669
    %v4728 = vadd.f32 %v4727, %v2670
    %v4729 = vadd.f32 %v4728, %v2671
    %v4730 = vadd.f32 %v4729, %v2672
    %v4731 = vadd.f32 %v4730, %v2673
    %v4732 = vadd.f32 %v4731, %v2674
    %v4733 = vadd.f32 %v4732, %v2675
    %v4734 = vadd.f32 %v4733, %v2676
    %v4735 = vadd.f32 %v4734, %v2677
    %v4736 = vadd.f32 %v4735, %v2678
    %v4737 = vsel %vm3159, %v2679, 0.0
    %v4738 = vadd.f32 %v4736, %v4737
    %v4739 = vrot.slane %v4738, 4
    %v4740 = vadd.f32 %v4738, %v4739
    %v4741 = vrot.slane %v4740, 2
    %v4742 = vadd.f32 %v4740, %v4741
    %v4743 = vrot.slane %v4742, 1
    %v4744 = vadd.f32 %v4742, %v4743
    %v4745 = vadd.f32 %v2680, %v2681
    %v4746 = vadd.f32 %v4745, %v2682
    %v4747 = vadd.f32 %v4746, %v2683
    %v4748 = vadd.f32 %v4747, %v2684
    %v4749 = vadd.f32 %v4748, %v2685
    %v4750 = vadd.f32 %v4749, %v2686
    %v4751 = vadd.f32 %v4750, %v2687
    %v4752 = vadd.f32 %v4751, %v2688
    %v4753 = vadd.f32 %v4752, %v2689
    %v4754 = vadd.f32 %v4753, %v2690
    %v4755 = vadd.f32 %v4754, %v2691
    %v4756 = vsel %vm3159, %v2692, 0.0
    %v4757 = vadd.f32 %v4755, %v4756
    %v4758 = vrot.slane %v4757, 4
    %v4759 = vadd.f32 %v4757, %v4758
    %v4760 = vrot.slane %v4759, 2
    %v4761 = vadd.f32 %v4759, %v4760
    %v4762 = vrot.slane %v4761, 1
    %v4763 = vadd.f32 %v4761, %v4762
    %v4764 = vadd.f32 %v2693, %v2694
    %v4765 = vadd.f32 %v4764, %v2695
    %v4766 = vadd.f32 %v4765, %v2696
    %v4767 = vadd.f32 %v4766, %v2697
    %v4768 = vadd.f32 %v4767, %v2698
    %v4769 = vadd.f32 %v4768, %v2699
    %v4770 = vadd.f32 %v4769, %v2700
    %v4771 = vadd.f32 %v4770, %v2701
    %v4772 = vadd.f32 %v4771, %v2702
    %v4773 = vadd.f32 %v4772, %v2703
    %v4774 = vadd.f32 %v4773, %v2704
    %v4775 = vsel %vm3159, %v2705, 0.0
    %v4776 = vadd.f32 %v4774, %v4775
    %v4777 = vrot.slane %v4776, 4
    %v4778 = vadd.f32 %v4776, %v4777
    %v4779 = vrot.slane %v4778, 2
    %v4780 = vadd.f32 %v4778, %v4779
    %v4781 = vrot.slane %v4780, 1
    %v4782 = vadd.f32 %v4780, %v4781
    %v4783 = vadd.f32 %v2706, %v2707
    %v4784 = vadd.f32 %v4783, %v2708
    %v4785 = vadd.f32 %v4784, %v2709
    %v4786 = vadd.f32 %v4785, %v2710
    %v4787 = vadd.f32 %v4786, %v2711
    %v4788 = vadd.f32 %v4787, %v2712
    %v4789 = vadd.f32 %v4788, %v2713
    %v4790 = vadd.f32 %v4789, %v2714
    %v4791 = vadd.f32 %v4790, %v2715
    %v4792 = vadd.f32 %v4791, %v2716
    %v4793 = vadd.f32 %v4792, %v2717
    %v4794 = vsel %vm3159, %v2718, 0.0
    %v4795 = vadd.f32 %v4793, %v4794
    %v4796 = vrot.slane %v4795, 4
    %v4797 = vadd.f32 %v4795, %v4796
    %v4798 = vrot.slane %v4797, 2
    %v4799 = vadd.f32 %v4797, %v4798
    %v4800 = vrot.slane %v4799, 1
    %v4801 = vadd.f32 %v4799, %v4800
    %v4802 = vadd.f32 %v2719, %v2720
    %v4803 = vadd.f32 %v4802, %v2721
    %v4804 = vadd.f32 %v4803, %v2722
    %v4805 = vadd.f32 %v4804, %v2723
    %v4806 = vadd.f32 %v4805, %v2724
    %v4807 = vadd.f32 %v4806, %v2725
    %v4808 = vadd.f32 %v4807, %v2726
    %v4809 = vadd.f32 %v4808, %v2727
    %v4810 = vadd.f32 %v4809, %v2728
    %v4811 = vadd.f32 %v4810, %v2729
    %v4812 = vadd.f32 %v4811, %v2730
    %v4813 = vsel %vm3159, %v2731, 0.0
    %v4814 = vadd.f32 %v4812, %v4813
    %v4815 = vrot.slane %v4814, 4
    %v4816 = vadd.f32 %v4814, %v4815
    %v4817 = vrot.slane %v4816, 2
    %v4818 = vadd.f32 %v4816, %v4817
    %v4819 = vrot.slane %v4818, 1
    %v4820 = vadd.f32 %v4818, %v4819
    %v4821 = vadd.f32 %v2732, %v2733
    %v4822 = vadd.f32 %v4821, %v2734
    %v4823 = vadd.f32 %v4822, %v2735
    %v4824 = vadd.f32 %v4823, %v2736
    %v4825 = vadd.f32 %v4824, %v2737
    %v4826 = vadd.f32 %v4825, %v2738
    %v4827 = vadd.f32 %v4826, %v2739
    %v4828 = vadd.f32 %v4827, %v2740
    %v4829 = vadd.f32 %v4828, %v2741
    %v4830 = vadd.f32 %v4829, %v2742
    %v4831 = vadd.f32 %v4830, %v2743
    %v4832 = vsel %vm3159, %v2744, 0.0
    %v4833 = vadd.f32 %v4831, %v4832
    %v4834 = vrot.slane %v4833, 4
    %v4835 = vadd.f32 %v4833, %v4834
    %v4836 = vrot.slane %v4835, 2
    %v4837 = vadd.f32 %v4835, %v4836
    %v4838 = vrot.slane %v4837, 1
    %v4839 = vadd.f32 %v4837, %v4838
    %v4840 = vadd.f32 %v2745, %v2746
    %v4841 = vadd.f32 %v4840, %v2747
    %v4842 = vadd.f32 %v4841, %v2748
    %v4843 = vadd.f32 %v4842, %v2749
    %v4844 = vadd.f32 %v4843, %v2750
    %v4845 = vadd.f32 %v4844, %v2751
    %v4846 = vadd.f32 %v4845, %v2752
    %v4847 = vadd.f32 %v4846, %v2753
    %v4848 = vadd.f32 %v4847, %v2754
    %v4849 = vadd.f32 %v4848, %v2755
    %v4850 = vadd.f32 %v4849, %v2756
    %v4851 = vsel %vm3159, %v2757, 0.0
    %v4852 = vadd.f32 %v4850, %v4851
    %v4853 = vrot.slane %v4852, 4
    %v4854 = vadd.f32 %v4852, %v4853
    %v4855 = vrot.slane %v4854, 2
    %v4856 = vadd.f32 %v4854, %v4855
    %v4857 = vrot.slane %v4856, 1
    %v4858 = vadd.f32 %v4856, %v4857
    %v4859 = vadd.f32 %v2758, %v2759
    %v4860 = vadd.f32 %v4859, %v2760
    %v4861 = vadd.f32 %v4860, %v2761
    %v4862 = vadd.f32 %v4861, %v2762
    %v4863 = vadd.f32 %v4862, %v2763
    %v4864 = vadd.f32 %v4863, %v2764
    %v4865 = vadd.f32 %v4864, %v2765
    %v4866 = vadd.f32 %v4865, %v2766
    %v4867 = vadd.f32 %v4866, %v2767
    %v4868 = vadd.f32 %v4867, %v2768
    %v4869 = vadd.f32 %v4868, %v2769
    %v4870 = vsel %vm3159, %v2770, 0.0
    %v4871 = vadd.f32 %v4869, %v4870
    %v4872 = vrot.slane %v4871, 4
    %v4873 = vadd.f32 %v4871, %v4872
    %v4874 = vrot.slane %v4873, 2
    %v4875 = vadd.f32 %v4873, %v4874
    %v4876 = vrot.slane %v4875, 1
    %v4877 = vadd.f32 %v4875, %v4876
    %v4878 = vadd.f32 %v2771, %v2772
    %v4879 = vadd.f32 %v4878, %v2773
    %v4880 = vadd.f32 %v4879, %v2774
    %v4881 = vadd.f32 %v4880, %v2775
    %v4882 = vadd.f32 %v4881, %v2776
    %v4883 = vadd.f32 %v4882, %v2777
    %v4884 = vadd.f32 %v4883, %v2778
    %v4885 = vadd.f32 %v4884, %v2779
    %v4886 = vadd.f32 %v4885, %v2780
    %v4887 = vadd.f32 %v4886, %v2781
    %v4888 = vadd.f32 %v4887, %v2782
    %v4889 = vsel %vm3159, %v2783, 0.0
    %v4890 = vadd.f32 %v4888, %v4889
    %v4891 = vrot.slane %v4890, 4
    %v4892 = vadd.f32 %v4890, %v4891
    %v4893 = vrot.slane %v4892, 2
    %v4894 = vadd.f32 %v4892, %v4893
    %v4895 = vrot.slane %v4894, 1
    %v4896 = vadd.f32 %v4894, %v4895
    %v4897 = vadd.f32 %v2784, %v2785
    %v4898 = vadd.f32 %v4897, %v2786
    %v4899 = vadd.f32 %v4898, %v2787
    %v4900 = vadd.f32 %v4899, %v2788
    %v4901 = vadd.f32 %v4900, %v2789
    %v4902 = vadd.f32 %v4901, %v2790
    %v4903 = vadd.f32 %v4902, %v2791
    %v4904 = vadd.f32 %v4903, %v2792
    %v4905 = vadd.f32 %v4904, %v2793
    %v4906 = vadd.f32 %v4905, %v2794
    %v4907 = vadd.f32 %v4906, %v2795
    %v4908 = vsel %vm3159, %v2796, 0.0
    %v4909 = vadd.f32 %v4907, %v4908
    %v4910 = vrot.slane %v4909, 4
    %v4911 = vadd.f32 %v4909, %v4910
    %v4912 = vrot.slane %v4911, 2
    %v4913 = vadd.f32 %v4911, %v4912
    %v4914 = vrot.slane %v4913, 1
    %v4915 = vadd.f32 %v4913, %v4914
    %v4916 = vadd.f32 %v2797, %v2798
    %v4917 = vadd.f32 %v4916, %v2799
    %v4918 = vadd.f32 %v4917, %v2800
    %v4919 = vadd.f32 %v4918, %v2801
    %v4920 = vadd.f32 %v4919, %v2802
    %v4921 = vadd.f32 %v4920, %v2803
    %v4922 = vadd.f32 %v4921, %v2804
    %v4923 = vadd.f32 %v4922, %v2805
    %v4924 = vadd.f32 %v4923, %v2806
    %v4925 = vadd.f32 %v4924, %v2807
    %v4926 = vadd.f32 %v4925, %v2808
    %v4927 = vsel %vm3159, %v2809, 0.0
    %v4928 = vadd.f32 %v4926, %v4927
    %v4929 = vrot.slane %v4928, 4
    %v4930 = vadd.f32 %v4928, %v4929
    %v4931 = vrot.slane %v4930, 2
    %v4932 = vadd.f32 %v4930, %v4931
    %v4933 = vrot.slane %v4932, 1
    %v4934 = vadd.f32 %v4932, %v4933
    %v4935 = vadd.f32 %v2810, %v2811
    %v4936 = vadd.f32 %v4935, %v2812
    %v4937 = vadd.f32 %v4936, %v2813
    %v4938 = vadd.f32 %v4937, %v2814
    %v4939 = vadd.f32 %v4938, %v2815
    %v4940 = vadd.f32 %v4939, %v2816
    %v4941 = vadd.f32 %v4940, %v2817
    %v4942 = vadd.f32 %v4941, %v2818
    %v4943 = vadd.f32 %v4942, %v2819
    %v4944 = vadd.f32 %v4943, %v2820
    %v4945 = vadd.f32 %v4944, %v2821
    %v4946 = vsel %vm3159, %v2822, 0.0
    %v4947 = vadd.f32 %v4945, %v4946
    %v4948 = vrot.slane %v4947, 4
    %v4949 = vadd.f32 %v4947, %v4948
    %v4950 = vrot.slane %v4949, 2
    %v4951 = vadd.f32 %v4949, %v4950
    %v4952 = vrot.slane %v4951, 1
    %v4953 = vadd.f32 %v4951, %v4952
    %v4954 = vadd.f32 %v2823, %v2824
    %v4955 = vadd.f32 %v4954, %v2825
    %v4956 = vadd.f32 %v4955, %v2826
    %v4957 = vadd.f32 %v4956, %v2827
    %v4958 = vadd.f32 %v4957, %v2828
    %v4959 = vadd.f32 %v4958, %v2829
    %v4960 = vadd.f32 %v4959, %v2830
    %v4961 = vadd.f32 %v4960, %v2831
    %v4962 = vadd.f32 %v4961, %v2832
    %v4963 = vadd.f32 %v4962, %v2833
    %v4964 = vadd.f32 %v4963, %v2834
    %v4965 = vsel %vm3159, %v2835, 0.0
    %v4966 = vadd.f32 %v4964, %v4965
    %v4967 = vrot.slane %v4966, 4
    %v4968 = vadd.f32 %v4966, %v4967
    %v4969 = vrot.slane %v4968, 2
    %v4970 = vadd.f32 %v4968, %v4969
    %v4971 = vrot.slane %v4970, 1
    %v4972 = vadd.f32 %v4970, %v4971
    %v4973 = vadd.f32 %v2836, %v2837
    %v4974 = vadd.f32 %v4973, %v2838
    %v4975 = vadd.f32 %v4974, %v2839
    %v4976 = vadd.f32 %v4975, %v2840
    %v4977 = vadd.f32 %v4976, %v2841
    %v4978 = vadd.f32 %v4977, %v2842
    %v4979 = vadd.f32 %v4978, %v2843
    %v4980 = vadd.f32 %v4979, %v2844
    %v4981 = vadd.f32 %v4980, %v2845
    %v4982 = vadd.f32 %v4981, %v2846
    %v4983 = vadd.f32 %v4982, %v2847
    %v4984 = vsel %vm3159, %v2848, 0.0
    %v4985 = vadd.f32 %v4983, %v4984
    %v4986 = vrot.slane %v4985, 4
    %v4987 = vadd.f32 %v4985, %v4986
    %v4988 = vrot.slane %v4987, 2
    %v4989 = vadd.f32 %v4987, %v4988
    %v4990 = vrot.slane %v4989, 1
    %v4991 = vadd.f32 %v4989, %v4990
    %v4992 = vadd.f32 %v2849, %v2850
    %v4993 = vadd.f32 %v4992, %v2851
    %v4994 = vadd.f32 %v4993, %v2852
    %v4995 = vadd.f32 %v4994, %v2853
    %v4996 = vadd.f32 %v4995, %v2854
    %v4997 = vadd.f32 %v4996, %v2855
    %v4998 = vadd.f32 %v4997, %v2856
    %v4999 = vadd.f32 %v4998, %v2857
    %v5000 = vadd.f32 %v4999, %v2858
    %v5001 = vadd.f32 %v5000, %v2859
    %v5002 = vadd.f32 %v5001, %v2860
    %v5003 = vsel %vm3159, %v2861, 0.0
    %v5004 = vadd.f32 %v5002, %v5003
    %v5005 = vrot.slane %v5004, 4
    %v5006 = vadd.f32 %v5004, %v5005
    %v5007 = vrot.slane %v5006, 2
    %v5008 = vadd.f32 %v5006, %v5007
    %v5009 = vrot.slane %v5008, 1
    %v5010 = vadd.f32 %v5008, %v5009
    %v5011 = vadd.f32 %v2862, %v2863
    %v5012 = vadd.f32 %v5011, %v2864
    %v5013 = vadd.f32 %v5012, %v2865
    %v5014 = vadd.f32 %v5013, %v2866
    %v5015 = vadd.f32 %v5014, %v2867
    %v5016 = vadd.f32 %v5015, %v2868
    %v5017 = vadd.f32 %v5016, %v2869
    %v5018 = vadd.f32 %v5017, %v2870
    %v5019 = vadd.f32 %v5018, %v2871
    %v5020 = vadd.f32 %v5019, %v2872
    %v5021 = vadd.f32 %v5020, %v2873
    %v5022 = vsel %vm3159, %v2874, 0.0
    %v5023 = vadd.f32 %v5021, %v5022
    %v5024 = vrot.slane %v5023, 4
    %v5025 = vadd.f32 %v5023, %v5024
    %v5026 = vrot.slane %v5025, 2
    %v5027 = vadd.f32 %v5025, %v5026
    %v5028 = vrot.slane %v5027, 1
    %v5029 = vadd.f32 %v5027, %v5028
    %v5030 = vadd.f32 %v2875, %v2876
    %v5031 = vadd.f32 %v5030, %v2877
    %v5032 = vadd.f32 %v5031, %v2878
    %v5033 = vadd.f32 %v5032, %v2879
    %v5034 = vadd.f32 %v5033, %v2880
    %v5035 = vadd.f32 %v5034, %v2881
    %v5036 = vadd.f32 %v5035, %v2882
    %v5037 = vadd.f32 %v5036, %v2883
    %v5038 = vadd.f32 %v5037, %v2884
    %v5039 = vadd.f32 %v5038, %v2885
    %v5040 = vadd.f32 %v5039, %v2886
    %v5041 = vsel %vm3159, %v2887, 0.0
    %v5042 = vadd.f32 %v5040, %v5041
    %v5043 = vrot.slane %v5042, 4
    %v5044 = vadd.f32 %v5042, %v5043
    %v5045 = vrot.slane %v5044, 2
    %v5046 = vadd.f32 %v5044, %v5045
    %v5047 = vrot.slane %v5046, 1
    %v5048 = vadd.f32 %v5046, %v5047
    %v5049 = vadd.f32 %v2888, %v2889
    %v5050 = vadd.f32 %v5049, %v2890
    %v5051 = vadd.f32 %v5050, %v2891
    %v5052 = vadd.f32 %v5051, %v2892
    %v5053 = vadd.f32 %v5052, %v2893
    %v5054 = vadd.f32 %v5053, %v2894
    %v5055 = vadd.f32 %v5054, %v2895
    %v5056 = vadd.f32 %v5055, %v2896
    %v5057 = vadd.f32 %v5056, %v2897
    %v5058 = vadd.f32 %v5057, %v2898
    %v5059 = vadd.f32 %v5058, %v2899
    %v5060 = vsel %vm3159, %v2900, 0.0
    %v5061 = vadd.f32 %v5059, %v5060
    %v5062 = vrot.slane %v5061, 4
    %v5063 = vadd.f32 %v5061, %v5062
    %v5064 = vrot.slane %v5063, 2
    %v5065 = vadd.f32 %v5063, %v5064
    %v5066 = vrot.slane %v5065, 1
    %v5067 = vadd.f32 %v5065, %v5066
    %v5068 = vadd.f32 %v2901, %v2902
    %v5069 = vadd.f32 %v5068, %v2903
    %v5070 = vadd.f32 %v5069, %v2904
    %v5071 = vadd.f32 %v5070, %v2905
    %v5072 = vadd.f32 %v5071, %v2906
    %v5073 = vadd.f32 %v5072, %v2907
    %v5074 = vadd.f32 %v5073, %v2908
    %v5075 = vadd.f32 %v5074, %v2909
    %v5076 = vadd.f32 %v5075, %v2910
    %v5077 = vadd.f32 %v5076, %v2911
    %v5078 = vadd.f32 %v5077, %v2912
    %v5079 = vsel %vm3159, %v2913, 0.0
    %v5080 = vadd.f32 %v5078, %v5079
    %v5081 = vrot.slane %v5080, 4
    %v5082 = vadd.f32 %v5080, %v5081
    %v5083 = vrot.slane %v5082, 2
    %v5084 = vadd.f32 %v5082, %v5083
    %v5085 = vrot.slane %v5084, 1
    %v5086 = vadd.f32 %v5084, %v5085
    %v5087 = vadd.f32 %v2914, %v2915
    %v5088 = vadd.f32 %v5087, %v2916
    %v5089 = vadd.f32 %v5088, %v2917
    %v5090 = vadd.f32 %v5089, %v2918
    %v5091 = vadd.f32 %v5090, %v2919
    %v5092 = vadd.f32 %v5091, %v2920
    %v5093 = vadd.f32 %v5092, %v2921
    %v5094 = vadd.f32 %v5093, %v2922
    %v5095 = vadd.f32 %v5094, %v2923
    %v5096 = vadd.f32 %v5095, %v2924
    %v5097 = vadd.f32 %v5096, %v2925
    %v5098 = vsel %vm3159, %v2926, 0.0
    %v5099 = vadd.f32 %v5097, %v5098
    %v5100 = vrot.slane %v5099, 4
    %v5101 = vadd.f32 %v5099, %v5100
    %v5102 = vrot.slane %v5101, 2
    %v5103 = vadd.f32 %v5101, %v5102
    %v5104 = vrot.slane %v5103, 1
    %v5105 = vadd.f32 %v5103, %v5104
    %v5106 = vadd.f32 %v2927, %v2928
    %v5107 = vadd.f32 %v5106, %v2929
    %v5108 = vadd.f32 %v5107, %v2930
    %v5109 = vadd.f32 %v5108, %v2931
    %v5110 = vadd.f32 %v5109, %v2932
    %v5111 = vadd.f32 %v5110, %v2933
    %v5112 = vadd.f32 %v5111, %v2934
    %v5113 = vadd.f32 %v5112, %v2935
    %v5114 = vadd.f32 %v5113, %v2936
    %v5115 = vadd.f32 %v5114, %v2937
    %v5116 = vadd.f32 %v5115, %v2938
    %v5117 = vsel %vm3159, %v2939, 0.0
    %v5118 = vadd.f32 %v5116, %v5117
    %v5119 = vrot.slane %v5118, 4
    %v5120 = vadd.f32 %v5118, %v5119
    %v5121 = vrot.slane %v5120, 2
    %v5122 = vadd.f32 %v5120, %v5121
    %v5123 = vrot.slane %v5122, 1
    %v5124 = vadd.f32 %v5122, %v5123
    %v5125 = vadd.f32 %v2940, %v2941
    %v5126 = vadd.f32 %v5125, %v2942
    %v5127 = vadd.f32 %v5126, %v2943
    %v5128 = vadd.f32 %v5127, %v2944
    %v5129 = vadd.f32 %v5128, %v2945
    %v5130 = vadd.f32 %v5129, %v2946
    %v5131 = vadd.f32 %v5130, %v2947
    %v5132 = vadd.f32 %v5131, %v2948
    %v5133 = vadd.f32 %v5132, %v2949
    %v5134 = vadd.f32 %v5133, %v2950
    %v5135 = vadd.f32 %v5134, %v2951
    %v5136 = vsel %vm3159, %v2952, 0.0
    %v5137 = vadd.f32 %v5135, %v5136
    %v5138 = vrot.slane %v5137, 4
    %v5139 = vadd.f32 %v5137, %v5138
    %v5140 = vrot.slane %v5139, 2
    %v5141 = vadd.f32 %v5139, %v5140
    %v5142 = vrot.slane %v5141, 1
    %v5143 = vadd.f32 %v5141, %v5142
    %v5144 = vadd.f32 %v2953, %v2954
    %v5145 = vadd.f32 %v5144, %v2955
    %v5146 = vadd.f32 %v5145, %v2956
    %v5147 = vadd.f32 %v5146, %v2957
    %v5148 = vadd.f32 %v5147, %v2958
    %v5149 = vadd.f32 %v5148, %v2959
    %v5150 = vadd.f32 %v5149, %v2960
    %v5151 = vadd.f32 %v5150, %v2961
    %v5152 = vadd.f32 %v5151, %v2962
    %v5153 = vadd.f32 %v5152, %v2963
    %v5154 = vadd.f32 %v5153, %v2964
    %v5155 = vsel %vm3159, %v2965, 0.0
    %v5156 = vadd.f32 %v5154, %v5155
    %v5157 = vrot.slane %v5156, 4
    %v5158 = vadd.f32 %v5156, %v5157
    %v5159 = vrot.slane %v5158, 2
    %v5160 = vadd.f32 %v5158, %v5159
    %v5161 = vrot.slane %v5160, 1
    %v5162 = vadd.f32 %v5160, %v5161
    %v5163 = vadd.f32 %v2966, %v2967
    %v5164 = vadd.f32 %v5163, %v2968
    %v5165 = vadd.f32 %v5164, %v2969
    %v5166 = vadd.f32 %v5165, %v2970
    %v5167 = vadd.f32 %v5166, %v2971
    %v5168 = vadd.f32 %v5167, %v2972
    %v5169 = vadd.f32 %v5168, %v2973
    %v5170 = vadd.f32 %v5169, %v2974
    %v5171 = vadd.f32 %v5170, %v2975
    %v5172 = vadd.f32 %v5171, %v2976
    %v5173 = vadd.f32 %v5172, %v2977
    %v5174 = vsel %vm3159, %v2978, 0.0
    %v5175 = vadd.f32 %v5173, %v5174
    %v5176 = vrot.slane %v5175, 4
    %v5177 = vadd.f32 %v5175, %v5176
    %v5178 = vrot.slane %v5177, 2
    %v5179 = vadd.f32 %v5177, %v5178
    %v5180 = vrot.slane %v5179, 1
    %v5181 = vadd.f32 %v5179, %v5180
    %v5182 = vadd.f32 %v2979, %v2980
    %v5183 = vadd.f32 %v5182, %v2981
    %v5184 = vadd.f32 %v5183, %v2982
    %v5185 = vadd.f32 %v5184, %v2983
    %v5186 = vadd.f32 %v5185, %v2984
    %v5187 = vadd.f32 %v5186, %v2985
    %v5188 = vadd.f32 %v5187, %v2986
    %v5189 = vadd.f32 %v5188, %v2987
    %v5190 = vadd.f32 %v5189, %v2988
    %v5191 = vadd.f32 %v5190, %v2989
    %v5192 = vadd.f32 %v5191, %v2990
    %v5193 = vsel %vm3159, %v2991, 0.0
    %v5194 = vadd.f32 %v5192, %v5193
    %v5195 = vrot.slane %v5194, 4
    %v5196 = vadd.f32 %v5194, %v5195
    %v5197 = vrot.slane %v5196, 2
    %v5198 = vadd.f32 %v5196, %v5197
    %v5199 = vrot.slane %v5198, 1
    %v5200 = vadd.f32 %v5198, %v5199
    %v5201 = vadd.f32 %v2992, %v2993
    %v5202 = vadd.f32 %v5201, %v2994
    %v5203 = vadd.f32 %v5202, %v2995
    %v5204 = vadd.f32 %v5203, %v2996
    %v5205 = vadd.f32 %v5204, %v2997
    %v5206 = vadd.f32 %v5205, %v2998
    %v5207 = vadd.f32 %v5206, %v2999
    %v5208 = vadd.f32 %v5207, %v3000
    %v5209 = vadd.f32 %v5208, %v3001
    %v5210 = vadd.f32 %v5209, %v3002
    %v5211 = vadd.f32 %v5210, %v3003
    %v5212 = vsel %vm3159, %v3004, 0.0
    %v5213 = vadd.f32 %v5211, %v5212
    %v5214 = vrot.slane %v5213, 4
    %v5215 = vadd.f32 %v5213, %v5214
    %v5216 = vrot.slane %v5215, 2
    %v5217 = vadd.f32 %v5215, %v5216
    %v5218 = vrot.slane %v5217, 1
    %v5219 = vadd.f32 %v5217, %v5218
    %v5220 = vadd.f32 %v3005, %v3006
    %v5221 = vadd.f32 %v5220, %v3007
    %v5222 = vadd.f32 %v5221, %v3008
    %v5223 = vadd.f32 %v5222, %v3009
    %v5224 = vadd.f32 %v5223, %v3010
    %v5225 = vadd.f32 %v5224, %v3011
    %v5226 = vadd.f32 %v5225, %v3012
    %v5227 = vadd.f32 %v5226, %v3013
    %v5228 = vadd.f32 %v5227, %v3014
    %v5229 = vadd.f32 %v5228, %v3015
    %v5230 = vadd.f32 %v5229, %v3016
    %v5231 = vsel %vm3159, %v3017, 0.0
    %v5232 = vadd.f32 %v5230, %v5231
    %v5233 = vrot.slane %v5232, 4
    %v5234 = vadd.f32 %v5232, %v5233
    %v5235 = vrot.slane %v5234, 2
    %v5236 = vadd.f32 %v5234, %v5235
    %v5237 = vrot.slane %v5236, 1
    %v5238 = vadd.f32 %v5236, %v5237
    %v5239 = vadd.f32 %v3018, %v3019
    %v5240 = vadd.f32 %v5239, %v3020
    %v5241 = vadd.f32 %v5240, %v3021
    %v5242 = vadd.f32 %v5241, %v3022
    %v5243 = vadd.f32 %v5242, %v3023
    %v5244 = vadd.f32 %v5243, %v3024
    %v5245 = vadd.f32 %v5244, %v3025
    %v5246 = vadd.f32 %v5245, %v3026
    %v5247 = vadd.f32 %v5246, %v3027
    %v5248 = vadd.f32 %v5247, %v3028
    %v5249 = vadd.f32 %v5248, %v3029
    %v5250 = vsel %vm3159, %v3030, 0.0
    %v5251 = vadd.f32 %v5249, %v5250
    %v5252 = vrot.slane %v5251, 4
    %v5253 = vadd.f32 %v5251, %v5252
    %v5254 = vrot.slane %v5253, 2
    %v5255 = vadd.f32 %v5253, %v5254
    %v5256 = vrot.slane %v5255, 1
    %v5257 = vadd.f32 %v5255, %v5256
    %v5258 = vadd.f32 %v3031, %v3032
    %v5259 = vadd.f32 %v5258, %v3033
    %v5260 = vadd.f32 %v5259, %v3034
    %v5261 = vadd.f32 %v5260, %v3035
    %v5262 = vadd.f32 %v5261, %v3036
    %v5263 = vadd.f32 %v5262, %v3037
    %v5264 = vadd.f32 %v5263, %v3038
    %v5265 = vadd.f32 %v5264, %v3039
    %v5266 = vadd.f32 %v5265, %v3040
    %v5267 = vadd.f32 %v5266, %v3041
    %v5268 = vadd.f32 %v5267, %v3042
    %v5269 = vsel %vm3159, %v3043, 0.0
    %v5270 = vadd.f32 %v5268, %v5269
    %v5271 = vrot.slane %v5270, 4
    %v5272 = vadd.f32 %v5270, %v5271
    %v5273 = vrot.slane %v5272, 2
    %v5274 = vadd.f32 %v5272, %v5273
    %v5275 = vrot.slane %v5274, 1
    %v5276 = vadd.f32 %v5274, %v5275
    %v5277 = vadd.f32 %v3044, %v3045
    %v5278 = vadd.f32 %v5277, %v3046
    %v5279 = vadd.f32 %v5278, %v3047
    %v5280 = vadd.f32 %v5279, %v3048
    %v5281 = vadd.f32 %v5280, %v3049
    %v5282 = vadd.f32 %v5281, %v3050
    %v5283 = vadd.f32 %v5282, %v3051
    %v5284 = vadd.f32 %v5283, %v3052
    %v5285 = vadd.f32 %v5284, %v3053
    %v5286 = vadd.f32 %v5285, %v3054
    %v5287 = vadd.f32 %v5286, %v3055
    %v5288 = vsel %vm3159, %v3056, 0.0
    %v5289 = vadd.f32 %v5287, %v5288
    %v5290 = vrot.slane %v5289, 4
    %v5291 = vadd.f32 %v5289, %v5290
    %v5292 = vrot.slane %v5291, 2
    %v5293 = vadd.f32 %v5291, %v5292
    %v5294 = vrot.slane %v5293, 1
    %v5295 = vadd.f32 %v5293, %v5294
    %v5296 = vadd.f32 %v3057, %v3058
    %v5297 = vadd.f32 %v5296, %v3059
    %v5298 = vadd.f32 %v5297, %v3060
    %v5299 = vadd.f32 %v5298, %v3061
    %v5300 = vadd.f32 %v5299, %v3062
    %v5301 = vadd.f32 %v5300, %v3063
    %v5302 = vadd.f32 %v5301, %v3064
    %v5303 = vadd.f32 %v5302, %v3065
    %v5304 = vadd.f32 %v5303, %v3066
    %v5305 = vadd.f32 %v5304, %v3067
    %v5306 = vadd.f32 %v5305, %v3068
    %v5307 = vsel %vm3159, %v3069, 0.0
    %v5308 = vadd.f32 %v5306, %v5307
    %v5309 = vrot.slane %v5308, 4
    %v5310 = vadd.f32 %v5308, %v5309
    %v5311 = vrot.slane %v5310, 2
    %v5312 = vadd.f32 %v5310, %v5311
    %v5313 = vrot.slane %v5312, 1
    %v5314 = vadd.f32 %v5312, %v5313
    %v5315 = vadd.f32 %v3070, %v3071
    %v5316 = vadd.f32 %v5315, %v3072
    %v5317 = vadd.f32 %v5316, %v3073
    %v5318 = vadd.f32 %v5317, %v3074
    %v5319 = vadd.f32 %v5318, %v3075
    %v5320 = vadd.f32 %v5319, %v3076
    %v5321 = vadd.f32 %v5320, %v3077
    %v5322 = vadd.f32 %v5321, %v3078
    %v5323 = vadd.f32 %v5322, %v3079
    %v5324 = vadd.f32 %v5323, %v3080
    %v5325 = vadd.f32 %v5324, %v3081
    %v5326 = vsel %vm3159, %v3082, 0.0
    %v5327 = vadd.f32 %v5325, %v5326
    %v5328 = vrot.slane %v5327, 4
    %v5329 = vadd.f32 %v5327, %v5328
    %v5330 = vrot.slane %v5329, 2
    %v5331 = vadd.f32 %v5329, %v5330
    %v5332 = vrot.slane %v5331, 1
    %v5333 = vadd.f32 %v5331, %v5332
    %v5334 = vadd.f32 %v3083, %v3084
    %v5335 = vadd.f32 %v5334, %v3085
    %v5336 = vadd.f32 %v5335, %v3086
    %v5337 = vadd.f32 %v5336, %v3087
    %v5338 = vadd.f32 %v5337, %v3088
    %v5339 = vadd.f32 %v5338, %v3089
    %v5340 = vadd.f32 %v5339, %v3090
    %v5341 = vadd.f32 %v5340, %v3091
    %v5342 = vadd.f32 %v5341, %v3092
    %v5343 = vadd.f32 %v5342, %v3093
    %v5344 = vadd.f32 %v5343, %v3094
    %v5345 = vsel %vm3159, %v3095, 0.0
    %v5346 = vadd.f32 %v5344, %v5345
    %v5347 = vrot.slane %v5346, 4
    %v5348 = vadd.f32 %v5346, %v5347
    %v5349 = vrot.slane %v5348, 2
    %v5350 = vadd.f32 %v5348, %v5349
    %v5351 = vrot.slane %v5350, 1
    %v5352 = vadd.f32 %v5350, %v5351
    %v5353 = vadd.f32 %v3096, %v3097
    %v5354 = vadd.f32 %v5353, %v3098
    %v5355 = vadd.f32 %v5354, %v3099
    %v5356 = vadd.f32 %v5355, %v3100
    %v5357 = vadd.f32 %v5356, %v3101
    %v5358 = vadd.f32 %v5357, %v3102
    %v5359 = vadd.f32 %v5358, %v3103
    %v5360 = vadd.f32 %v5359, %v3104
    %v5361 = vadd.f32 %v5360, %v3105
    %v5362 = vadd.f32 %v5361, %v3106
    %v5363 = vadd.f32 %v5362, %v3107
    %v5364 = vsel %vm3159, %v3108, 0.0
    %v5365 = vadd.f32 %v5363, %v5364
    %v5366 = vrot.slane %v5365, 4
    %v5367 = vadd.f32 %v5365, %v5366
    %v5368 = vrot.slane %v5367, 2
    %v5369 = vadd.f32 %v5367, %v5368
    %v5370 = vrot.slane %v5369, 1
    %v5371 = vadd.f32 %v5369, %v5370
    %v5372 = vadd.f32 %v3109, %v3110
    %v5373 = vadd.f32 %v5372, %v3111
    %v5374 = vadd.f32 %v5373, %v3112
    %v5375 = vadd.f32 %v5374, %v3113
    %v5376 = vadd.f32 %v5375, %v3114
    %v5377 = vadd.f32 %v5376, %v3115
    %v5378 = vadd.f32 %v5377, %v3116
    %v5379 = vadd.f32 %v5378, %v3117
    %v5380 = vadd.f32 %v5379, %v3118
    %v5381 = vadd.f32 %v5380, %v3119
    %v5382 = vadd.f32 %v5381, %v3120
    %v5383 = vsel %vm3159, %v3121, 0.0
    %v5384 = vadd.f32 %v5382, %v5383
    %v5385 = vrot.slane %v5384, 4
    %v5386 = vadd.f32 %v5384, %v5385
    %v5387 = vrot.slane %v5386, 2
    %v5388 = vadd.f32 %v5386, %v5387
    %v5389 = vrot.slane %v5388, 1
    %v5390 = vadd.f32 %v5388, %v5389
    %v5391 = vadd.f32 %v3122, %v3123
    %v5392 = vadd.f32 %v5391, %v3124
    %v5393 = vadd.f32 %v5392, %v3125
    %v5394 = vadd.f32 %v5393, %v3126
    %v5395 = vadd.f32 %v5394, %v3127
    %v5396 = vadd.f32 %v5395, %v3128
    %v5397 = vadd.f32 %v5396, %v3129
    %v5398 = vadd.f32 %v5397, %v3130
    %v5399 = vadd.f32 %v5398, %v3131
    %v5400 = vadd.f32 %v5399, %v3132
    %v5401 = vadd.f32 %v5400, %v3133
    %v5402 = vsel %vm3159, %v3134, 0.0
    %v5403 = vadd.f32 %v5401, %v5402
    %v5404 = vrot.slane %v5403, 4
    %v5405 = vadd.f32 %v5403, %v5404
    %v5406 = vrot.slane %v5405, 2
    %v5407 = vadd.f32 %v5405, %v5406
    %v5408 = vrot.slane %v5407, 1
    %v5409 = vadd.f32 %v5407, %v5408
    %v5410 = vadd.f32 %v3135, %v3136
    %v5411 = vadd.f32 %v5410, %v3137
    %v5412 = vadd.f32 %v5411, %v3138
    %v5413 = vadd.f32 %v5412, %v3139
    %v5414 = vadd.f32 %v5413, %v3140
    %v5415 = vadd.f32 %v5414, %v3141
    %v5416 = vadd.f32 %v5415, %v3142
    %v5417 = vadd.f32 %v5416, %v3143
    %v5418 = vadd.f32 %v5417, %v3144
    %v5419 = vadd.f32 %v5418, %v3145
    %v5420 = vadd.f32 %v5419, %v3146
    %v5421 = vsel %vm3159, %v3147, 0.0
    %v5422 = vadd.f32 %v5420, %v5421
    %v5423 = vrot.slane %v5422, 4
    %v5424 = vadd.f32 %v5422, %v5423
    %v5425 = vrot.slane %v5424, 2
    %v5426 = vadd.f32 %v5424, %v5425
    %v5427 = vrot.slane %v5426, 1
    %v5428 = vadd.f32 %v5426, %v5427
    %v5429 = vld [vmem:[%s2] sm:$0x1]
    %v5431 = vlaneseq
    %v5432 = vshrl.u32 %v5431, 7
    %v5433 = vsub.s32 0, %v5432
    %v5434 = vrot.slane %v5429, %v5433
    %v5436 = vadd.f32 %v3167, %v5434
    %v5437 = vadd.f32 %v3186, %v5434
    %v5438 = vadd.f32 %v3205, %v5434
    %v5439 = vadd.f32 %v3224, %v5434
    %v5440 = vadd.f32 %v3243, %v5434
    %v5441 = vadd.f32 %v3262, %v5434
    %v5442 = vadd.f32 %v3281, %v5434
    %v5443 = vadd.f32 %v3300, %v5434
    %v5444 = vadd.f32 %v3319, %v5434
    %v5445 = vadd.f32 %v3338, %v5434
    %v5446 = vadd.f32 %v3357, %v5434
    %v5447 = vadd.f32 %v3376, %v5434
    %v5448 = vadd.f32 %v3395, %v5434
    %v5449 = vadd.f32 %v3414, %v5434
    %v5450 = vadd.f32 %v3433, %v5434
    %v5451 = vadd.f32 %v3452, %v5434
    %v5452 = vadd.f32 %v3471, %v5434
    %v5453 = vadd.f32 %v3490, %v5434
    %v5454 = vadd.f32 %v3509, %v5434
    %v5455 = vadd.f32 %v3528, %v5434
    %v5456 = vadd.f32 %v3547, %v5434
    %v5457 = vadd.f32 %v3566, %v5434
    %v5458 = vadd.f32 %v3585, %v5434
    %v5459 = vadd.f32 %v3604, %v5434
    %v5460 = vadd.f32 %v3623, %v5434
    %v5461 = vadd.f32 %v3642, %v5434
    %v5462 = vadd.f32 %v3661, %v5434
    %v5463 = vadd.f32 %v3680, %v5434
    %v5464 = vadd.f32 %v3699, %v5434
    %v5465 = vadd.f32 %v3718, %v5434
    %v5466 = vadd.f32 %v3737, %v5434
    %v5467 = vadd.f32 %v3756, %v5434
    %v5468 = vadd.f32 %v3775, %v5434
    %v5469 = vadd.f32 %v3794, %v5434
    %v5470 = vadd.f32 %v3813, %v5434
    %v5471 = vadd.f32 %v3832, %v5434
    %v5472 = vadd.f32 %v3851, %v5434
    %v5473 = vadd.f32 %v3870, %v5434
    %v5474 = vadd.f32 %v3889, %v5434
    %v5475 = vadd.f32 %v3908, %v5434
    %v5476 = vadd.f32 %v3927, %v5434
    %v5477 = vadd.f32 %v3946, %v5434
    %v5478 = vadd.f32 %v3965, %v5434
    %v5479 = vadd.f32 %v3984, %v5434
    %v5480 = vadd.f32 %v4003, %v5434
    %v5481 = vadd.f32 %v4022, %v5434
    %v5482 = vadd.f32 %v4041, %v5434
    %v5483 = vadd.f32 %v4060, %v5434
    %v5484 = vadd.f32 %v4079, %v5434
    %v5485 = vadd.f32 %v4098, %v5434
    %v5486 = vadd.f32 %v4117, %v5434
    %v5487 = vadd.f32 %v4136, %v5434
    %v5488 = vadd.f32 %v4155, %v5434
    %v5489 = vadd.f32 %v4174, %v5434
    %v5490 = vadd.f32 %v4193, %v5434
    %v5491 = vadd.f32 %v4212, %v5434
    %v5492 = vadd.f32 %v4231, %v5434
    %v5493 = vadd.f32 %v4250, %v5434
    %v5494 = vadd.f32 %v4269, %v5434
    %v5495 = vadd.f32 %v4288, %v5434
    %v5496 = vadd.f32 %v4307, %v5434
    %v5497 = vadd.f32 %v4326, %v5434
    %v5498 = vadd.f32 %v4345, %v5434
    %v5499 = vadd.f32 %v4364, %v5434
    %v5500 = vadd.f32 %v4383, %v5434
    %v5501 = vadd.f32 %v4402, %v5434
    %v5502 = vadd.f32 %v4421, %v5434
    %v5503 = vadd.f32 %v4440, %v5434
    %v5504 = vadd.f32 %v4459, %v5434
    %v5505 = vadd.f32 %v4478, %v5434
    %v5506 = vadd.f32 %v4497, %v5434
    %v5507 = vadd.f32 %v4516, %v5434
    %v5508 = vadd.f32 %v4535, %v5434
    %v5509 = vadd.f32 %v4554, %v5434
    %v5510 = vadd.f32 %v4573, %v5434
    %v5511 = vadd.f32 %v4592, %v5434
    %v5512 = vadd.f32 %v4611, %v5434
    %v5513 = vadd.f32 %v4630, %v5434
    %v5514 = vadd.f32 %v4649, %v5434
    %v5515 = vadd.f32 %v4668, %v5434
    %v5516 = vadd.f32 %v4687, %v5434
    %v5517 = vadd.f32 %v4706, %v5434
    %v5518 = vadd.f32 %v4725, %v5434
    %v5519 = vadd.f32 %v4744, %v5434
    %v5520 = vadd.f32 %v4763, %v5434
    %v5521 = vadd.f32 %v4782, %v5434
    %v5522 = vadd.f32 %v4801, %v5434
    %v5523 = vadd.f32 %v4820, %v5434
    %v5524 = vadd.f32 %v4839, %v5434
    %v5525 = vadd.f32 %v4858, %v5434
    %v5526 = vadd.f32 %v4877, %v5434
    %v5527 = vadd.f32 %v4896, %v5434
    %v5528 = vadd.f32 %v4915, %v5434
    %v5529 = vadd.f32 %v4934, %v5434
    %v5530 = vadd.f32 %v4953, %v5434
    %v5531 = vadd.f32 %v4972, %v5434
    %v5532 = vadd.f32 %v4991, %v5434
    %v5533 = vadd.f32 %v5010, %v5434
    %v5534 = vadd.f32 %v5029, %v5434
    %v5535 = vadd.f32 %v5048, %v5434
    %v5536 = vadd.f32 %v5067, %v5434
    %v5537 = vadd.f32 %v5086, %v5434
    %v5538 = vadd.f32 %v5105, %v5434
    %v5539 = vadd.f32 %v5124, %v5434
    %v5540 = vadd.f32 %v5143, %v5434
    %v5541 = vadd.f32 %v5162, %v5434
    %v5542 = vadd.f32 %v5181, %v5434
    %v5543 = vadd.f32 %v5200, %v5434
    %v5544 = vadd.f32 %v5219, %v5434
    %v5545 = vadd.f32 %v5238, %v5434
    %v5546 = vadd.f32 %v5257, %v5434
    %v5547 = vadd.f32 %v5276, %v5434
    %v5548 = vadd.f32 %v5295, %v5434
    %v5549 = vadd.f32 %v5314, %v5434
    %v5550 = vadd.f32 %v5333, %v5434
    %v5551 = vadd.f32 %v5352, %v5434
    %v5552 = vadd.f32 %v5371, %v5434
    %v5553 = vadd.f32 %v5390, %v5434
    %v5554 = vadd.f32 %v5409, %v5434
    %v5555 = vadd.f32 %v5428, %v5434
    %v5676 = vrot.slane %v5437, 7
    %vm5677 = vcmask 1041409
    %v5678 = vsel %vm5677, %v5676, %v5436
    %v5679 = vrot.slane %v5438, 6
    %vm5680 = vcmask 1042434
    %v5681 = vsel %vm5680, %v5679, %v5678
    %v5682 = vrot.slane %v5439, 5
    %vm5683 = vcmask 1043459
    %v5684 = vsel %vm5683, %v5682, %v5681
    %v5685 = vrot.slane %v5440, 4
    %vm5686 = vcmask 1044484
    %v5687 = vsel %vm5686, %v5685, %v5684
    %v5688 = vrot.slane %v5441, 3
    %vm5689 = vcmask 1045509
    %v5690 = vsel %vm5689, %v5688, %v5687
    %v5691 = vrot.slane %v5442, 2
    %vm5692 = vcmask 1046534
    %v5693 = vsel %vm5692, %v5691, %v5690
    %v5694 = vrot.slane %v5443, 1
    %vm5695 = vcmask 1047559
    %v5696 = vsel %vm5695, %v5694, %v5693
    %v5697 = vrot.slane %v5445, 7
    %v5698 = vsel %vm5677, %v5697, %v5444
    %v5699 = vrot.slane %v5446, 6
    %v5700 = vsel %vm5680, %v5699, %v5698
    %v5701 = vrot.slane %v5447, 5
    %v5702 = vsel %vm5683, %v5701, %v5700
    %v5703 = vrot.slane %v5448, 4
    %v5704 = vsel %vm5686, %v5703, %v5702
    %v5705 = vrot.slane %v5449, 3
    %v5706 = vsel %vm5689, %v5705, %v5704
    %v5707 = vrot.slane %v5450, 2
    %v5708 = vsel %vm5692, %v5707, %v5706
    %v5709 = vrot.slane %v5451, 1
    %v5710 = vsel %vm5695, %v5709, %v5708
    %v5711 = vrot.slane %v5453, 7
    %v5712 = vsel %vm5677, %v5711, %v5452
    %v5713 = vrot.slane %v5454, 6
    %v5714 = vsel %vm5680, %v5713, %v5712
    %v5715 = vrot.slane %v5455, 5
    %v5716 = vsel %vm5683, %v5715, %v5714
    %v5717 = vrot.slane %v5456, 4
    %v5718 = vsel %vm5686, %v5717, %v5716
    %v5719 = vrot.slane %v5457, 3
    %v5720 = vsel %vm5689, %v5719, %v5718
    %v5721 = vrot.slane %v5458, 2
    %v5722 = vsel %vm5692, %v5721, %v5720
    %v5723 = vrot.slane %v5459, 1
    %v5724 = vsel %vm5695, %v5723, %v5722
    %v5725 = vrot.slane %v5461, 7
    %v5726 = vsel %vm5677, %v5725, %v5460
    %v5727 = vrot.slane %v5462, 6
    %v5728 = vsel %vm5680, %v5727, %v5726
    %v5729 = vrot.slane %v5463, 5
    %v5730 = vsel %vm5683, %v5729, %v5728
    %v5731 = vrot.slane %v5464, 4
    %v5732 = vsel %vm5686, %v5731, %v5730
    %v5733 = vrot.slane %v5465, 3
    %v5734 = vsel %vm5689, %v5733, %v5732
    %v5735 = vrot.slane %v5466, 2
    %v5736 = vsel %vm5692, %v5735, %v5734
    %v5737 = vrot.slane %v5467, 1
    %v5738 = vsel %vm5695, %v5737, %v5736
    %v5739 = vrot.slane %v5469, 7
    %v5740 = vsel %vm5677, %v5739, %v5468
    %v5741 = vrot.slane %v5470, 6
    %v5742 = vsel %vm5680, %v5741, %v5740
    %v5743 = vrot.slane %v5471, 5
    %v5744 = vsel %vm5683, %v5743, %v5742
    %v5745 = vrot.slane %v5472, 4
    %v5746 = vsel %vm5686, %v5745, %v5744
    %v5747 = vrot.slane %v5473, 3
    %v5748 = vsel %vm5689, %v5747, %v5746
    %v5749 = vrot.slane %v5474, 2
    %v5750 = vsel %vm5692, %v5749, %v5748
    %v5751 = vrot.slane %v5475, 1
    %v5752 = vsel %vm5695, %v5751, %v5750
    %v5753 = vrot.slane %v5477, 7
    %v5754 = vsel %vm5677, %v5753, %v5476
    %v5755 = vrot.slane %v5478, 6
    %v5756 = vsel %vm5680, %v5755, %v5754
    %v5757 = vrot.slane %v5479, 5
    %v5758 = vsel %vm5683, %v5757, %v5756
    %v5759 = vrot.slane %v5480, 4
    %v5760 = vsel %vm5686, %v5759, %v5758
    %v5761 = vrot.slane %v5481, 3
    %v5762 = vsel %vm5689, %v5761, %v5760
    %v5763 = vrot.slane %v5482, 2
    %v5764 = vsel %vm5692, %v5763, %v5762
    %v5765 = vrot.slane %v5483, 1
    %v5766 = vsel %vm5695, %v5765, %v5764
    %v5767 = vrot.slane %v5485, 7
    %v5768 = vsel %vm5677, %v5767, %v5484
    %v5769 = vrot.slane %v5486, 6
    %v5770 = vsel %vm5680, %v5769, %v5768
    %v5771 = vrot.slane %v5487, 5
    %v5772 = vsel %vm5683, %v5771, %v5770
    %v5773 = vrot.slane %v5488, 4
    %v5774 = vsel %vm5686, %v5773, %v5772
    %v5775 = vrot.slane %v5489, 3
    %v5776 = vsel %vm5689, %v5775, %v5774
    %v5777 = vrot.slane %v5490, 2
    %v5778 = vsel %vm5692, %v5777, %v5776
    %v5779 = vrot.slane %v5491, 1
    %v5780 = vsel %vm5695, %v5779, %v5778
    %v5781 = vrot.slane %v5493, 7
    %v5782 = vsel %vm5677, %v5781, %v5492
    %v5783 = vrot.slane %v5494, 6
    %v5784 = vsel %vm5680, %v5783, %v5782
    %v5785 = vrot.slane %v5495, 5
    %v5786 = vsel %vm5683, %v5785, %v5784
    %v5787 = vrot.slane %v5496, 4
    %v5788 = vsel %vm5686, %v5787, %v5786
    %v5789 = vrot.slane %v5497, 3
    %v5790 = vsel %vm5689, %v5789, %v5788
    %v5791 = vrot.slane %v5498, 2
    %v5792 = vsel %vm5692, %v5791, %v5790
    %v5793 = vrot.slane %v5499, 1
    %v5794 = vsel %vm5695, %v5793, %v5792
    %v5795 = vrot.slane %v5501, 7
    %v5796 = vsel %vm5677, %v5795, %v5500
    %v5797 = vrot.slane %v5502, 6
    %v5798 = vsel %vm5680, %v5797, %v5796
    %v5799 = vrot.slane %v5503, 5
    %v5800 = vsel %vm5683, %v5799, %v5798
    %v5801 = vrot.slane %v5504, 4
    %v5802 = vsel %vm5686, %v5801, %v5800
    %v5803 = vrot.slane %v5505, 3
    %v5804 = vsel %vm5689, %v5803, %v5802
    %v5805 = vrot.slane %v5506, 2
    %v5806 = vsel %vm5692, %v5805, %v5804
    %v5807 = vrot.slane %v5507, 1
    %v5808 = vsel %vm5695, %v5807, %v5806
    %v5809 = vrot.slane %v5509, 7
    %v5810 = vsel %vm5677, %v5809, %v5508
    %v5811 = vrot.slane %v5510, 6
    %v5812 = vsel %vm5680, %v5811, %v5810
    %v5813 = vrot.slane %v5511, 5
    %v5814 = vsel %vm5683, %v5813, %v5812
    %v5815 = vrot.slane %v5512, 4
    %v5816 = vsel %vm5686, %v5815, %v5814
    %v5817 = vrot.slane %v5513, 3
    %v5818 = vsel %vm5689, %v5817, %v5816
    %v5819 = vrot.slane %v5514, 2
    %v5820 = vsel %vm5692, %v5819, %v5818
    %v5821 = vrot.slane %v5515, 1
    %v5822 = vsel %vm5695, %v5821, %v5820
    %v5823 = vrot.slane %v5517, 7
    %v5824 = vsel %vm5677, %v5823, %v5516
    %v5825 = vrot.slane %v5518, 6
    %v5826 = vsel %vm5680, %v5825, %v5824
    %v5827 = vrot.slane %v5519, 5
    %v5828 = vsel %vm5683, %v5827, %v5826
    %v5829 = vrot.slane %v5520, 4
    %v5830 = vsel %vm5686, %v5829, %v5828
    %v5831 = vrot.slane %v5521, 3
    %v5832 = vsel %vm5689, %v5831, %v5830
    %v5833 = vrot.slane %v5522, 2
    %v5834 = vsel %vm5692, %v5833, %v5832
    %v5835 = vrot.slane %v5523, 1
    %v5836 = vsel %vm5695, %v5835, %v5834
    %v5837 = vrot.slane %v5525, 7
    %v5838 = vsel %vm5677, %v5837, %v5524
    %v5839 = vrot.slane %v5526, 6
    %v5840 = vsel %vm5680, %v5839, %v5838
    %v5841 = vrot.slane %v5527, 5
    %v5842 = vsel %vm5683, %v5841, %v5840
    %v5843 = vrot.slane %v5528, 4
    %v5844 = vsel %vm5686, %v5843, %v5842
    %v5845 = vrot.slane %v5529, 3
    %v5846 = vsel %vm5689, %v5845, %v5844
    %v5847 = vrot.slane %v5530, 2
    %v5848 = vsel %vm5692, %v5847, %v5846
    %v5849 = vrot.slane %v5531, 1
    %v5850 = vsel %vm5695, %v5849, %v5848
    %v5851 = vrot.slane %v5533, 7
    %v5852 = vsel %vm5677, %v5851, %v5532
    %v5853 = vrot.slane %v5534, 6
    %v5854 = vsel %vm5680, %v5853, %v5852
    %v5855 = vrot.slane %v5535, 5
    %v5856 = vsel %vm5683, %v5855, %v5854
    %v5857 = vrot.slane %v5536, 4
    %v5858 = vsel %vm5686, %v5857, %v5856
    %v5859 = vrot.slane %v5537, 3
    %v5860 = vsel %vm5689, %v5859, %v5858
    %v5861 = vrot.slane %v5538, 2
    %v5862 = vsel %vm5692, %v5861, %v5860
    %v5863 = vrot.slane %v5539, 1
    %v5864 = vsel %vm5695, %v5863, %v5862
    %v5865 = vrot.slane %v5541, 7
    %v5866 = vsel %vm5677, %v5865, %v5540
    %v5867 = vrot.slane %v5542, 6
    %v5868 = vsel %vm5680, %v5867, %v5866
    %v5869 = vrot.slane %v5543, 5
    %v5870 = vsel %vm5683, %v5869, %v5868
    %v5871 = vrot.slane %v5544, 4
    %v5872 = vsel %vm5686, %v5871, %v5870
    %v5873 = vrot.slane %v5545, 3
    %v5874 = vsel %vm5689, %v5873, %v5872
    %v5875 = vrot.slane %v5546, 2
    %v5876 = vsel %vm5692, %v5875, %v5874
    %v5877 = vrot.slane %v5547, 1
    %v5878 = vsel %vm5695, %v5877, %v5876
    %v5879 = vrot.slane %v5549, 7
    %v5880 = vsel %vm5677, %v5879, %v5548
    %v5881 = vrot.slane %v5550, 6
    %v5882 = vsel %vm5680, %v5881, %v5880
    %v5883 = vrot.slane %v5551, 5
    %v5884 = vsel %vm5683, %v5883, %v5882
    %v5885 = vrot.slane %v5552, 4
    %v5886 = vsel %vm5686, %v5885, %v5884
    %v5887 = vrot.slane %v5553, 3
    %v5888 = vsel %vm5689, %v5887, %v5886
    %v5889 = vrot.slane %v5554, 2
    %v5890 = vsel %vm5692, %v5889, %v5888
    %v5891 = vrot.slane %v5555, 1
    %v5892 = vsel %vm5695, %v5891, %v5890
    %5908 = vst [vmem:[#allocation2] sm:$0xff] %v5696
    %5909 = vst [vmem:[#allocation2 + $0x8] sm:$0xff] %v5710
    %5910 = vst [vmem:[#allocation2 + $0x10] sm:$0xff] %v5724
    %5911 = vst [vmem:[#allocation2 + $0x18] sm:$0xff] %v5738
    %5912 = vst [vmem:[#allocation2 + $0x20] sm:$0xff] %v5752
    %5913 = vst [vmem:[#allocation2 + $0x28] sm:$0xff] %v5766
    %5914 = vst [vmem:[#allocation2 + $0x30] sm:$0xff] %v5780
    %5915 = vst [vmem:[#allocation2 + $0x38] sm:$0xff] %v5794
    %5916 = vst [vmem:[#allocation2 + $0x40] sm:$0xff] %v5808
    %5917 = vst [vmem:[#allocation2 + $0x48] sm:$0xff] %v5822
    %5918 = vst [vmem:[#allocation2 + $0x50] sm:$0xff] %v5836
    %5919 = vst [vmem:[#allocation2 + $0x58] sm:$0xff] %v5850
    %5920 = vst [vmem:[#allocation2 + $0x60] sm:$0xff] %v5864
    %5921 = vst [vmem:[#allocation2 + $0x68] sm:$0xff] %v5878
    %5922 = vst [vmem:[#allocation2 + $0x70] sm:$0xff] %v5892
    // Predicated region
    $region14: #{tpu_custom_call.1} parent=1 // pred_check
      _
    $region15: #{tpu_custom_call.1} parent=1 // pred_check_branch
      %5924 = sbr.rel (0) target = $region17
    $region16: #{tpu_custom_call.1} parent=1 // pred_region
      %s5926 = ssub.s32 1920, 1920
      %5927 = vsyncadd [#allocation3], %s5926
      %s5928 = sshll.u32 [#allocation2], 4
      %s5929 = int_to_ptr.vmem [resolvable:$true] %s5928
      %5934 = dma.vmem_to_hbm [thread:$0]  %s5929, 1920, %s3, [#allocation3], 128, 128, 8
    $region17: #{tpu_custom_call.1} parent=1 // pred_fallthru
      _
    // Predicated region
    $region18: #{tpu_custom_call.1} parent=1 // pred_check
      _
    $region19: #{tpu_custom_call.1} parent=1 // pred_check_branch
      %5936 = sbr.rel (0) target = $region21
    $region20: #{tpu_custom_call.1} parent=1 // pred_region
      %5937 = dma.done [#allocation3], 1920
    $region21: #{tpu_custom_call.1} parent=1 // pred_fallthru
      _
    %5938 = vsyncpa [#allocation3], 1

</llo_original>
